<compile_context>
chip_gen: v6e
topology: v6e:2x2x1
jax: 0.10.0
libtpu: 0.0.40
codegen_flags: <defaults>
</compile_context>

<pallas_src>
import functools

import jax
import jax.numpy as jnp
from jax.experimental import pallas as pl
from jax.experimental.pallas import tpu as pltpu


NUM_CLASSES = 10
N_PAD = 128   # lane-dense padded class dimension (multiple of 128)
MARG = 128    # outer lane margin of the staged input / h1 buffers (>= Wp+1, vreg aligned)


def _layout(H, W):
    """Shared layout constants: padded spatial dims and the per-image lane window."""
    Hp, Wp = H + 2, W + 2
    Sp = Hp * Wp
    off = ((Wp + 1 + 7) // 8) * 8                         # halo-sized head gap in the window
    spad = ((Sp + off + Wp + 1 + 127) // 128) * 128       # per-image window, multiple of 128
    return Hp, Wp, Sp, spad, off


# ---------------------------------------------------------------------------
# Fused forward kernel: conv1 -> ReLU -> conv2 -> ReLU -> flatten -> FC
# ---------------------------------------------------------------------------
def _fused_forward_kernel(x_ref, w1_ref, b1_ref, w2_ref, b2_ref, mask_ref,
                          wfc_ref, fcb_ref, *rest,
                          B, Cin, C1, C2, Wp, Spad, emit_traces):
    rhs1_ref, h1buf_ref, rhs2_ref, fcl_ref = rest[-4:]
    out_refs = rest[:-4]
    if emit_traces:
        o_ref, z1_ref, h1_ref, z2_ref, h2_ref = out_refs
    else:
        (o_ref,) = out_refs

    Wt = B * Spad                      # total activation lanes (channel-major layout (C, Wt))
    mask = mask_ref[...]               # (1, Wt): 1.0 at interior (non-padding / non-gap) lanes
    taps = [(kh - 1) * Wp + (kw - 1) for kh in range(3) for kw in range(3)]

    # ---- conv1: stage the 9 tap-shifted lane windows along K, then ONE MXU dot (K = 9*Cin).
    #      (These static lane windows could alternatively be built from 3 row shifts +
    #       single-lane pltpu.roll's to cut XLU work on v6e/v7x.)
    for k, d in enumerate(taps):
        rhs1_ref[k * Cin:(k + 1) * Cin, :] = x_ref[:, MARG + d:MARG + d + Wt]
    z1 = jnp.dot(w1_ref[...], rhs1_ref[...],
                 preferred_element_type=jnp.float32) + b1_ref[...]
    h1 = jnp.maximum(z1, 0.0) * mask   # fused ReLU; mask re-zeroes padding ring / gap lanes

    if emit_traces:
        z1_ref[...] = z1
        h1_ref[...] = h1

    # ---- conv2: stage h1 with zero lane margins (only the two margins are zero-filled),
    #      then the same shifted-window -> single-dot trick with K = 9*C1.
    h1buf_ref[:, :MARG] = jnp.zeros((C1, MARG), jnp.float32)
    h1buf_ref[:, MARG + Wt:] = jnp.zeros((C1, MARG), jnp.float32)
    h1buf_ref[:, MARG:MARG + Wt] = h1
    for k, d in enumerate(taps):
        rhs2_ref[k * C1:(k + 1) * C1, :] = h1buf_ref[:, MARG + d:MARG + d + Wt]
    z2 = jnp.dot(w2_ref[...], rhs2_ref[...],
                 preferred_element_type=jnp.float32) + b2_ref[...]
    h2 = jnp.maximum(z2, 0.0) * mask   # masked: robust (no ring garbage reaches the FC)

    if emit_traces:
        z2_ref[...] = z2
        h2_ref[...] = h2

    # ---- FC head (flatten + Linear): gather per-image/per-channel 384-lane blocks (all
    #      lane-aligned) into a (B, C2*Spad) LHS, cast to bf16, and do ONE dot against the
    #      bf16 (C2*Spad, N_PAD) repacked weight — the weight is pushed into the MXU once.
    for c in range(C2):
        for b in range(B):
            fcl_ref[b:b + 1, c * Spad:(c + 1) * Spad] = h2[c:c + 1, b * Spad:(b + 1) * Spad]
    logits = jnp.dot(fcl_ref[...].astype(jnp.bfloat16), wfc_ref[...],
                     preferred_element_type=jnp.float32) + fcb_ref[...]
    o_ref[...] = logits                # single unmasked lane-dense (B, 128) store


# ---------------------------------------------------------------------------
# One-time parameter repacking (outside the per-call hot path)
# ---------------------------------------------------------------------------
def prepare_params(params, B, H, W):
    """Repack PyTorch-layout weights (and the constant mask) into kernel layouts."""
    c1w, c1b = params["conv1_w"], params["conv1_b"]   # (C1, Cin, 3, 3), (C1,)
    c2w, c2b = params["conv2_w"], params["conv2_b"]   # (C2, C1, 3, 3), (C2,)
    fcw, fcb = params["fc_w"], params["fc_b"]         # (N, C2*H*W), (N,)

    C1, Cin = c1w.shape[0], c1w.shape[1]
    C2 = c2w.shape[0]
    N = fcw.shape[0]
    Hp, Wp, Sp, Spad, off = _layout(H, W)

    # Conv weights -> (Cout, 9*Cin): K ordered tap-major / channel-minor (matches staging).
    w1p = jnp.transpose(c1w, (0, 2, 3, 1)).reshape(C1, 9 * Cin)
    w2p = jnp.transpose(c2w, (0, 2, 3, 1)).reshape(C2, 9 * C1)
    b1 = c1b.reshape(C1, 1)
    b2 = c2b.reshape(C2, 1)

    # FC weight: (N, C2*H*W) NCHW-flat -> (C2*Spad, N_PAD) bf16, matching the kernel's
    # (B, C2*Spad) channel-major padded-flat LHS; zero rows at padding/gap positions.
    wfc = jnp.transpose(fcw.reshape(N, C2, H, W), (1, 2, 3, 0))          # (C2, H, W, N)
    wfc = jnp.pad(wfc, ((0, 0), (1, 1), (1, 1), (0, N_PAD - N)))         # (C2, Hp, Wp, N_PAD)
    wfc = wfc.reshape(C2, Sp, N_PAD)
    wfc = jnp.pad(wfc, ((0, 0), (off, Spad - off - Sp), (0, 0)))         # (C2, Spad, N_PAD)
    wfc = wfc.reshape(C2 * Spad, N_PAD).astype(jnp.bfloat16)
    fcb_pad = jnp.pad(fcb, (0, N_PAD - N)).reshape(1, N_PAD)

    # Interior mask over one padded-image window, tiled over the batch (constant, built once).
    s = jnp.arange(Spad)
    q = s - off
    r, col = q // Wp, q % Wp
    interior = ((q >= 0) & (q < Sp) & (r >= 1) & (r <= H) & (col >= 1) & (col <= W))
    mask = jnp.tile(interior.astype(jnp.float32), (B,)).reshape(1, B * Spad)

    return {"w1p": w1p, "b1": b1, "w2p": w2p, "b2": b2,
            "wfc": wfc, "fcb": fcb_pad, "mask": mask}


# ---------------------------------------------------------------------------
# Forward (single fused pallas_call + minimal XLA glue)
# ---------------------------------------------------------------------------
@functools.partial(jax.jit, static_argnames=("traceable",))
def _forward_impl(x_nchw, kp, traceable=False):
    B, Cin, H, W = x_nchw.shape
    C1 = kp["b1"].shape[0]
    C2 = kp["b2"].shape[0]
    Hp, Wp, Sp, Spad, off = _layout(H, W)
    Wt = B * Spad

    # Input prep: NCHW -> channel-major, per-image spatially padded + gap-padded flat lanes,
    # plus 128-lane outer margins (conv halo for the very first / last image edges).
    xp = jnp.pad(x_nchw, ((0, 0), (0, 0), (1, 1), (1, 1)))               # (B, Cin, Hp, Wp)
    xc = jnp.transpose(xp, (1, 0, 2, 3)).reshape(Cin, B, Sp)             # (Cin, B, Sp)
    xc = jnp.pad(xc, ((0, 0), (0, 0), (off, Spad - off - Sp)))           # (Cin, B, Spad)
    xm = jnp.pad(xc.reshape(Cin, Wt), ((0, 0), (MARG, MARG)))            # (Cin, 2*MARG + Wt)

    vmem = pl.BlockSpec(memory_space=pltpu.MemorySpace.VMEM)
    out_shape = [jax.ShapeDtypeStruct((B, N_PAD), jnp.float32)]
    if traceable:
        out_shape += [jax.ShapeDtypeStruct((C1, Wt), jnp.float32),   # z1 (pre-ReLU conv1)
                      jax.ShapeDtypeStruct((C1, Wt), jnp.float32),   # h1 (post-ReLU)
                      jax.ShapeDtypeStruct((C2, Wt), jnp.float32),   # z2
                      jax.ShapeDtypeStruct((C2, Wt), jnp.float32)]   # h2

    kernel = functools.partial(_fused_forward_kernel, B=B, Cin=Cin, C1=C1, C2=C2,
                               Wp=Wp, Spad=Spad, emit_traces=traceable)

    outs = pl.pallas_call(
        kernel,
        out_shape=tuple(out_shape),
        in_specs=[vmem] * 8,
        out_specs=tuple([vmem] * len(out_shape)),
        scratch_shapes=[
            pltpu.VMEM((9 * Cin, Wt), jnp.float32),        # conv1 staged RHS (taps in K)
            pltpu.VMEM((C1, 2 * MARG + Wt), jnp.float32),  # h1 with zero lane margins
            pltpu.VMEM((9 * C1, Wt), jnp.float32),         # conv2 staged RHS (taps in K)
            pltpu.VMEM((B, C2 * Spad), jnp.float32),       # FC LHS (cast to bf16 at the dot)
        ],
    )(xm, kp["w1p"], kp["b1"], kp["w2p"], kp["b2"], kp["mask"], kp["wfc"], kp["fcb"])

    logits = outs[0][:, :NUM_CLASSES]
    if not traceable:
        return logits, ()

    def to_nchw(a, C):
        a = a.reshape(C, B, Spad)[:, :, off:off + Sp]
        a = a.reshape(C, B, Hp, Wp)[:, :, 1:H + 1, 1:W + 1]
        return jnp.transpose(a, (1, 0, 2, 3))

    z1, h1, z2, h2 = outs[1:]
    return logits, (to_nchw(z1, C1), to_nchw(h1, C1), to_nchw(z2, C2), to_nchw(h2, C2))


def traceable_net_forward(x_nchw, params, kparams, traceable=False):
    """Equivalent of GenericTraceableNet.forward with the wrapped small CNN.

    Returns (logits, traces); traces mirrors TraceableSequential.get_traces():
    a list of (module_input, module_output, module_name, weight-if-4d).
    """
    logits, tarrs = _forward_impl(x_nchw, kparams, traceable=traceable)
    traces = []
    if traceable:
        z1, h1, z2, h2 = tarrs
        traces = [
            (x_nchw, z1, "Conv2d", params["conv1_w"]),
            (z1, h1, "ReLU", None),
            (h1, z2, "Conv2d", params["conv2_w"]),
            (z2, h2, "ReLU", None),
        ]
    return logits, traces
    # TODO(synk): save_model / load_model (pt_util), classify()/loss() helpers and .detach()
    # semantics are host-side / training-side bookkeeping with no kernel equivalent.


def _conv_same(h, w, b):
    y = jax.lax.conv_general_dilated(
        h, w, (1, 1), "SAME", dimension_numbers=("NCHW", "OIHW", "NCHW"))
    return y + b.reshape(1, -1, 1, 1)


def reference_forward(x, params):
    """Pure-JAX reference (same math, no Pallas) for a correctness check."""
    h = jnp.maximum(_conv_same(x, params["conv1_w"], params["conv1_b"]), 0.0)
    h = jnp.maximum(_conv_same(h, params["conv2_w"], params["conv2_b"]), 0.0)
    flat = h.reshape(h.shape[0], -1)
    return flat @ params["fc_w"].T + params["fc_b"]


if __name__ == "__main__":
    B, Cin, H, W = 2, 4, 16, 16
    C1, C2 = 8, 8

    key = jax.random.PRNGKey(0)
    kx, k1, k2, k3, k4, k5, k6 = jax.random.split(key, 7)

    x = jax.random.normal(kx, (B, Cin, H, W), jnp.float32)

    params = {
        # PyTorch Conv2d weight layout: (Cout, Cin, kH, kW)
        "conv1_w": 0.1 * jax.random.normal(k1, (C1, Cin, 3, 3), jnp.float32),
        "conv1_b": 0.1 * jax.random.normal(k2, (C1,), jnp.float32),
        "conv2_w": 0.1 * jax.random.normal(k3, (C2, C1, 3, 3), jnp.float32),
        "conv2_b": 0.1 * jax.random.normal(k4, (C2,), jnp.float32),
        # PyTorch Linear weight layout: (out_features, in_features)
        "fc_w": 0.05 * jax.random.normal(k5, (NUM_CLASSES, C2 * H * W), jnp.float32),
        "fc_b": 0.05 * jax.random.normal(k6, (NUM_CLASSES,), jnp.float32),
    }

    # One-time weight repack (outside the per-call hot path).
    kparams = prepare_params(params, B, H, W)

    ref = reference_forward(x, params)

    # Non-traceable (hot) path: a single fused pallas_call.
    logits, traces = traceable_net_forward(x, params, kparams, traceable=False)
    logits = jax.block_until_ready(logits)
    assert logits.shape == (B, NUM_CLASSES)
    assert len(traces) == 0
    # bf16 FC weight/LHS (f32 accumulation) -> slightly looser tolerance than pure f32.
    assert jnp.allclose(logits, ref, atol=5e-3, rtol=5e-3), "mismatch vs reference"

    # Traceable path: same kernel, extra trace outputs.
    logits_t, traces_t = traceable_net_forward(x, params, kparams, traceable=True)
    logits_t = jax.block_until_ready(logits_t)
    assert jnp.allclose(logits_t, ref, atol=5e-3, rtol=5e-3), "mismatch vs reference (traced)"
    assert len(traces_t) == 4
    assert traces_t[0][3].ndim == 4 and traces_t[1][3] is None
    assert traces_t[1][1].shape == (B, C1, H, W)
    # Trace consistency: conv1 trace matches the reference conv, and ReLU(z2) == h2 trace.
    ref_h1 = jnp.maximum(_conv_same(x, params["conv1_w"], params["conv1_b"]), 0.0)
    assert jnp.allclose(traces_t[1][1], ref_h1, atol=1e-4, rtol=1e-4)
    assert jnp.allclose(traces_t[3][1], jnp.maximum(traces_t[2][1], 0.0), atol=1e-6)

    print("KERNEL_OK")
</pallas_src>

<mosaic_0001>
module attributes {stable_mosaic.version = 11 : i64} {
  func.func @_fused_forward_kernel(%arg0: memref<4x1024xf32, #tpu.memory_space<vmem>>, %arg1: memref<8x36xf32, #tpu.memory_space<vmem>>, %arg2: memref<8x1xf32, #tpu.memory_space<vmem>>, %arg3: memref<8x72xf32, #tpu.memory_space<vmem>>, %arg4: memref<8x1xf32, #tpu.memory_space<vmem>>, %arg5: memref<1x768xf32, #tpu.memory_space<vmem>>, %arg6: memref<3072x128xbf16, #tpu.memory_space<vmem>>, %arg7: memref<1x128xf32, #tpu.memory_space<vmem>>, %arg8: memref<2x128xf32, #tpu.memory_space<vmem>>, %arg9: memref<36x768xf32, #tpu.memory_space<vmem>>, %arg10: memref<8x1024xf32, #tpu.memory_space<vmem>>, %arg11: memref<72x768xf32, #tpu.memory_space<vmem>>, %arg12: memref<2x3072xf32, #tpu.memory_space<vmem>>) attributes {dimension_semantics = [], scalar_prefetch = 0 : i64, scratch_operands = 4 : i64, tpu.core_type = #tpu.core_type<tc>} {
    %c0 = arith.constant 0 : index
    %c0_0 = arith.constant 0 : index
    %0 = vector.load %arg5[%c0, %c0_0] : memref<1x768xf32, #tpu.memory_space<vmem>>, vector<1x768xf32>
    %c0_1 = arith.constant 0 : index
    %c109 = arith.constant 109 : index
    %1 = vector.load %arg0[%c0_1, %c109] : memref<4x1024xf32, #tpu.memory_space<vmem>>, vector<4x768xf32>
    %c0_2 = arith.constant 0 : index
    %c0_3 = arith.constant 0 : index
    %2 = vector.load %arg9[%c0_2, %c0_3] : memref<36x768xf32, #tpu.memory_space<vmem>>, vector<4x768xf32>
    tpu.vector_store %arg9[%c0_2, %c0_3], %1 {strides = array<i32>} : memref<36x768xf32, #tpu.memory_space<vmem>>, vector<4x768xf32>,
    %c0_4 = arith.constant 0 : index
    %c110 = arith.constant 110 : index
    %3 = vector.load %arg0[%c0_4, %c110] : memref<4x1024xf32, #tpu.memory_space<vmem>>, vector<4x768xf32>
    %c4 = arith.constant 4 : index
    %c0_5 = arith.constant 0 : index
    %4 = vector.load %arg9[%c4, %c0_5] : memref<36x768xf32, #tpu.memory_space<vmem>>, vector<4x768xf32>
    tpu.vector_store %arg9[%c4, %c0_5], %3 {strides = array<i32>} : memref<36x768xf32, #tpu.memory_space<vmem>>, vector<4x768xf32>,
    %c0_6 = arith.constant 0 : index
    %c111 = arith.constant 111 : index
    %5 = vector.load %arg0[%c0_6, %c111] : memref<4x1024xf32, #tpu.memory_space<vmem>>, vector<4x768xf32>
    %c8 = arith.constant 8 : index
    %c0_7 = arith.constant 0 : index
    %6 = vector.load %arg9[%c8, %c0_7] : memref<36x768xf32, #tpu.memory_space<vmem>>, vector<4x768xf32>
    tpu.vector_store %arg9[%c8, %c0_7], %5 {strides = array<i32>} : memref<36x768xf32, #tpu.memory_space<vmem>>, vector<4x768xf32>,
    %c0_8 = arith.constant 0 : index
    %c127 = arith.constant 127 : index
    %7 = vector.load %arg0[%c0_8, %c127] : memref<4x1024xf32, #tpu.memory_space<vmem>>, vector<4x768xf32>
    %c12 = arith.constant 12 : index
    %c0_9 = arith.constant 0 : index
    %8 = vector.load %arg9[%c12, %c0_9] : memref<36x768xf32, #tpu.memory_space<vmem>>, vector<4x768xf32>
    tpu.vector_store %arg9[%c12, %c0_9], %7 {strides = array<i32>} : memref<36x768xf32, #tpu.memory_space<vmem>>, vector<4x768xf32>,
    %c0_10 = arith.constant 0 : index
    %c128 = arith.constant 128 : index
    %9 = vector.load %arg0[%c0_10, %c128] : memref<4x1024xf32, #tpu.memory_space<vmem>>, vector<4x768xf32>
    %c16 = arith.constant 16 : index
    %c0_11 = arith.constant 0 : index
    %10 = vector.load %arg9[%c16, %c0_11] : memref<36x768xf32, #tpu.memory_space<vmem>>, vector<4x768xf32>
    tpu.vector_store %arg9[%c16, %c0_11], %9 {strides = array<i32>} : memref<36x768xf32, #tpu.memory_space<vmem>>, vector<4x768xf32>,
    %c0_12 = arith.constant 0 : index
    %c129 = arith.constant 129 : index
    %11 = vector.load %arg0[%c0_12, %c129] : memref<4x1024xf32, #tpu.memory_space<vmem>>, vector<4x768xf32>
    %c20 = arith.constant 20 : index
    %c0_13 = arith.constant 0 : index
    %12 = vector.load %arg9[%c20, %c0_13] : memref<36x768xf32, #tpu.memory_space<vmem>>, vector<4x768xf32>
    tpu.vector_store %arg9[%c20, %c0_13], %11 {strides = array<i32>} : memref<36x768xf32, #tpu.memory_space<vmem>>, vector<4x768xf32>,
    %c0_14 = arith.constant 0 : index
    %c145 = arith.constant 145 : index
    %13 = vector.load %arg0[%c0_14, %c145] : memref<4x1024xf32, #tpu.memory_space<vmem>>, vector<4x768xf32>
    %c24 = arith.constant 24 : index
    %c0_15 = arith.constant 0 : index
    %14 = vector.load %arg9[%c24, %c0_15] : memref<36x768xf32, #tpu.memory_space<vmem>>, vector<4x768xf32>
    tpu.vector_store %arg9[%c24, %c0_15], %13 {strides = array<i32>} : memref<36x768xf32, #tpu.memory_space<vmem>>, vector<4x768xf32>,
    %c0_16 = arith.constant 0 : index
    %c146 = arith.constant 146 : index
    %15 = vector.load %arg0[%c0_16, %c146] : memref<4x1024xf32, #tpu.memory_space<vmem>>, vector<4x768xf32>
    %c28 = arith.constant 28 : index
    %c0_17 = arith.constant 0 : index
    %16 = vector.load %arg9[%c28, %c0_17] : memref<36x768xf32, #tpu.memory_space<vmem>>, vector<4x768xf32>
    tpu.vector_store %arg9[%c28, %c0_17], %15 {strides = array<i32>} : memref<36x768xf32, #tpu.memory_space<vmem>>, vector<4x768xf32>,
    %c0_18 = arith.constant 0 : index
    %c147 = arith.constant 147 : index
    %17 = vector.load %arg0[%c0_18, %c147] : memref<4x1024xf32, #tpu.memory_space<vmem>>, vector<4x768xf32>
    %c32 = arith.constant 32 : index
    %c0_19 = arith.constant 0 : index
    %18 = vector.load %arg9[%c32, %c0_19] : memref<36x768xf32, #tpu.memory_space<vmem>>, vector<4x768xf32>
    tpu.vector_store %arg9[%c32, %c0_19], %17 {strides = array<i32>} : memref<36x768xf32, #tpu.memory_space<vmem>>, vector<4x768xf32>,
    %c0_20 = arith.constant 0 : index
    %c0_21 = arith.constant 0 : index
    %19 = vector.load %arg1[%c0_20, %c0_21] : memref<8x36xf32, #tpu.memory_space<vmem>>, vector<8x36xf32>
    %c0_22 = arith.constant 0 : index
    %c0_23 = arith.constant 0 : index
    %20 = vector.load %arg9[%c0_22, %c0_23] : memref<36x768xf32, #tpu.memory_space<vmem>>, vector<36x768xf32>
    %cst = arith.constant dense<0.000000e+00> : vector<8x768xf32>
    %21 = tpu.matmul %19, %20, %cst {dimension_numbers = #tpu.dot_dimension_numbers<[1], [0], [0], [1], [0, 0, 1, 1], [], []>} : vector<8x36xf32>, vector<36x768xf32>, vector<8x768xf32> -> vector<8x768xf32>
    %c0_24 = arith.constant 0 : index
    %c0_25 = arith.constant 0 : index
    %22 = vector.load %arg2[%c0_24, %c0_25] : memref<8x1xf32, #tpu.memory_space<vmem>>, vector<8x1xf32>
    %23 = vector.broadcast %22 : vector<8x1xf32> to vector<8x768xf32>
    %24 = arith.addf %21, %23 : vector<8x768xf32>
    %cst_26 = arith.constant 0.000000e+00 : f32
    %25 = vector.broadcast %cst_26 : f32 to vector<8x768xf32>
    %26 = arith.maximumf %24, %25 : vector<8x768xf32>
    %27 = vector.broadcast %0 : vector<1x768xf32> to vector<8x768xf32>
    %28 = arith.mulf %26, %27 : vector<8x768xf32>
    %cst_27 = arith.constant 0.000000e+00 : f32
    %29 = vector.broadcast %cst_27 : f32 to vector<8x128xf32>
    %c0_28 = arith.constant 0 : index
    %c0_29 = arith.constant 0 : index
    %30 = vector.load %arg10[%c0_28, %c0_29] : memref<8x1024xf32, #tpu.memory_space<vmem>>, vector<8x128xf32>
    tpu.vector_store %arg10[%c0_28, %c0_29], %29 {strides = array<i32>} : memref<8x1024xf32, #tpu.memory_space<vmem>>, vector<8x128xf32>,
    %cst_30 = arith.constant 0.000000e+00 : f32
    %31 = vector.broadcast %cst_30 : f32 to vector<8x128xf32>
    %c0_31 = arith.constant 0 : index
    %c896 = arith.constant 896 : index
    %32 = vector.load %arg10[%c0_31, %c896] : memref<8x1024xf32, #tpu.memory_space<vmem>>, vector<8x128xf32>
    tpu.vector_store %arg10[%c0_31, %c896], %31 {strides = array<i32>} : memref<8x1024xf32, #tpu.memory_space<vmem>>, vector<8x128xf32>,
    %c0_32 = arith.constant 0 : index
    %c128_33 = arith.constant 128 : index
    %33 = vector.load %arg10[%c0_32, %c128_33] : memref<8x1024xf32, #tpu.memory_space<vmem>>, vector<8x768xf32>
    tpu.vector_store %arg10[%c0_32, %c128_33], %28 {strides = array<i32>} : memref<8x1024xf32, #tpu.memory_space<vmem>>, vector<8x768xf32>,
    %c0_34 = arith.constant 0 : index
    %c109_35 = arith.constant 109 : index
    %34 = vector.load %arg10[%c0_34, %c109_35] : memref<8x1024xf32, #tpu.memory_space<vmem>>, vector<8x768xf32>
    %c0_36 = arith.constant 0 : index
    %c0_37 = arith.constant 0 : index
    %35 = vector.load %arg11[%c0_36, %c0_37] : memref<72x768xf32, #tpu.memory_space<vmem>>, vector<8x768xf32>
    tpu.vector_store %arg11[%c0_36, %c0_37], %34 {strides = array<i32>} : memref<72x768xf32, #tpu.memory_space<vmem>>, vector<8x768xf32>,
    %c0_38 = arith.constant 0 : index
    %c110_39 = arith.constant 110 : index
    %36 = vector.load %arg10[%c0_38, %c110_39] : memref<8x1024xf32, #tpu.memory_space<vmem>>, vector<8x768xf32>
    %c8_40 = arith.constant 8 : index
    %c0_41 = arith.constant 0 : index
    %37 = vector.load %arg11[%c8_40, %c0_41] : memref<72x768xf32, #tpu.memory_space<vmem>>, vector<8x768xf32>
    tpu.vector_store %arg11[%c8_40, %c0_41], %36 {strides = array<i32>} : memref<72x768xf32, #tpu.memory_space<vmem>>, vector<8x768xf32>,
    %c0_42 = arith.constant 0 : index
    %c111_43 = arith.constant 111 : index
    %38 = vector.load %arg10[%c0_42, %c111_43] : memref<8x1024xf32, #tpu.memory_space<vmem>>, vector<8x768xf32>
    %c16_44 = arith.constant 16 : index
    %c0_45 = arith.constant 0 : index
    %39 = vector.load %arg11[%c16_44, %c0_45] : memref<72x768xf32, #tpu.memory_space<vmem>>, vector<8x768xf32>
    tpu.vector_store %arg11[%c16_44, %c0_45], %38 {strides = array<i32>} : memref<72x768xf32, #tpu.memory_space<vmem>>, vector<8x768xf32>,
    %c0_46 = arith.constant 0 : index
    %c127_47 = arith.constant 127 : index
    %40 = vector.load %arg10[%c0_46, %c127_47] : memref<8x1024xf32, #tpu.memory_space<vmem>>, vector<8x768xf32>
    %c24_48 = arith.constant 24 : index
    %c0_49 = arith.constant 0 : index
    %41 = vector.load %arg11[%c24_48, %c0_49] : memref<72x768xf32, #tpu.memory_space<vmem>>, vector<8x768xf32>
    tpu.vector_store %arg11[%c24_48, %c0_49], %40 {strides = array<i32>} : memref<72x768xf32, #tpu.memory_space<vmem>>, vector<8x768xf32>,
    %c0_50 = arith.constant 0 : index
    %c128_51 = arith.constant 128 : index
    %42 = vector.load %arg10[%c0_50, %c128_51] : memref<8x1024xf32, #tpu.memory_space<vmem>>, vector<8x768xf32>
    %c32_52 = arith.constant 32 : index
    %c0_53 = arith.constant 0 : index
    %43 = vector.load %arg11[%c32_52, %c0_53] : memref<72x768xf32, #tpu.memory_space<vmem>>, vector<8x768xf32>
    tpu.vector_store %arg11[%c32_52, %c0_53], %42 {strides = array<i32>} : memref<72x768xf32, #tpu.memory_space<vmem>>, vector<8x768xf32>,
    %c0_54 = arith.constant 0 : index
    %c129_55 = arith.constant 129 : index
    %44 = vector.load %arg10[%c0_54, %c129_55] : memref<8x1024xf32, #tpu.memory_space<vmem>>, vector<8x768xf32>
    %c40 = arith.constant 40 : index
    %c0_56 = arith.constant 0 : index
    %45 = vector.load %arg11[%c40, %c0_56] : memref<72x768xf32, #tpu.memory_space<vmem>>, vector<8x768xf32>
    tpu.vector_store %arg11[%c40, %c0_56], %44 {strides = array<i32>} : memref<72x768xf32, #tpu.memory_space<vmem>>, vector<8x768xf32>,
    %c0_57 = arith.constant 0 : index
    %c145_58 = arith.constant 145 : index
    %46 = vector.load %arg10[%c0_57, %c145_58] : memref<8x1024xf32, #tpu.memory_space<vmem>>, vector<8x768xf32>
    %c48 = arith.constant 48 : index
    %c0_59 = arith.constant 0 : index
    %47 = vector.load %arg11[%c48, %c0_59] : memref<72x768xf32, #tpu.memory_space<vmem>>, vector<8x768xf32>
    tpu.vector_store %arg11[%c48, %c0_59], %46 {strides = array<i32>} : memref<72x768xf32, #tpu.memory_space<vmem>>, vector<8x768xf32>,
    %c0_60 = arith.constant 0 : index
    %c146_61 = arith.constant 146 : index
    %48 = vector.load %arg10[%c0_60, %c146_61] : memref<8x1024xf32, #tpu.memory_space<vmem>>, vector<8x768xf32>
    %c56 = arith.constant 56 : index
    %c0_62 = arith.constant 0 : index
    %49 = vector.load %arg11[%c56, %c0_62] : memref<72x768xf32, #tpu.memory_space<vmem>>, vector<8x768xf32>
    tpu.vector_store %arg11[%c56, %c0_62], %48 {strides = array<i32>} : memref<72x768xf32, #tpu.memory_space<vmem>>, vector<8x768xf32>,
    %c0_63 = arith.constant 0 : index
    %c147_64 = arith.constant 147 : index
    %50 = vector.load %arg10[%c0_63, %c147_64] : memref<8x1024xf32, #tpu.memory_space<vmem>>, vector<8x768xf32>
    %c64 = arith.constant 64 : index
    %c0_65 = arith.constant 0 : index
    %51 = vector.load %arg11[%c64, %c0_65] : memref<72x768xf32, #tpu.memory_space<vmem>>, vector<8x768xf32>
    tpu.vector_store %arg11[%c64, %c0_65], %50 {strides = array<i32>} : memref<72x768xf32, #tpu.memory_space<vmem>>, vector<8x768xf32>,
    %c0_66 = arith.constant 0 : index
    %c0_67 = arith.constant 0 : index
    %52 = vector.load %arg3[%c0_66, %c0_67] : memref<8x72xf32, #tpu.memory_space<vmem>>, vector<8x72xf32>
    %c0_68 = arith.constant 0 : index
    %c0_69 = arith.constant 0 : index
    %53 = vector.load %arg11[%c0_68, %c0_69] : memref<72x768xf32, #tpu.memory_space<vmem>>, vector<72x768xf32>
    %cst_70 = arith.constant dense<0.000000e+00> : vector<8x768xf32>
    %54 = tpu.matmul %52, %53, %cst_70 {dimension_numbers = #tpu.dot_dimension_numbers<[1], [0], [0], [1], [0, 0, 1, 1], [], []>} : vector<8x72xf32>, vector<72x768xf32>, vector<8x768xf32> -> vector<8x768xf32>
    %c0_71 = arith.constant 0 : index
    %c0_72 = arith.constant 0 : index
    %55 = vector.load %arg4[%c0_71, %c0_72] : memref<8x1xf32, #tpu.memory_space<vmem>>, vector<8x1xf32>
    %56 = vector.broadcast %55 : vector<8x1xf32> to vector<8x768xf32>
    %57 = arith.addf %54, %56 : vector<8x768xf32>
    %cst_73 = arith.constant 0.000000e+00 : f32
    %58 = vector.broadcast %cst_73 : f32 to vector<8x768xf32>
    %59 = arith.maximumf %57, %58 : vector<8x768xf32>
    %60 = vector.broadcast %0 : vector<1x768xf32> to vector<8x768xf32>
    %61 = arith.mulf %59, %60 : vector<8x768xf32>
    %62 = vector.extract_strided_slice %61 {offsets = [0, 0], sizes = [1, 384], strides = [1, 1]} : vector<8x768xf32> to vector<1x384xf32>
    %c0_74 = arith.constant 0 : index
    %c0_75 = arith.constant 0 : index
    %63 = vector.load %arg12[%c0_74, %c0_75] : memref<2x3072xf32, #tpu.memory_space<vmem>>, vector<1x384xf32>
    tpu.vector_store %arg12[%c0_74, %c0_75], %62 {strides = array<i32>} : memref<2x3072xf32, #tpu.memory_space<vmem>>, vector<1x384xf32>,
    %64 = vector.extract_strided_slice %61 {offsets = [0, 384], sizes = [1, 384], strides = [1, 1]} : vector<8x768xf32> to vector<1x384xf32>
    %c1 = arith.constant 1 : index
    %c0_76 = arith.constant 0 : index
    %65 = vector.load %arg12[%c1, %c0_76] : memref<2x3072xf32, #tpu.memory_space<vmem>>, vector<1x384xf32>
    tpu.vector_store %arg12[%c1, %c0_76], %64 {strides = array<i32>} : memref<2x3072xf32, #tpu.memory_space<vmem>>, vector<1x384xf32>,
    %66 = vector.extract_strided_slice %61 {offsets = [1, 0], sizes = [1, 384], strides = [1, 1]} : vector<8x768xf32> to vector<1x384xf32>
    %c0_77 = arith.constant 0 : index
    %c384 = arith.constant 384 : index
    %67 = vector.load %arg12[%c0_77, %c384] : memref<2x3072xf32, #tpu.memory_space<vmem>>, vector<1x384xf32>
    tpu.vector_store %arg12[%c0_77, %c384], %66 {strides = array<i32>} : memref<2x3072xf32, #tpu.memory_space<vmem>>, vector<1x384xf32>,
    %68 = vector.extract_strided_slice %61 {offsets = [1, 384], sizes = [1, 384], strides = [1, 1]} : vector<8x768xf32> to vector<1x384xf32>
    %c1_78 = arith.constant 1 : index
    %c384_79 = arith.constant 384 : index
    %69 = vector.load %arg12[%c1_78, %c384_79] : memref<2x3072xf32, #tpu.memory_space<vmem>>, vector<1x384xf32>
    tpu.vector_store %arg12[%c1_78, %c384_79], %68 {strides = array<i32>} : memref<2x3072xf32, #tpu.memory_space<vmem>>, vector<1x384xf32>,
    %70 = vector.extract_strided_slice %61 {offsets = [2, 0], sizes = [1, 384], strides = [1, 1]} : vector<8x768xf32> to vector<1x384xf32>
    %c0_80 = arith.constant 0 : index
    %c768 = arith.constant 768 : index
    %71 = vector.load %arg12[%c0_80, %c768] : memref<2x3072xf32, #tpu.memory_space<vmem>>, vector<1x384xf32>
    tpu.vector_store %arg12[%c0_80, %c768], %70 {strides = array<i32>} : memref<2x3072xf32, #tpu.memory_space<vmem>>, vector<1x384xf32>,
    %72 = vector.extract_strided_slice %61 {offsets = [2, 384], sizes = [1, 384], strides = [1, 1]} : vector<8x768xf32> to vector<1x384xf32>
    %c1_81 = arith.constant 1 : index
    %c768_82 = arith.constant 768 : index
    %73 = vector.load %arg12[%c1_81, %c768_82] : memref<2x3072xf32, #tpu.memory_space<vmem>>, vector<1x384xf32>
    tpu.vector_store %arg12[%c1_81, %c768_82], %72 {strides = array<i32>} : memref<2x3072xf32, #tpu.memory_space<vmem>>, vector<1x384xf32>,
    %74 = vector.extract_strided_slice %61 {offsets = [3, 0], sizes = [1, 384], strides = [1, 1]} : vector<8x768xf32> to vector<1x384xf32>
    %c0_83 = arith.constant 0 : index
    %c1152 = arith.constant 1152 : index
    %75 = vector.load %arg12[%c0_83, %c1152] : memref<2x3072xf32, #tpu.memory_space<vmem>>, vector<1x384xf32>
    tpu.vector_store %arg12[%c0_83, %c1152], %74 {strides = array<i32>} : memref<2x3072xf32, #tpu.memory_space<vmem>>, vector<1x384xf32>,
    %76 = vector.extract_strided_slice %61 {offsets = [3, 384], sizes = [1, 384], strides = [1, 1]} : vector<8x768xf32> to vector<1x384xf32>
    %c1_84 = arith.constant 1 : index
    %c1152_85 = arith.constant 1152 : index
    %77 = vector.load %arg12[%c1_84, %c1152_85] : memref<2x3072xf32, #tpu.memory_space<vmem>>, vector<1x384xf32>
    tpu.vector_store %arg12[%c1_84, %c1152_85], %76 {strides = array<i32>} : memref<2x3072xf32, #tpu.memory_space<vmem>>, vector<1x384xf32>,
    %78 = vector.extract_strided_slice %61 {offsets = [4, 0], sizes = [1, 384], strides = [1, 1]} : vector<8x768xf32> to vector<1x384xf32>
    %c0_86 = arith.constant 0 : index
    %c1536 = arith.constant 1536 : index
    %79 = vector.load %arg12[%c0_86, %c1536] : memref<2x3072xf32, #tpu.memory_space<vmem>>, vector<1x384xf32>
    tpu.vector_store %arg12[%c0_86, %c1536], %78 {strides = array<i32>} : memref<2x3072xf32, #tpu.memory_space<vmem>>, vector<1x384xf32>,
    %80 = vector.extract_strided_slice %61 {offsets = [4, 384], sizes = [1, 384], strides = [1, 1]} : vector<8x768xf32> to vector<1x384xf32>
    %c1_87 = arith.constant 1 : index
    %c1536_88 = arith.constant 1536 : index
    %81 = vector.load %arg12[%c1_87, %c1536_88] : memref<2x3072xf32, #tpu.memory_space<vmem>>, vector<1x384xf32>
    tpu.vector_store %arg12[%c1_87, %c1536_88], %80 {strides = array<i32>} : memref<2x3072xf32, #tpu.memory_space<vmem>>, vector<1x384xf32>,
    %82 = vector.extract_strided_slice %61 {offsets = [5, 0], sizes = [1, 384], strides = [1, 1]} : vector<8x768xf32> to vector<1x384xf32>
    %c0_89 = arith.constant 0 : index
    %c1920 = arith.constant 1920 : index
    %83 = vector.load %arg12[%c0_89, %c1920] : memref<2x3072xf32, #tpu.memory_space<vmem>>, vector<1x384xf32>
    tpu.vector_store %arg12[%c0_89, %c1920], %82 {strides = array<i32>} : memref<2x3072xf32, #tpu.memory_space<vmem>>, vector<1x384xf32>,
    %84 = vector.extract_strided_slice %61 {offsets = [5, 384], sizes = [1, 384], strides = [1, 1]} : vector<8x768xf32> to vector<1x384xf32>
    %c1_90 = arith.constant 1 : index
    %c1920_91 = arith.constant 1920 : index
    %85 = vector.load %arg12[%c1_90, %c1920_91] : memref<2x3072xf32, #tpu.memory_space<vmem>>, vector<1x384xf32>
    tpu.vector_store %arg12[%c1_90, %c1920_91], %84 {strides = array<i32>} : memref<2x3072xf32, #tpu.memory_space<vmem>>, vector<1x384xf32>,
    %86 = vector.extract_strided_slice %61 {offsets = [6, 0], sizes = [1, 384], strides = [1, 1]} : vector<8x768xf32> to vector<1x384xf32>
    %c0_92 = arith.constant 0 : index
    %c2304 = arith.constant 2304 : index
    %87 = vector.load %arg12[%c0_92, %c2304] : memref<2x3072xf32, #tpu.memory_space<vmem>>, vector<1x384xf32>
    tpu.vector_store %arg12[%c0_92, %c2304], %86 {strides = array<i32>} : memref<2x3072xf32, #tpu.memory_space<vmem>>, vector<1x384xf32>,
    %88 = vector.extract_strided_slice %61 {offsets = [6, 384], sizes = [1, 384], strides = [1, 1]} : vector<8x768xf32> to vector<1x384xf32>
    %c1_93 = arith.constant 1 : index
    %c2304_94 = arith.constant 2304 : index
    %89 = vector.load %arg12[%c1_93, %c2304_94] : memref<2x3072xf32, #tpu.memory_space<vmem>>, vector<1x384xf32>
    tpu.vector_store %arg12[%c1_93, %c2304_94], %88 {strides = array<i32>} : memref<2x3072xf32, #tpu.memory_space<vmem>>, vector<1x384xf32>,
    %90 = vector.extract_strided_slice %61 {offsets = [7, 0], sizes = [1, 384], strides = [1, 1]} : vector<8x768xf32> to vector<1x384xf32>
    %c0_95 = arith.constant 0 : index
    %c2688 = arith.constant 2688 : index
    %91 = vector.load %arg12[%c0_95, %c2688] : memref<2x3072xf32, #tpu.memory_space<vmem>>, vector<1x384xf32>
    tpu.vector_store %arg12[%c0_95, %c2688], %90 {strides = array<i32>} : memref<2x3072xf32, #tpu.memory_space<vmem>>, vector<1x384xf32>,
    %92 = vector.extract_strided_slice %61 {offsets = [7, 384], sizes = [1, 384], strides = [1, 1]} : vector<8x768xf32> to vector<1x384xf32>
    %c1_96 = arith.constant 1 : index
    %c2688_97 = arith.constant 2688 : index
    %93 = vector.load %arg12[%c1_96, %c2688_97] : memref<2x3072xf32, #tpu.memory_space<vmem>>, vector<1x384xf32>
    tpu.vector_store %arg12[%c1_96, %c2688_97], %92 {strides = array<i32>} : memref<2x3072xf32, #tpu.memory_space<vmem>>, vector<1x384xf32>,
    %c0_98 = arith.constant 0 : index
    %c0_99 = arith.constant 0 : index
    %94 = vector.load %arg12[%c0_98, %c0_99] : memref<2x3072xf32, #tpu.memory_space<vmem>>, vector<2x3072xf32>
    %95 = arith.truncf %94 : vector<2x3072xf32> to vector<2x3072xbf16>
    %c0_100 = arith.constant 0 : index
    %c0_101 = arith.constant 0 : index
    %96 = vector.load %arg6[%c0_100, %c0_101] : memref<3072x128xbf16, #tpu.memory_space<vmem>>, vector<3072x128xbf16>
    %cst_102 = arith.constant dense<0.000000e+00> : vector<2x128xf32>
    %97 = tpu.matmul %95, %96, %cst_102 {dimension_numbers = #tpu.dot_dimension_numbers<[1], [0], [0], [1], [0, 0, 1, 1], [], []>} : vector<2x3072xbf16>, vector<3072x128xbf16>, vector<2x128xf32> -> vector<2x128xf32>
    %c0_103 = arith.constant 0 : index
    %c0_104 = arith.constant 0 : index
    %98 = vector.load %arg7[%c0_103, %c0_104] : memref<1x128xf32, #tpu.memory_space<vmem>>, vector<1x128xf32>
    %99 = vector.broadcast %98 : vector<1x128xf32> to vector<2x128xf32>
    %100 = arith.addf %97, %99 : vector<2x128xf32>
    %c0_105 = arith.constant 0 : index
    %c0_106 = arith.constant 0 : index
    %101 = vector.load %arg8[%c0_105, %c0_106] : memref<2x128xf32, #tpu.memory_space<vmem>>, vector<2x128xf32>
    tpu.vector_store %arg8[%c0_105, %c0_106], %100 {strides = array<i32>} : memref<2x128xf32, #tpu.memory_space<vmem>>, vector<2x128xf32>,
    return
  }
}

</mosaic_0001>

<llo_original>
// kernel: _forward_impl.1
$region0: #{_forward_impl.1}
  #allocation0 [shape = 'u32[]', space=smem, size = 0x4, offset = 0x4, fixed_abs, tag = 'smem constant byte address 0x4 - core index']
  #allocation1 [shape = 'u32[144,128]{1,0:T(1,128)}', space=vmem, size = 0x12000, scoped, tag = 'internal scratch']
  #allocation2 [shape = 'f32[36,768]{1,0:T(8,128)}', space=vmem, size = 0x1e000, scoped, tag = 'scratch operand']
  #allocation3 [shape = 'f32[8,1024]{1,0:T(8,128)}', space=vmem, size = 0x8000, scoped, tag = 'scratch operand']
  #allocation4 [shape = 'f32[72,768]{1,0:T(8,128)}', space=vmem, size = 0x36000, scoped, tag = 'scratch operand']
  #allocation5 [shape = 'f32[2,3072]{1,0:T(2,128)}', space=vmem, size = 0x6000, scoped, tag = 'scratch operand']
  %s0 = inlined_call_operand.vmem [shape: f32[4,1024], index: 0, kind: input, shape index: {}]
  %s1 = inlined_call_operand.vmem [shape: f32[8,36], index: 1, kind: input, shape index: {}]
  %s2 = inlined_call_operand.vmem [shape: f32[8,1], index: 2, kind: input, shape index: {}]
  %s3 = inlined_call_operand.vmem [shape: f32[8,72], index: 3, kind: input, shape index: {}]
  %s4 = inlined_call_operand.vmem [shape: f32[8,1], index: 4, kind: input, shape index: {}]
  %s5 = inlined_call_operand.vmem [shape: f32[1,768], index: 5, kind: input, shape index: {}]
  %s6 = inlined_call_operand.hbm [shape: bf16[3072,128], index: 6, kind: input, shape index: {}]
  %s7 = inlined_call_operand.vmem [shape: f32[1,128], index: 7, kind: input, shape index: {}]
  %s8 = inlined_call_operand.hbm [shape: f32[2,128], index: 8, kind: output, shape index: {}]
  %s9 = sld [smem:[#allocation0]]
  $region46: #{_forward_impl.1} parent=0
    _
  %s11 = ssub.s32 1, %s9
  %s12 = scalar_select 0, %s11, %s9
  $region1: #{_forward_impl.1} parent=0
    #allocation6 [shape = 'u8[786432]{0}', space=vmem, size = 0xc0000, scoped, tag = 'input window, operand 6, single buffered']
    #allocation7 [shape = 's32[1]{0}', space=sflag, size = 0x4, scoped, tag = 'scoped memory for _forward_impl.1']
    #allocation8 [shape = 's32[1]{0}', space=sflag, size = 0x4, scoped, tag = 'scoped memory for _forward_impl.1']
    #allocation9 [shape = 'u8[1024]{0}', space=vmem, size = 0x400, scoped, tag = 'output window, operand 0, single buffered']
    %13 = vsyncpa [#allocation7], 0
    %14 = vsyncpa [#allocation8], 0
    // Predicated region
    $region2: #{_forward_impl.1} parent=1 // pred_check
      _
    $region3: #{_forward_impl.1} parent=1 // pred_check_branch
      %16 = sbr.rel (0) target = $region5
    $region4: #{_forward_impl.1} parent=1 // pred_region
      _
    $region5: #{_forward_impl.1} parent=1 // pred_fallthru
      _
    // Predicated region
    $region6: #{_forward_impl.1} parent=1 // pred_check
      _
    $region7: #{_forward_impl.1} parent=1 // pred_check_branch
      %18 = sbr.rel (0) target = $region9
    $region8: #{_forward_impl.1} parent=1 // pred_region
      _
    $region9: #{_forward_impl.1} parent=1 // pred_fallthru
      _
    // Predicated region
    $region10: #{_forward_impl.1} parent=1 // pred_check
      _
    $region11: #{_forward_impl.1} parent=1 // pred_check_branch
      %20 = sbr.rel (0) target = $region13
    $region12: #{_forward_impl.1} parent=1 // pred_region
      _
    $region13: #{_forward_impl.1} parent=1 // pred_fallthru
      _
    // Predicated region
    $region14: #{_forward_impl.1} parent=1 // pred_check
      _
    $region15: #{_forward_impl.1} parent=1 // pred_check_branch
      %22 = sbr.rel (0) target = $region17
    $region16: #{_forward_impl.1} parent=1 // pred_region
      _
    $region17: #{_forward_impl.1} parent=1 // pred_fallthru
      _
    // Predicated region
    $region18: #{_forward_impl.1} parent=1 // pred_check
      _
    $region19: #{_forward_impl.1} parent=1 // pred_check_branch
      %24 = sbr.rel (0) target = $region21
    $region20: #{_forward_impl.1} parent=1 // pred_region
      _
    $region21: #{_forward_impl.1} parent=1 // pred_fallthru
      _
    // Predicated region
    $region22: #{_forward_impl.1} parent=1 // pred_check
      _
    $region23: #{_forward_impl.1} parent=1 // pred_check_branch
      %26 = sbr.rel (0) target = $region25
    $region24: #{_forward_impl.1} parent=1 // pred_region
      _
    $region25: #{_forward_impl.1} parent=1 // pred_fallthru
      _
    // Predicated region
    $region26: #{_forward_impl.1} parent=1 // pred_check
      _
    $region27: #{_forward_impl.1} parent=1 // pred_check_branch
      %28 = sbr.rel (0) target = $region29
    $region28: #{_forward_impl.1} parent=1 // pred_region
      %s30 = ssub.s32 24576, 24576
      %31 = vsyncadd [#allocation7], %s30
      %s32 = sshll.u32 [#allocation6], 4
      %s33 = int_to_ptr.vmem [resolvable:$true] %s32
      %38 = dma.hbm_to_vmem [thread:$0]  %s6, 24576, %s33, [#allocation7], 64, 64, 4
    $region29: #{_forward_impl.1} parent=1 // pred_fallthru
      _
    // Predicated region
    $region30: #{_forward_impl.1} parent=1 // pred_check
      _
    $region31: #{_forward_impl.1} parent=1 // pred_check_branch
      %40 = sbr.rel (0) target = $region33
    $region32: #{_forward_impl.1} parent=1 // pred_region
      _
    $region33: #{_forward_impl.1} parent=1 // pred_fallthru
      _
    // Predicated region
    $region34: #{_forward_impl.1} parent=1 // pred_check
      _
    $region35: #{_forward_impl.1} parent=1 // pred_check_branch
      %42 = sbr.rel (0) target = $region37
    $region36: #{_forward_impl.1} parent=1 // pred_region
      %43 = dma.done [#allocation7], 24576
    $region37: #{_forward_impl.1} parent=1 // pred_fallthru
      _
    %v45 = vld [vmem:[%s5] sm:$0x3f]
    %v46 = vld [vmem:[%s0] sm:$0xff]
    %v47 = vld [vmem:[%s0 + $0x8] sm:$0xff]
    %v48 = vld [vmem:[%s0 + $0x10] sm:$0xff]
    %v49 = vld [vmem:[%s0 + $0x18] sm:$0xf]
    %v54 = vcombine.high %v46, %v46
    %v55 = vcombine.high %v47, %v47
    %v56 = vcombine.high %v48, %v48
    %57 = vrot.lane.b32.xlu0 %v46, 19
    %v58 = vpop.permute.xlu0 %57
    %59 = vrot.lane.b32.xlu0 %v54, 19
    %v60 = vpop.permute.xlu0 %59
    %61 = vrot.lane.b32.xlu0 %v47, 19
    %v62 = vpop.permute.xlu0 %61
    %63 = vrot.lane.b32.xlu0 %v55, 19
    %v64 = vpop.permute.xlu0 %63
    %65 = vrot.lane.b32.xlu0 %v48, 19
    %v66 = vpop.permute.xlu0 %65
    %67 = vrot.lane.b32.xlu0 %v56, 19
    %v68 = vpop.permute.xlu0 %67
    %69 = vrot.lane.b32.xlu0 %v49, 19
    %v70 = vpop.permute.xlu0 %69
    %vm71 = vcmask 154624
    %v72 = vsel %vm71, %v58, %v60
    %v73 = vsel %vm71, %v60, %v62
    %v74 = vsel %vm71, %v62, %v64
    %v75 = vsel %vm71, %v64, %v66
    %v76 = vsel %vm71, %v66, %v68
    %v77 = vsel %vm71, %v68, %v70
    %84 = vst [vmem:[#allocation2] sm:$0xf] %v72
    %85 = vst [vmem:[#allocation2 + $0x8] sm:$0xf] %v73
    %86 = vst [vmem:[#allocation2 + $0x10] sm:$0xf] %v74
    %87 = vst [vmem:[#allocation2 + $0x18] sm:$0xf] %v75
    %88 = vst [vmem:[#allocation2 + $0x20] sm:$0xf] %v76
    %89 = vst [vmem:[#allocation2 + $0x28] sm:$0xf] %v77
    %v90 = vld [vmem:[%s0] sm:$0xff]
    %v91 = vld [vmem:[%s0 + $0x8] sm:$0xff]
    %v92 = vld [vmem:[%s0 + $0x10] sm:$0xff]
    %v93 = vld [vmem:[%s0 + $0x18] sm:$0xf]
    %v98 = vcombine.low %v90, %v90
    %v99 = vcombine.low %v91, %v91
    %v100 = vcombine.low %v92, %v92
    %v101 = vcombine.low %v93, %v93
    %102 = vrot.lane.b32.xlu0 %v98, 18
    %v103 = vpop.permute.xlu0 %102
    %104 = vrot.lane.b32.xlu0 %v90, 18
    %v105 = vpop.permute.xlu0 %104
    %106 = vrot.lane.b32.xlu0 %v99, 18
    %v107 = vpop.permute.xlu0 %106
    %108 = vrot.lane.b32.xlu0 %v91, 18
    %v109 = vpop.permute.xlu0 %108
    %110 = vrot.lane.b32.xlu0 %v100, 18
    %v111 = vpop.permute.xlu0 %110
    %112 = vrot.lane.b32.xlu0 %v92, 18
    %v113 = vpop.permute.xlu0 %112
    %114 = vrot.lane.b32.xlu0 %v101, 18
    %v115 = vpop.permute.xlu0 %114
    %vm116 = vcmask 146432
    %v117 = vsel %vm116, %v103, %v105
    %v118 = vsel %vm116, %v105, %v107
    %v119 = vsel %vm116, %v107, %v109
    %v120 = vsel %vm116, %v109, %v111
    %v121 = vsel %vm116, %v111, %v113
    %v122 = vsel %vm116, %v113, %v115
    %129 = vst [vmem:[#allocation2] sm:$0xf0] %v117
    %130 = vst [vmem:[#allocation2 + $0x8] sm:$0xf0] %v118
    %131 = vst [vmem:[#allocation2 + $0x10] sm:$0xf0] %v119
    %132 = vst [vmem:[#allocation2 + $0x18] sm:$0xf0] %v120
    %133 = vst [vmem:[#allocation2 + $0x20] sm:$0xf0] %v121
    %134 = vst [vmem:[#allocation2 + $0x28] sm:$0xf0] %v122
    %v135 = vld [vmem:[%s0] sm:$0xff]
    %v136 = vld [vmem:[%s0 + $0x8] sm:$0xff]
    %v137 = vld [vmem:[%s0 + $0x10] sm:$0xff]
    %v138 = vld [vmem:[%s0 + $0x18] sm:$0xf]
    %v143 = vcombine.high %v135, %v135
    %v144 = vcombine.high %v136, %v136
    %v145 = vcombine.high %v137, %v137
    %146 = vrot.lane.b32.xlu0 %v135, 17
    %v147 = vpop.permute.xlu0 %146
    %148 = vrot.lane.b32.xlu0 %v143, 17
    %v149 = vpop.permute.xlu0 %148
    %150 = vrot.lane.b32.xlu0 %v136, 17
    %v151 = vpop.permute.xlu0 %150
    %152 = vrot.lane.b32.xlu0 %v144, 17
    %v153 = vpop.permute.xlu0 %152
    %154 = vrot.lane.b32.xlu0 %v137, 17
    %v155 = vpop.permute.xlu0 %154
    %156 = vrot.lane.b32.xlu0 %v145, 17
    %v157 = vpop.permute.xlu0 %156
    %158 = vrot.lane.b32.xlu0 %v138, 17
    %v159 = vpop.permute.xlu0 %158
    %vm160 = vcmask 138240
    %v161 = vsel %vm160, %v147, %v149
    %v162 = vsel %vm160, %v149, %v151
    %v163 = vsel %vm160, %v151, %v153
    %v164 = vsel %vm160, %v153, %v155
    %v165 = vsel %vm160, %v155, %v157
    %v166 = vsel %vm160, %v157, %v159
    %173 = vst [vmem:[#allocation2 + $0x30] sm:$0xf] %v161
    %174 = vst [vmem:[#allocation2 + $0x38] sm:$0xf] %v162
    %175 = vst [vmem:[#allocation2 + $0x40] sm:$0xf] %v163
    %176 = vst [vmem:[#allocation2 + $0x48] sm:$0xf] %v164
    %177 = vst [vmem:[#allocation2 + $0x50] sm:$0xf] %v165
    %178 = vst [vmem:[#allocation2 + $0x58] sm:$0xf] %v166
    %v179 = vld [vmem:[%s0] sm:$0xff]
    %v180 = vld [vmem:[%s0 + $0x8] sm:$0xff]
    %v181 = vld [vmem:[%s0 + $0x10] sm:$0xff]
    %v182 = vld [vmem:[%s0 + $0x18] sm:$0xf]
    %v187 = vcombine.low %v179, %v179
    %v188 = vcombine.low %v180, %v180
    %v189 = vcombine.low %v181, %v181
    %v190 = vcombine.low %v182, %v182
    %191 = vrot.lane.b32.xlu0 %v187, 1
    %v192 = vpop.permute.xlu0 %191
    %193 = vrot.lane.b32.xlu0 %v179, 1
    %v194 = vpop.permute.xlu0 %193
    %195 = vrot.lane.b32.xlu0 %v188, 1
    %v196 = vpop.permute.xlu0 %195
    %197 = vrot.lane.b32.xlu0 %v180, 1
    %v198 = vpop.permute.xlu0 %197
    %199 = vrot.lane.b32.xlu0 %v189, 1
    %v200 = vpop.permute.xlu0 %199
    %201 = vrot.lane.b32.xlu0 %v181, 1
    %v202 = vpop.permute.xlu0 %201
    %203 = vrot.lane.b32.xlu0 %v190, 1
    %v204 = vpop.permute.xlu0 %203
    %vm205 = vcmask 7168
    %v206 = vsel %vm205, %v192, %v194
    %v207 = vsel %vm205, %v194, %v196
    %v208 = vsel %vm205, %v196, %v198
    %v209 = vsel %vm205, %v198, %v200
    %v210 = vsel %vm205, %v200, %v202
    %v211 = vsel %vm205, %v202, %v204
    %218 = vst [vmem:[#allocation2 + $0x30] sm:$0xf0] %v206
    %219 = vst [vmem:[#allocation2 + $0x38] sm:$0xf0] %v207
    %220 = vst [vmem:[#allocation2 + $0x40] sm:$0xf0] %v208
    %221 = vst [vmem:[#allocation2 + $0x48] sm:$0xf0] %v209
    %222 = vst [vmem:[#allocation2 + $0x50] sm:$0xf0] %v210
    %223 = vst [vmem:[#allocation2 + $0x58] sm:$0xf0] %v211
    %v224 = vld [vmem:[%s0 + $0x4] sm:$0xff]
    %v225 = vld [vmem:[%s0 + $0xc] sm:$0xff]
    %v226 = vld [vmem:[%s0 + $0x14] sm:$0xff]
    %v230 = vcombine.high %v224, %v224
    %v231 = vcombine.high %v225, %v225
    %v232 = vcombine.high %v226, %v226
    %236 = vst [vmem:[#allocation2 + $0x60] sm:$0xf] %v224
    %237 = vst [vmem:[#allocation2 + $0x68] sm:$0xf] %v230
    %238 = vst [vmem:[#allocation2 + $0x70] sm:$0xf] %v225
    %239 = vst [vmem:[#allocation2 + $0x78] sm:$0xf] %v231
    %240 = vst [vmem:[#allocation2 + $0x80] sm:$0xf] %v226
    %241 = vst [vmem:[#allocation2 + $0x88] sm:$0xf] %v232
    %v242 = vld [vmem:[%s0 + $0x4] sm:$0xff]
    %v243 = vld [vmem:[%s0 + $0xc] sm:$0xff]
    %v244 = vld [vmem:[%s0 + $0x14] sm:$0xff]
    %v245 = vld [vmem:[%s0 + $0x1c] sm:$0xf]
    %v250 = vcombine.low %v242, %v242
    %v251 = vcombine.low %v243, %v243
    %v252 = vcombine.low %v244, %v244
    %v253 = vcombine.low %v245, %v245
    %254 = vrot.lane.b32.xlu0 %v250, 127
    %v255 = vpop.permute.xlu0 %254
    %256 = vrot.lane.b32.xlu0 %v242, 127
    %v257 = vpop.permute.xlu0 %256
    %258 = vrot.lane.b32.xlu0 %v251, 127
    %v259 = vpop.permute.xlu0 %258
    %260 = vrot.lane.b32.xlu0 %v243, 127
    %v261 = vpop.permute.xlu0 %260
    %262 = vrot.lane.b32.xlu0 %v252, 127
    %v263 = vpop.permute.xlu0 %262
    %264 = vrot.lane.b32.xlu0 %v244, 127
    %v265 = vpop.permute.xlu0 %264
    %266 = vrot.lane.b32.xlu0 %v253, 127
    %v267 = vpop.permute.xlu0 %266
    %vm268 = vcmask 1039360
    %v269 = vsel %vm268, %v255, %v257
    %v270 = vsel %vm268, %v257, %v259
    %v271 = vsel %vm268, %v259, %v261
    %v272 = vsel %vm268, %v261, %v263
    %v273 = vsel %vm268, %v263, %v265
    %v274 = vsel %vm268, %v265, %v267
    %281 = vst [vmem:[#allocation2 + $0x60] sm:$0xf0] %v269
    %282 = vst [vmem:[#allocation2 + $0x68] sm:$0xf0] %v270
    %283 = vst [vmem:[#allocation2 + $0x70] sm:$0xf0] %v271
    %284 = vst [vmem:[#allocation2 + $0x78] sm:$0xf0] %v272
    %285 = vst [vmem:[#allocation2 + $0x80] sm:$0xf0] %v273
    %286 = vst [vmem:[#allocation2 + $0x88] sm:$0xf0] %v274
    %v287 = vld [vmem:[%s0 + $0x4] sm:$0xff]
    %v288 = vld [vmem:[%s0 + $0xc] sm:$0xff]
    %v289 = vld [vmem:[%s0 + $0x14] sm:$0xff]
    %v290 = vld [vmem:[%s0 + $0x1c] sm:$0xf]
    %v295 = vcombine.high %v287, %v287
    %v296 = vcombine.high %v288, %v288
    %v297 = vcombine.high %v289, %v289
    %298 = vrot.lane.b32.xlu0 %v287, 111
    %v299 = vpop.permute.xlu0 %298
    %300 = vrot.lane.b32.xlu0 %v295, 111
    %v301 = vpop.permute.xlu0 %300
    %302 = vrot.lane.b32.xlu0 %v288, 111
    %v303 = vpop.permute.xlu0 %302
    %304 = vrot.lane.b32.xlu0 %v296, 111
    %v305 = vpop.permute.xlu0 %304
    %306 = vrot.lane.b32.xlu0 %v289, 111
    %v307 = vpop.permute.xlu0 %306
    %308 = vrot.lane.b32.xlu0 %v297, 111
    %v309 = vpop.permute.xlu0 %308
    %310 = vrot.lane.b32.xlu0 %v290, 111
    %v311 = vpop.permute.xlu0 %310
    %vm312 = vcmask 908288
    %v313 = vsel %vm312, %v299, %v301
    %v314 = vsel %vm312, %v301, %v303
    %v315 = vsel %vm312, %v303, %v305
    %v316 = vsel %vm312, %v305, %v307
    %v317 = vsel %vm312, %v307, %v309
    %v318 = vsel %vm312, %v309, %v311
    %325 = vst [vmem:[#allocation2 + $0x90] sm:$0xf] %v313
    %326 = vst [vmem:[#allocation2 + $0x98] sm:$0xf] %v314
    %327 = vst [vmem:[#allocation2 + $0xa0] sm:$0xf] %v315
    %328 = vst [vmem:[#allocation2 + $0xa8] sm:$0xf] %v316
    %329 = vst [vmem:[#allocation2 + $0xb0] sm:$0xf] %v317
    %330 = vst [vmem:[#allocation2 + $0xb8] sm:$0xf] %v318
    %v331 = vld [vmem:[%s0 + $0x4] sm:$0xff]
    %v332 = vld [vmem:[%s0 + $0xc] sm:$0xff]
    %v333 = vld [vmem:[%s0 + $0x14] sm:$0xff]
    %v334 = vld [vmem:[%s0 + $0x1c] sm:$0xf]
    %v339 = vcombine.low %v331, %v331
    %v340 = vcombine.low %v332, %v332
    %v341 = vcombine.low %v333, %v333
    %v342 = vcombine.low %v334, %v334
    %343 = vrot.lane.b32.xlu0 %v339, 110
    %v344 = vpop.permute.xlu0 %343
    %345 = vrot.lane.b32.xlu0 %v331, 110
    %v346 = vpop.permute.xlu0 %345
    %347 = vrot.lane.b32.xlu0 %v340, 110
    %v348 = vpop.permute.xlu0 %347
    %349 = vrot.lane.b32.xlu0 %v332, 110
    %v350 = vpop.permute.xlu0 %349
    %351 = vrot.lane.b32.xlu0 %v341, 110
    %v352 = vpop.permute.xlu0 %351
    %353 = vrot.lane.b32.xlu0 %v333, 110
    %v354 = vpop.permute.xlu0 %353
    %355 = vrot.lane.b32.xlu0 %v342, 110
    %v356 = vpop.permute.xlu0 %355
    %vm357 = vcmask 900096
    %v358 = vsel %vm357, %v344, %v346
    %v359 = vsel %vm357, %v346, %v348
    %v360 = vsel %vm357, %v348, %v350
    %v361 = vsel %vm357, %v350, %v352
    %v362 = vsel %vm357, %v352, %v354
    %v363 = vsel %vm357, %v354, %v356
    %370 = vst [vmem:[#allocation2 + $0x90] sm:$0xf0] %v358
    %371 = vst [vmem:[#allocation2 + $0x98] sm:$0xf0] %v359
    %372 = vst [vmem:[#allocation2 + $0xa0] sm:$0xf0] %v360
    %373 = vst [vmem:[#allocation2 + $0xa8] sm:$0xf0] %v361
    %374 = vst [vmem:[#allocation2 + $0xb0] sm:$0xf0] %v362
    %375 = vst [vmem:[#allocation2 + $0xb8] sm:$0xf0] %v363
    %v376 = vld [vmem:[%s0 + $0x4] sm:$0xff]
    %v377 = vld [vmem:[%s0 + $0xc] sm:$0xff]
    %v378 = vld [vmem:[%s0 + $0x14] sm:$0xff]
    %v379 = vld [vmem:[%s0 + $0x1c] sm:$0xf]
    %v384 = vcombine.high %v376, %v376
    %v385 = vcombine.high %v377, %v377
    %v386 = vcombine.high %v378, %v378
    %387 = vrot.lane.b32.xlu0 %v376, 109
    %v388 = vpop.permute.xlu0 %387
    %389 = vrot.lane.b32.xlu0 %v384, 109
    %v390 = vpop.permute.xlu0 %389
    %391 = vrot.lane.b32.xlu0 %v377, 109
    %v392 = vpop.permute.xlu0 %391
    %393 = vrot.lane.b32.xlu0 %v385, 109
    %v394 = vpop.permute.xlu0 %393
    %395 = vrot.lane.b32.xlu0 %v378, 109
    %v396 = vpop.permute.xlu0 %395
    %397 = vrot.lane.b32.xlu0 %v386, 109
    %v398 = vpop.permute.xlu0 %397
    %399 = vrot.lane.b32.xlu0 %v379, 109
    %v400 = vpop.permute.xlu0 %399
    %vm401 = vcmask 891904
    %v402 = vsel %vm401, %v388, %v390
    %v403 = vsel %vm401, %v390, %v392
    %v404 = vsel %vm401, %v392, %v394
    %v405 = vsel %vm401, %v394, %v396
    %v406 = vsel %vm401, %v396, %v398
    %v407 = vsel %vm401, %v398, %v400
    %414 = vst [vmem:[#allocation2 + $0xc0] sm:$0xf] %v402
    %415 = vst [vmem:[#allocation2 + $0xc8] sm:$0xf] %v403
    %416 = vst [vmem:[#allocation2 + $0xd0] sm:$0xf] %v404
    %417 = vst [vmem:[#allocation2 + $0xd8] sm:$0xf] %v405
    %418 = vst [vmem:[#allocation2 + $0xe0] sm:$0xf] %v406
    %419 = vst [vmem:[#allocation2 + $0xe8] sm:$0xf] %v407
    %v420 = vld [vmem:[%s1] sm:$0xff]
    %v421 = vld [vmem:[#allocation2] sm:$0xff]
    %v422 = vld [vmem:[#allocation2 + $0x8] sm:$0xff]
    %v423 = vld [vmem:[#allocation2 + $0x10] sm:$0xff]
    %v424 = vld [vmem:[#allocation2 + $0x18] sm:$0xff]
    %v425 = vld [vmem:[#allocation2 + $0x20] sm:$0xff]
    %v426 = vld [vmem:[#allocation2 + $0x28] sm:$0xff]
    %v427 = vld [vmem:[#allocation2 + $0x30] sm:$0xff]
    %v428 = vld [vmem:[#allocation2 + $0x38] sm:$0xff]
    %v429 = vld [vmem:[#allocation2 + $0x40] sm:$0xff]
    %v430 = vld [vmem:[#allocation2 + $0x48] sm:$0xff]
    %v431 = vld [vmem:[#allocation2 + $0x50] sm:$0xff]
    %v432 = vld [vmem:[#allocation2 + $0x58] sm:$0xff]
    %v433 = vld [vmem:[#allocation2 + $0x60] sm:$0xff]
    %v434 = vld [vmem:[#allocation2 + $0x68] sm:$0xff]
    %v435 = vld [vmem:[#allocation2 + $0x70] sm:$0xff]
    %v436 = vld [vmem:[#allocation2 + $0x78] sm:$0xff]
    %v437 = vld [vmem:[#allocation2 + $0x80] sm:$0xff]
    %v438 = vld [vmem:[#allocation2 + $0x88] sm:$0xff]
    %v439 = vld [vmem:[#allocation2 + $0x90] sm:$0xff]
    %v440 = vld [vmem:[#allocation2 + $0x98] sm:$0xff]
    %v441 = vld [vmem:[#allocation2 + $0xa0] sm:$0xff]
    %v442 = vld [vmem:[#allocation2 + $0xa8] sm:$0xff]
    %v443 = vld [vmem:[#allocation2 + $0xb0] sm:$0xff]
    %v444 = vld [vmem:[#allocation2 + $0xb8] sm:$0xff]
    %v445 = vld [vmem:[#allocation2 + $0xc0] sm:$0xf]
    %v446 = vld [vmem:[#allocation2 + $0xc8] sm:$0xf]
    %v447 = vld [vmem:[#allocation2 + $0xd0] sm:$0xf]
    %v448 = vld [vmem:[#allocation2 + $0xd8] sm:$0xf]
    %v449 = vld [vmem:[#allocation2 + $0xe0] sm:$0xf]
    %v450 = vld [vmem:[#allocation2 + $0xe8] sm:$0xf]
    %v451 = vld [vmem:[%s2] sm:$0xff]
    %453 = vset.pattern.permute.xlu0 0
    %454 = vperm.xlu0 %453, %v451
    %v455 = vpop.permute.xlu0 %454
    %vm457 = vcmask 293888
    %v459 = vsel %vm457, %v420, 0
    %vm461 = vcmask 1043456
    %v463 = vsel %vm461, %v445, 0
    %v466 = vsel %vm461, %v446, 0
    %v469 = vsel %vm461, %v447, 0
    %v472 = vsel %vm461, %v448, 0
    %v475 = vsel %vm461, %v449, 0
    %v478 = vsel %vm461, %v450, 0
    %480 = vmatprep.subr.mxu0 0.0
    %481 = vmatpush1.msra.mxu0 0.0
    %482 = vmatprep.subr.mxu0 0.0
    %483 = vmatpush1.msra.mxu0 0.0
    %484 = vmatprep.subr.mxu0 0.0
    %485 = vmatpush1.msra.mxu0 0.0
    %486 = vmatprep.subr.mxu0 0.0
    %487 = vmatpush1.msra.mxu0 0.0
    %488 = vmatprep.subr.mxu0 0.0
    %489 = vmatpush1.msra.mxu0 0.0
    %490 = vmatprep.subr.mxu0 0.0
    %491 = vmatpush1.msra.mxu0 0.0
    %492 = vmatprep.subr.mxu0 0.0
    %493 = vmatpush1.msra.mxu0 0.0
    %494 = vmatprep.subr.mxu0 0.0
    %495 = vmatpush1.msra.mxu0 0.0
    %496 = vmatprep.subr.mxu0 0.0
    %497 = vmatpush1.msra.mxu0 0.0
    %498 = vmatprep.subr.mxu0 0.0
    %499 = vmatpush1.msra.mxu0 0.0
    %500 = vmatprep.subr.mxu0 0.0
    %501 = vmatpush1.msra.mxu0 0.0
    %502 = vmatprep.subr.mxu0 %v466
    %503 = vmatpush1.msra.mxu0 %v463
    %504 = vmatprep.subr.mxu0 %v440
    %505 = vmatpush1.msra.mxu0 %v439
    %506 = vmatprep.subr.mxu0 %v434
    %507 = vmatpush1.msra.mxu0 %v433
    %508 = vmatprep.subr.mxu0 %v428
    %509 = vmatpush1.msra.mxu0 %v427
    %510 = vmatprep.subr.mxu0 %v422
    %511 = vmatpush1.msra.mxu0 %v421
    %512 = vmatprep.subr.mxu0 0.0
    %513 = vmatpush2.msra.mxu0 0.0
    %514 = vmatprep.subr.mxu0 0.0
    %515 = vmatpush2.msra.mxu0 0.0
    %516 = vmatprep.subr.mxu0 0.0
    %517 = vmatpush2.msra.mxu0 0.0
    %518 = vmatprep.subr.mxu0 0.0
    %519 = vmatpush2.msra.mxu0 0.0
    %520 = vmatprep.subr.mxu0 0.0
    %521 = vmatpush2.msra.mxu0 0.0
    %522 = vmatprep.subr.mxu0 0.0
    %523 = vmatpush2.msra.mxu0 0.0
    %524 = vmatprep.subr.mxu0 0.0
    %525 = vmatpush2.msra.mxu0 0.0
    %526 = vmatprep.subr.mxu0 0.0
    %527 = vmatpush2.msra.mxu0 0.0
    %528 = vmatprep.subr.mxu0 0.0
    %529 = vmatpush2.msra.mxu0 0.0
    %530 = vmatprep.subr.mxu0 0.0
    %531 = vmatpush2.msra.mxu0 0.0
    %532 = vmatprep.subr.mxu0 0.0
    %533 = vmatpush2.msra.mxu0 0.0
    %534 = vmatprep.subr.mxu0 0.0
    %535 = vmatpush2.msra.mxu0 0.0
    %536 = vmatprep.subr.mxu0 0.0
    %537 = vmatpush2.msra.mxu0 0.0
    %538 = vmatprep.subr.mxu0 0.0
    %539 = vmatpush2.msra.mxu0 0.0
    %540 = vmatprep.subr.mxu0 0.0
    %541 = vmatpush2.msra.mxu0 0.0
    %542 = vmatprep.subr.mxu0 0.0
    %543 = vmatpush2.msra.mxu0 0.0
    %544 = vmatprep.mubr.f32.mxu0 0.0
    %545 = vmatmul.mubr.f32.gmra.mxu0 %v459
    %v546 = vpop.f32.mrf.mxu0
    %v547 = vadd.f32 %v455, %v546
    %v548 = vpop.f32.mrf.mxu0
    %v549 = vadd.f32 %v455, %v548
    %550 = vdwg.mxu0
    %551 = vmatprep.subr.mxu0 0.0
    %552 = vmatpush1.msra.mxu0 0.0
    %553 = vmatprep.subr.mxu0 0.0
    %554 = vmatpush1.msra.mxu0 0.0
    %555 = vmatprep.subr.mxu0 0.0
    %556 = vmatpush1.msra.mxu0 0.0
    %557 = vmatprep.subr.mxu0 0.0
    %558 = vmatpush1.msra.mxu0 0.0
    %559 = vmatprep.subr.mxu0 0.0
    %560 = vmatpush1.msra.mxu0 0.0
    %561 = vmatprep.subr.mxu0 0.0
    %562 = vmatpush1.msra.mxu0 0.0
    %563 = vmatprep.subr.mxu0 0.0
    %564 = vmatpush1.msra.mxu0 0.0
    %565 = vmatprep.subr.mxu0 0.0
    %566 = vmatpush1.msra.mxu0 0.0
    %567 = vmatprep.subr.mxu0 0.0
    %568 = vmatpush1.msra.mxu0 0.0
    %569 = vmatprep.subr.mxu0 0.0
    %570 = vmatpush1.msra.mxu0 0.0
    %571 = vmatprep.subr.mxu0 0.0
    %572 = vmatpush1.msra.mxu0 0.0
    %573 = vmatprep.subr.mxu0 %v472
    %574 = vmatpush1.msra.mxu0 %v469
    %575 = vmatprep.subr.mxu0 %v442
    %576 = vmatpush1.msra.mxu0 %v441
    %577 = vmatprep.subr.mxu0 %v436
    %578 = vmatpush1.msra.mxu0 %v435
    %579 = vmatprep.subr.mxu0 %v430
    %580 = vmatpush1.msra.mxu0 %v429
    %581 = vmatprep.subr.mxu0 %v424
    %582 = vmatpush1.msra.mxu0 %v423
    %583 = vmatprep.subr.mxu0 0.0
    %584 = vmatpush2.msra.mxu0 0.0
    %585 = vmatprep.subr.mxu0 0.0
    %586 = vmatpush2.msra.mxu0 0.0
    %587 = vmatprep.subr.mxu0 0.0
    %588 = vmatpush2.msra.mxu0 0.0
    %589 = vmatprep.subr.mxu0 0.0
    %590 = vmatpush2.msra.mxu0 0.0
    %591 = vmatprep.subr.mxu0 0.0
    %592 = vmatpush2.msra.mxu0 0.0
    %593 = vmatprep.subr.mxu0 0.0
    %594 = vmatpush2.msra.mxu0 0.0
    %595 = vmatprep.subr.mxu0 0.0
    %596 = vmatpush2.msra.mxu0 0.0
    %597 = vmatprep.subr.mxu0 0.0
    %598 = vmatpush2.msra.mxu0 0.0
    %599 = vmatprep.subr.mxu0 0.0
    %600 = vmatpush2.msra.mxu0 0.0
    %601 = vmatprep.subr.mxu0 0.0
    %602 = vmatpush2.msra.mxu0 0.0
    %603 = vmatprep.subr.mxu0 0.0
    %604 = vmatpush2.msra.mxu0 0.0
    %605 = vmatprep.subr.mxu0 0.0
    %606 = vmatpush2.msra.mxu0 0.0
    %607 = vmatprep.subr.mxu0 0.0
    %608 = vmatpush2.msra.mxu0 0.0
    %609 = vmatprep.subr.mxu0 0.0
    %610 = vmatpush2.msra.mxu0 0.0
    %611 = vmatprep.subr.mxu0 0.0
    %612 = vmatpush2.msra.mxu0 0.0
    %613 = vmatprep.subr.mxu0 0.0
    %614 = vmatpush2.msra.mxu0 0.0
    %615 = vmatprep.mubr.f32.mxu0 0.0
    %616 = vmatmul.mubr.f32.gmra.mxu0 %v459
    %v617 = vpop.f32.mrf.mxu0
    %v618 = vadd.f32 %v455, %v617
    %v619 = vpop.f32.mrf.mxu0
    %v620 = vadd.f32 %v455, %v619
    %621 = vdwg.mxu0
    %622 = vmatprep.subr.mxu0 0.0
    %623 = vmatpush1.msra.mxu0 0.0
    %624 = vmatprep.subr.mxu0 0.0
    %625 = vmatpush1.msra.mxu0 0.0
    %626 = vmatprep.subr.mxu0 0.0
    %627 = vmatpush1.msra.mxu0 0.0
    %628 = vmatprep.subr.mxu0 0.0
    %629 = vmatpush1.msra.mxu0 0.0
    %630 = vmatprep.subr.mxu0 0.0
    %631 = vmatpush1.msra.mxu0 0.0
    %632 = vmatprep.subr.mxu0 0.0
    %633 = vmatpush1.msra.mxu0 0.0
    %634 = vmatprep.subr.mxu0 0.0
    %635 = vmatpush1.msra.mxu0 0.0
    %636 = vmatprep.subr.mxu0 0.0
    %637 = vmatpush1.msra.mxu0 0.0
    %638 = vmatprep.subr.mxu0 0.0
    %639 = vmatpush1.msra.mxu0 0.0
    %640 = vmatprep.subr.mxu0 0.0
    %641 = vmatpush1.msra.mxu0 0.0
    %642 = vmatprep.subr.mxu0 0.0
    %643 = vmatpush1.msra.mxu0 0.0
    %644 = vmatprep.subr.mxu0 %v478
    %645 = vmatpush1.msra.mxu0 %v475
    %646 = vmatprep.subr.mxu0 %v444
    %647 = vmatpush1.msra.mxu0 %v443
    %648 = vmatprep.subr.mxu0 %v438
    %649 = vmatpush1.msra.mxu0 %v437
    %650 = vmatprep.subr.mxu0 %v432
    %651 = vmatpush1.msra.mxu0 %v431
    %652 = vmatprep.subr.mxu0 %v426
    %653 = vmatpush1.msra.mxu0 %v425
    %654 = vmatprep.subr.mxu0 0.0
    %655 = vmatpush2.msra.mxu0 0.0
    %656 = vmatprep.subr.mxu0 0.0
    %657 = vmatpush2.msra.mxu0 0.0
    %658 = vmatprep.subr.mxu0 0.0
    %659 = vmatpush2.msra.mxu0 0.0
    %660 = vmatprep.subr.mxu0 0.0
    %661 = vmatpush2.msra.mxu0 0.0
    %662 = vmatprep.subr.mxu0 0.0
    %663 = vmatpush2.msra.mxu0 0.0
    %664 = vmatprep.subr.mxu0 0.0
    %665 = vmatpush2.msra.mxu0 0.0
    %666 = vmatprep.subr.mxu0 0.0
    %667 = vmatpush2.msra.mxu0 0.0
    %668 = vmatprep.subr.mxu0 0.0
    %669 = vmatpush2.msra.mxu0 0.0
    %670 = vmatprep.subr.mxu0 0.0
    %671 = vmatpush2.msra.mxu0 0.0
    %672 = vmatprep.subr.mxu0 0.0
    %673 = vmatpush2.msra.mxu0 0.0
    %674 = vmatprep.subr.mxu0 0.0
    %675 = vmatpush2.msra.mxu0 0.0
    %676 = vmatprep.subr.mxu0 0.0
    %677 = vmatpush2.msra.mxu0 0.0
    %678 = vmatprep.subr.mxu0 0.0
    %679 = vmatpush2.msra.mxu0 0.0
    %680 = vmatprep.subr.mxu0 0.0
    %681 = vmatpush2.msra.mxu0 0.0
    %682 = vmatprep.subr.mxu0 0.0
    %683 = vmatpush2.msra.mxu0 0.0
    %684 = vmatprep.subr.mxu0 0.0
    %685 = vmatpush2.msra.mxu0 0.0
    %686 = vmatprep.mubr.f32.mxu0 0.0
    %687 = vmatmul.mubr.f32.gmra.mxu0 %v459
    %v688 = vpop.f32.mrf.mxu0
    %v689 = vadd.f32 %v455, %v688
    %v690 = vpop.f32.mrf.mxu0
    %v691 = vadd.f32 %v455, %v690
    %692 = vdwg.mxu0
    %v693 = vmax.f32 %v547, 0.0
    %v694 = vmax.f32 %v549, 0.0
    %v695 = vmax.f32 %v618, 0.0
    %v696 = vmax.f32 %v620, 0.0
    %v697 = vmax.f32 %v689, 0.0
    %v698 = vmax.f32 %v691, 0.0
    %v700 = vlaneseq
    %v701 = vshrl.u32 %v700, 7
    %v702 = vsub.s32 0, %v701
    %v703 = vrot.slane %v45, %v702
    %v704 = vlaneseq
    %v705 = vshrl.u32 %v704, 7
    %v706 = vsub.s32 1, %v705
    %v707 = vrot.slane %v45, %v706
    %v708 = vlaneseq
    %v709 = vshrl.u32 %v708, 7
    %v710 = vsub.s32 2, %v709
    %v711 = vrot.slane %v45, %v710
    %v712 = vlaneseq
    %v713 = vshrl.u32 %v712, 7
    %v714 = vsub.s32 3, %v713
    %v715 = vrot.slane %v45, %v714
    %v716 = vlaneseq
    %v717 = vshrl.u32 %v716, 7
    %v718 = vsub.s32 4, %v717
    %v719 = vrot.slane %v45, %v718
    %v720 = vlaneseq
    %v721 = vshrl.u32 %v720, 7
    %v722 = vsub.s32 5, %v721
    %v723 = vrot.slane %v45, %v722
    %v730 = vmul.f32 %v693, %v703
    %v731 = vmul.f32 %v694, %v707
    %v732 = vmul.f32 %v695, %v711
    %v733 = vmul.f32 %v696, %v715
    %v734 = vmul.f32 %v697, %v719
    %v735 = vmul.f32 %v698, %v723
    %736 = vst [vmem:[#allocation3] sm:$0xff] 0.0
    %737 = vst [vmem:[#allocation3 + $0x38] sm:$0xff] 0.0
    %738 = vst [vmem:[#allocation3 + $0x8] sm:$0xff] %v730
    %739 = vst [vmem:[#allocation3 + $0x10] sm:$0xff] %v731
    %740 = vst [vmem:[#allocation3 + $0x18] sm:$0xff] %v732
    %741 = vst [vmem:[#allocation3 + $0x20] sm:$0xff] %v733
    %742 = vst [vmem:[#allocation3 + $0x28] sm:$0xff] %v734
    %743 = vst [vmem:[#allocation3 + $0x30] sm:$0xff] %v735
    %v744 = vld [vmem:[#allocation3] sm:$0xff]
    %v745 = vld [vmem:[#allocation3 + $0x8] sm:$0xff]
    %v746 = vld [vmem:[#allocation3 + $0x10] sm:$0xff]
    %v747 = vld [vmem:[#allocation3 + $0x18] sm:$0xff]
    %v748 = vld [vmem:[#allocation3 + $0x20] sm:$0xff]
    %v749 = vld [vmem:[#allocation3 + $0x28] sm:$0xff]
    %v750 = vld [vmem:[#allocation3 + $0x30] sm:$0xff]
    %758 = vrot.lane.b32.xlu0 %v744, 19
    %v759 = vpop.permute.xlu0 %758
    %760 = vrot.lane.b32.xlu0 %v745, 19
    %v761 = vpop.permute.xlu0 %760
    %762 = vrot.lane.b32.xlu0 %v746, 19
    %v763 = vpop.permute.xlu0 %762
    %764 = vrot.lane.b32.xlu0 %v747, 19
    %v765 = vpop.permute.xlu0 %764
    %766 = vrot.lane.b32.xlu0 %v748, 19
    %v767 = vpop.permute.xlu0 %766
    %768 = vrot.lane.b32.xlu0 %v749, 19
    %v769 = vpop.permute.xlu0 %768
    %770 = vrot.lane.b32.xlu0 %v750, 19
    %v771 = vpop.permute.xlu0 %770
    %v772 = vsel %vm71, %v759, %v761
    %v773 = vsel %vm71, %v761, %v763
    %v774 = vsel %vm71, %v763, %v765
    %v775 = vsel %vm71, %v765, %v767
    %v776 = vsel %vm71, %v767, %v769
    %v777 = vsel %vm71, %v769, %v771
    %784 = vst [vmem:[#allocation4] sm:$0xff] %v772
    %785 = vst [vmem:[#allocation4 + $0x8] sm:$0xff] %v773
    %786 = vst [vmem:[#allocation4 + $0x10] sm:$0xff] %v774
    %787 = vst [vmem:[#allocation4 + $0x18] sm:$0xff] %v775
    %788 = vst [vmem:[#allocation4 + $0x20] sm:$0xff] %v776
    %789 = vst [vmem:[#allocation4 + $0x28] sm:$0xff] %v777
    %v790 = vld [vmem:[#allocation3] sm:$0xff]
    %v791 = vld [vmem:[#allocation3 + $0x8] sm:$0xff]
    %v792 = vld [vmem:[#allocation3 + $0x10] sm:$0xff]
    %v793 = vld [vmem:[#allocation3 + $0x18] sm:$0xff]
    %v794 = vld [vmem:[#allocation3 + $0x20] sm:$0xff]
    %v795 = vld [vmem:[#allocation3 + $0x28] sm:$0xff]
    %v796 = vld [vmem:[#allocation3 + $0x30] sm:$0xff]
    %804 = vrot.lane.b32.xlu0 %v790, 18
    %v805 = vpop.permute.xlu0 %804
    %806 = vrot.lane.b32.xlu0 %v791, 18
    %v807 = vpop.permute.xlu0 %806
    %808 = vrot.lane.b32.xlu0 %v792, 18
    %v809 = vpop.permute.xlu0 %808
    %810 = vrot.lane.b32.xlu0 %v793, 18
    %v811 = vpop.permute.xlu0 %810
    %812 = vrot.lane.b32.xlu0 %v794, 18
    %v813 = vpop.permute.xlu0 %812
    %814 = vrot.lane.b32.xlu0 %v795, 18
    %v815 = vpop.permute.xlu0 %814
    %816 = vrot.lane.b32.xlu0 %v796, 18
    %v817 = vpop.permute.xlu0 %816
    %v818 = vsel %vm116, %v805, %v807
    %v819 = vsel %vm116, %v807, %v809
    %v820 = vsel %vm116, %v809, %v811
    %v821 = vsel %vm116, %v811, %v813
    %v822 = vsel %vm116, %v813, %v815
    %v823 = vsel %vm116, %v815, %v817
    %830 = vst [vmem:[#allocation4 + $0x30] sm:$0xff] %v818
    %831 = vst [vmem:[#allocation4 + $0x38] sm:$0xff] %v819
    %832 = vst [vmem:[#allocation4 + $0x40] sm:$0xff] %v820
    %833 = vst [vmem:[#allocation4 + $0x48] sm:$0xff] %v821
    %834 = vst [vmem:[#allocation4 + $0x50] sm:$0xff] %v822
    %835 = vst [vmem:[#allocation4 + $0x58] sm:$0xff] %v823
    %v836 = vld [vmem:[#allocation3] sm:$0xff]
    %v837 = vld [vmem:[#allocation3 + $0x8] sm:$0xff]
    %v838 = vld [vmem:[#allocation3 + $0x10] sm:$0xff]
    %v839 = vld [vmem:[#allocation3 + $0x18] sm:$0xff]
    %v840 = vld [vmem:[#allocation3 + $0x20] sm:$0xff]
    %v841 = vld [vmem:[#allocation3 + $0x28] sm:$0xff]
    %v842 = vld [vmem:[#allocation3 + $0x30] sm:$0xff]
    %850 = vrot.lane.b32.xlu0 %v836, 17
    %v851 = vpop.permute.xlu0 %850
    %852 = vrot.lane.b32.xlu0 %v837, 17
    %v853 = vpop.permute.xlu0 %852
    %854 = vrot.lane.b32.xlu0 %v838, 17
    %v855 = vpop.permute.xlu0 %854
    %856 = vrot.lane.b32.xlu0 %v839, 17
    %v857 = vpop.permute.xlu0 %856
    %858 = vrot.lane.b32.xlu0 %v840, 17
    %v859 = vpop.permute.xlu0 %858
    %860 = vrot.lane.b32.xlu0 %v841, 17
    %v861 = vpop.permute.xlu0 %860
    %862 = vrot.lane.b32.xlu0 %v842, 17
    %v863 = vpop.permute.xlu0 %862
    %v864 = vsel %vm160, %v851, %v853
    %v865 = vsel %vm160, %v853, %v855
    %v866 = vsel %vm160, %v855, %v857
    %v867 = vsel %vm160, %v857, %v859
    %v868 = vsel %vm160, %v859, %v861
    %v869 = vsel %vm160, %v861, %v863
    %876 = vst [vmem:[#allocation4 + $0x60] sm:$0xff] %v864
    %877 = vst [vmem:[#allocation4 + $0x68] sm:$0xff] %v865
    %878 = vst [vmem:[#allocation4 + $0x70] sm:$0xff] %v866
    %879 = vst [vmem:[#allocation4 + $0x78] sm:$0xff] %v867
    %880 = vst [vmem:[#allocation4 + $0x80] sm:$0xff] %v868
    %881 = vst [vmem:[#allocation4 + $0x88] sm:$0xff] %v869
    %v882 = vld [vmem:[#allocation3] sm:$0xff]
    %v883 = vld [vmem:[#allocation3 + $0x8] sm:$0xff]
    %v884 = vld [vmem:[#allocation3 + $0x10] sm:$0xff]
    %v885 = vld [vmem:[#allocation3 + $0x18] sm:$0xff]
    %v886 = vld [vmem:[#allocation3 + $0x20] sm:$0xff]
    %v887 = vld [vmem:[#allocation3 + $0x28] sm:$0xff]
    %v888 = vld [vmem:[#allocation3 + $0x30] sm:$0xff]
    %896 = vrot.lane.b32.xlu0 %v882, 1
    %v897 = vpop.permute.xlu0 %896
    %898 = vrot.lane.b32.xlu0 %v883, 1
    %v899 = vpop.permute.xlu0 %898
    %900 = vrot.lane.b32.xlu0 %v884, 1
    %v901 = vpop.permute.xlu0 %900
    %902 = vrot.lane.b32.xlu0 %v885, 1
    %v903 = vpop.permute.xlu0 %902
    %904 = vrot.lane.b32.xlu0 %v886, 1
    %v905 = vpop.permute.xlu0 %904
    %906 = vrot.lane.b32.xlu0 %v887, 1
    %v907 = vpop.permute.xlu0 %906
    %908 = vrot.lane.b32.xlu0 %v888, 1
    %v909 = vpop.permute.xlu0 %908
    %v910 = vsel %vm205, %v897, %v899
    %v911 = vsel %vm205, %v899, %v901
    %v912 = vsel %vm205, %v901, %v903
    %v913 = vsel %vm205, %v903, %v905
    %v914 = vsel %vm205, %v905, %v907
    %v915 = vsel %vm205, %v907, %v909
    %922 = vst [vmem:[#allocation4 + $0x90] sm:$0xff] %v910
    %923 = vst [vmem:[#allocation4 + $0x98] sm:$0xff] %v911
    %924 = vst [vmem:[#allocation4 + $0xa0] sm:$0xff] %v912
    %925 = vst [vmem:[#allocation4 + $0xa8] sm:$0xff] %v913
    %926 = vst [vmem:[#allocation4 + $0xb0] sm:$0xff] %v914
    %927 = vst [vmem:[#allocation4 + $0xb8] sm:$0xff] %v915
    %v928 = vld [vmem:[#allocation3 + $0x8] sm:$0xff]
    %v929 = vld [vmem:[#allocation3 + $0x10] sm:$0xff]
    %v930 = vld [vmem:[#allocation3 + $0x18] sm:$0xff]
    %v931 = vld [vmem:[#allocation3 + $0x20] sm:$0xff]
    %v932 = vld [vmem:[#allocation3 + $0x28] sm:$0xff]
    %v933 = vld [vmem:[#allocation3 + $0x30] sm:$0xff]
    %934 = vst [vmem:[#allocation4 + $0xc0] sm:$0xff] %v928
    %935 = vst [vmem:[#allocation4 + $0xc8] sm:$0xff] %v929
    %936 = vst [vmem:[#allocation4 + $0xd0] sm:$0xff] %v930
    %937 = vst [vmem:[#allocation4 + $0xd8] sm:$0xff] %v931
    %938 = vst [vmem:[#allocation4 + $0xe0] sm:$0xff] %v932
    %939 = vst [vmem:[#allocation4 + $0xe8] sm:$0xff] %v933
    %v940 = vld [vmem:[#allocation3 + $0x8] sm:$0xff]
    %v941 = vld [vmem:[#allocation3 + $0x10] sm:$0xff]
    %v942 = vld [vmem:[#allocation3 + $0x18] sm:$0xff]
    %v943 = vld [vmem:[#allocation3 + $0x20] sm:$0xff]
    %v944 = vld [vmem:[#allocation3 + $0x28] sm:$0xff]
    %v945 = vld [vmem:[#allocation3 + $0x30] sm:$0xff]
    %v946 = vld [vmem:[#allocation3 + $0x38] sm:$0xff]
    %954 = vrot.lane.b32.xlu0 %v940, 127
    %v955 = vpop.permute.xlu0 %954
    %956 = vrot.lane.b32.xlu0 %v941, 127
    %v957 = vpop.permute.xlu0 %956
    %958 = vrot.lane.b32.xlu0 %v942, 127
    %v959 = vpop.permute.xlu0 %958
    %960 = vrot.lane.b32.xlu0 %v943, 127
    %v961 = vpop.permute.xlu0 %960
    %962 = vrot.lane.b32.xlu0 %v944, 127
    %v963 = vpop.permute.xlu0 %962
    %964 = vrot.lane.b32.xlu0 %v945, 127
    %v965 = vpop.permute.xlu0 %964
    %966 = vrot.lane.b32.xlu0 %v946, 127
    %v967 = vpop.permute.xlu0 %966
    %v968 = vsel %vm268, %v955, %v957
    %v969 = vsel %vm268, %v957, %v959
    %v970 = vsel %vm268, %v959, %v961
    %v971 = vsel %vm268, %v961, %v963
    %v972 = vsel %vm268, %v963, %v965
    %v973 = vsel %vm268, %v965, %v967
    %980 = vst [vmem:[#allocation4 + $0xf0] sm:$0xff] %v968
    %981 = vst [vmem:[#allocation4 + $0xf8] sm:$0xff] %v969
    %982 = vst [vmem:[#allocation4 + $0x100] sm:$0xff] %v970
    %983 = vst [vmem:[#allocation4 + $0x108] sm:$0xff] %v971
    %984 = vst [vmem:[#allocation4 + $0x110] sm:$0xff] %v972
    %985 = vst [vmem:[#allocation4 + $0x118] sm:$0xff] %v973
    %v986 = vld [vmem:[#allocation3 + $0x8] sm:$0xff]
    %v987 = vld [vmem:[#allocation3 + $0x10] sm:$0xff]
    %v988 = vld [vmem:[#allocation3 + $0x18] sm:$0xff]
    %v989 = vld [vmem:[#allocation3 + $0x20] sm:$0xff]
    %v990 = vld [vmem:[#allocation3 + $0x28] sm:$0xff]
    %v991 = vld [vmem:[#allocation3 + $0x30] sm:$0xff]
    %v992 = vld [vmem:[#allocation3 + $0x38] sm:$0xff]
    %1000 = vrot.lane.b32.xlu0 %v986, 111
    %v1001 = vpop.permute.xlu0 %1000
    %1002 = vrot.lane.b32.xlu0 %v987, 111
    %v1003 = vpop.permute.xlu0 %1002
    %1004 = vrot.lane.b32.xlu0 %v988, 111
    %v1005 = vpop.permute.xlu0 %1004
    %1006 = vrot.lane.b32.xlu0 %v989, 111
    %v1007 = vpop.permute.xlu0 %1006
    %1008 = vrot.lane.b32.xlu0 %v990, 111
    %v1009 = vpop.permute.xlu0 %1008
    %1010 = vrot.lane.b32.xlu0 %v991, 111
    %v1011 = vpop.permute.xlu0 %1010
    %1012 = vrot.lane.b32.xlu0 %v992, 111
    %v1013 = vpop.permute.xlu0 %1012
    %v1014 = vsel %vm312, %v1001, %v1003
    %v1015 = vsel %vm312, %v1003, %v1005
    %v1016 = vsel %vm312, %v1005, %v1007
    %v1017 = vsel %vm312, %v1007, %v1009
    %v1018 = vsel %vm312, %v1009, %v1011
    %v1019 = vsel %vm312, %v1011, %v1013
    %1026 = vst [vmem:[#allocation4 + $0x120] sm:$0xff] %v1014
    %1027 = vst [vmem:[#allocation4 + $0x128] sm:$0xff] %v1015
    %1028 = vst [vmem:[#allocation4 + $0x130] sm:$0xff] %v1016
    %1029 = vst [vmem:[#allocation4 + $0x138] sm:$0xff] %v1017
    %1030 = vst [vmem:[#allocation4 + $0x140] sm:$0xff] %v1018
    %1031 = vst [vmem:[#allocation4 + $0x148] sm:$0xff] %v1019
    %v1032 = vld [vmem:[#allocation3 + $0x8] sm:$0xff]
    %v1033 = vld [vmem:[#allocation3 + $0x10] sm:$0xff]
    %v1034 = vld [vmem:[#allocation3 + $0x18] sm:$0xff]
    %v1035 = vld [vmem:[#allocation3 + $0x20] sm:$0xff]
    %v1036 = vld [vmem:[#allocation3 + $0x28] sm:$0xff]
    %v1037 = vld [vmem:[#allocation3 + $0x30] sm:$0xff]
    %v1038 = vld [vmem:[#allocation3 + $0x38] sm:$0xff]
    %1046 = vrot.lane.b32.xlu0 %v1032, 110
    %v1047 = vpop.permute.xlu0 %1046
    %1048 = vrot.lane.b32.xlu0 %v1033, 110
    %v1049 = vpop.permute.xlu0 %1048
    %1050 = vrot.lane.b32.xlu0 %v1034, 110
    %v1051 = vpop.permute.xlu0 %1050
    %1052 = vrot.lane.b32.xlu0 %v1035, 110
    %v1053 = vpop.permute.xlu0 %1052
    %1054 = vrot.lane.b32.xlu0 %v1036, 110
    %v1055 = vpop.permute.xlu0 %1054
    %1056 = vrot.lane.b32.xlu0 %v1037, 110
    %v1057 = vpop.permute.xlu0 %1056
    %1058 = vrot.lane.b32.xlu0 %v1038, 110
    %v1059 = vpop.permute.xlu0 %1058
    %v1060 = vsel %vm357, %v1047, %v1049
    %v1061 = vsel %vm357, %v1049, %v1051
    %v1062 = vsel %vm357, %v1051, %v1053
    %v1063 = vsel %vm357, %v1053, %v1055
    %v1064 = vsel %vm357, %v1055, %v1057
    %v1065 = vsel %vm357, %v1057, %v1059
    %1072 = vst [vmem:[#allocation4 + $0x150] sm:$0xff] %v1060
    %1073 = vst [vmem:[#allocation4 + $0x158] sm:$0xff] %v1061
    %1074 = vst [vmem:[#allocation4 + $0x160] sm:$0xff] %v1062
    %1075 = vst [vmem:[#allocation4 + $0x168] sm:$0xff] %v1063
    %1076 = vst [vmem:[#allocation4 + $0x170] sm:$0xff] %v1064
    %1077 = vst [vmem:[#allocation4 + $0x178] sm:$0xff] %v1065
    %v1078 = vld [vmem:[#allocation3 + $0x8] sm:$0xff]
    %v1079 = vld [vmem:[#allocation3 + $0x10] sm:$0xff]
    %v1080 = vld [vmem:[#allocation3 + $0x18] sm:$0xff]
    %v1081 = vld [vmem:[#allocation3 + $0x20] sm:$0xff]
    %v1082 = vld [vmem:[#allocation3 + $0x28] sm:$0xff]
    %v1083 = vld [vmem:[#allocation3 + $0x30] sm:$0xff]
    %v1084 = vld [vmem:[#allocation3 + $0x38] sm:$0xff]
    %1092 = vrot.lane.b32.xlu0 %v1078, 109
    %v1093 = vpop.permute.xlu0 %1092
    %1094 = vrot.lane.b32.xlu0 %v1079, 109
    %v1095 = vpop.permute.xlu0 %1094
    %1096 = vrot.lane.b32.xlu0 %v1080, 109
    %v1097 = vpop.permute.xlu0 %1096
    %1098 = vrot.lane.b32.xlu0 %v1081, 109
    %v1099 = vpop.permute.xlu0 %1098
    %1100 = vrot.lane.b32.xlu0 %v1082, 109
    %v1101 = vpop.permute.xlu0 %1100
    %1102 = vrot.lane.b32.xlu0 %v1083, 109
    %v1103 = vpop.permute.xlu0 %1102
    %1104 = vrot.lane.b32.xlu0 %v1084, 109
    %v1105 = vpop.permute.xlu0 %1104
    %v1106 = vsel %vm401, %v1093, %v1095
    %v1107 = vsel %vm401, %v1095, %v1097
    %v1108 = vsel %vm401, %v1097, %v1099
    %v1109 = vsel %vm401, %v1099, %v1101
    %v1110 = vsel %vm401, %v1101, %v1103
    %v1111 = vsel %vm401, %v1103, %v1105
    %1118 = vst [vmem:[#allocation4 + $0x180] sm:$0xff] %v1106
    %1119 = vst [vmem:[#allocation4 + $0x188] sm:$0xff] %v1107
    %1120 = vst [vmem:[#allocation4 + $0x190] sm:$0xff] %v1108
    %1121 = vst [vmem:[#allocation4 + $0x198] sm:$0xff] %v1109
    %1122 = vst [vmem:[#allocation4 + $0x1a0] sm:$0xff] %v1110
    %1123 = vst [vmem:[#allocation4 + $0x1a8] sm:$0xff] %v1111
    %v1124 = vld [vmem:[%s3] sm:$0xff]
    %v1125 = vld [vmem:[#allocation4] sm:$0xff]
    %v1126 = vld [vmem:[#allocation4 + $0x8] sm:$0xff]
    %v1127 = vld [vmem:[#allocation4 + $0x10] sm:$0xff]
    %v1128 = vld [vmem:[#allocation4 + $0x18] sm:$0xff]
    %v1129 = vld [vmem:[#allocation4 + $0x20] sm:$0xff]
    %v1130 = vld [vmem:[#allocation4 + $0x28] sm:$0xff]
    %v1131 = vld [vmem:[#allocation4 + $0x30] sm:$0xff]
    %v1132 = vld [vmem:[#allocation4 + $0x38] sm:$0xff]
    %v1133 = vld [vmem:[#allocation4 + $0x40] sm:$0xff]
    %v1134 = vld [vmem:[#allocation4 + $0x48] sm:$0xff]
    %v1135 = vld [vmem:[#allocation4 + $0x50] sm:$0xff]
    %v1136 = vld [vmem:[#allocation4 + $0x58] sm:$0xff]
    %v1137 = vld [vmem:[#allocation4 + $0x60] sm:$0xff]
    %v1138 = vld [vmem:[#allocation4 + $0x68] sm:$0xff]
    %v1139 = vld [vmem:[#allocation4 + $0x70] sm:$0xff]
    %v1140 = vld [vmem:[#allocation4 + $0x78] sm:$0xff]
    %v1141 = vld [vmem:[#allocation4 + $0x80] sm:$0xff]
    %v1142 = vld [vmem:[#allocation4 + $0x88] sm:$0xff]
    %v1143 = vld [vmem:[#allocation4 + $0x90] sm:$0xff]
    %v1144 = vld [vmem:[#allocation4 + $0x98] sm:$0xff]
    %v1145 = vld [vmem:[#allocation4 + $0xa0] sm:$0xff]
    %v1146 = vld [vmem:[#allocation4 + $0xa8] sm:$0xff]
    %v1147 = vld [vmem:[#allocation4 + $0xb0] sm:$0xff]
    %v1148 = vld [vmem:[#allocation4 + $0xb8] sm:$0xff]
    %v1149 = vld [vmem:[#allocation4 + $0xc0] sm:$0xff]
    %v1150 = vld [vmem:[#allocation4 + $0xc8] sm:$0xff]
    %v1151 = vld [vmem:[#allocation4 + $0xd0] sm:$0xff]
    %v1152 = vld [vmem:[#allocation4 + $0xd8] sm:$0xff]
    %v1153 = vld [vmem:[#allocation4 + $0xe0] sm:$0xff]
    %v1154 = vld [vmem:[#allocation4 + $0xe8] sm:$0xff]
    %v1155 = vld [vmem:[#allocation4 + $0xf0] sm:$0xff]
    %v1156 = vld [vmem:[#allocation4 + $0xf8] sm:$0xff]
    %v1157 = vld [vmem:[#allocation4 + $0x100] sm:$0xff]
    %v1158 = vld [vmem:[#allocation4 + $0x108] sm:$0xff]
    %v1159 = vld [vmem:[#allocation4 + $0x110] sm:$0xff]
    %v1160 = vld [vmem:[#allocation4 + $0x118] sm:$0xff]
    %v1161 = vld [vmem:[#allocation4 + $0x120] sm:$0xff]
    %v1162 = vld [vmem:[#allocation4 + $0x128] sm:$0xff]
    %v1163 = vld [vmem:[#allocation4 + $0x130] sm:$0xff]
    %v1164 = vld [vmem:[#allocation4 + $0x138] sm:$0xff]
    %v1165 = vld [vmem:[#allocation4 + $0x140] sm:$0xff]
    %v1166 = vld [vmem:[#allocation4 + $0x148] sm:$0xff]
    %v1167 = vld [vmem:[#allocation4 + $0x150] sm:$0xff]
    %v1168 = vld [vmem:[#allocation4 + $0x158] sm:$0xff]
    %v1169 = vld [vmem:[#allocation4 + $0x160] sm:$0xff]
    %v1170 = vld [vmem:[#allocation4 + $0x168] sm:$0xff]
    %v1171 = vld [vmem:[#allocation4 + $0x170] sm:$0xff]
    %v1172 = vld [vmem:[#allocation4 + $0x178] sm:$0xff]
    %v1173 = vld [vmem:[#allocation4 + $0x180] sm:$0xff]
    %v1174 = vld [vmem:[#allocation4 + $0x188] sm:$0xff]
    %v1175 = vld [vmem:[#allocation4 + $0x190] sm:$0xff]
    %v1176 = vld [vmem:[#allocation4 + $0x198] sm:$0xff]
    %v1177 = vld [vmem:[#allocation4 + $0x1a0] sm:$0xff]
    %v1178 = vld [vmem:[#allocation4 + $0x1a8] sm:$0xff]
    %v1179 = vld [vmem:[%s4] sm:$0xff]
    %1181 = vset.pattern.permute.xlu0 0
    %1182 = vperm.xlu0 %1181, %v1179
    %v1183 = vpop.permute.xlu0 %1182
    %vm1185 = vcmask 588800
    %v1187 = vsel %vm1185, %v1124, 0
    %1189 = vmatprep.subr.mxu0 0.0
    %1190 = vmatpush1.msra.mxu0 0.0
    %1191 = vmatprep.subr.mxu0 0.0
    %1192 = vmatpush1.msra.mxu0 0.0
    %1193 = vmatprep.subr.mxu0 0.0
    %1194 = vmatpush1.msra.mxu0 0.0
    %1195 = vmatprep.subr.mxu0 0.0
    %1196 = vmatpush1.msra.mxu0 0.0
    %1197 = vmatprep.subr.mxu0 0.0
    %1198 = vmatpush1.msra.mxu0 0.0
    %1199 = vmatprep.subr.mxu0 0.0
    %1200 = vmatpush1.msra.mxu0 0.0
    %1201 = vmatprep.subr.mxu0 0.0
    %1202 = vmatpush1.msra.mxu0 0.0
    %1203 = vmatprep.subr.mxu0 %v1174
    %1204 = vmatpush1.msra.mxu0 %v1173
    %1205 = vmatprep.subr.mxu0 %v1168
    %1206 = vmatpush1.msra.mxu0 %v1167
    %1207 = vmatprep.subr.mxu0 %v1162
    %1208 = vmatpush1.msra.mxu0 %v1161
    %1209 = vmatprep.subr.mxu0 %v1156
    %1210 = vmatpush1.msra.mxu0 %v1155
    %1211 = vmatprep.subr.mxu0 %v1150
    %1212 = vmatpush1.msra.mxu0 %v1149
    %1213 = vmatprep.subr.mxu0 %v1144
    %1214 = vmatpush1.msra.mxu0 %v1143
    %1215 = vmatprep.subr.mxu0 %v1138
    %1216 = vmatpush1.msra.mxu0 %v1137
    %1217 = vmatprep.subr.mxu0 %v1132
    %1218 = vmatpush1.msra.mxu0 %v1131
    %1219 = vmatprep.subr.mxu0 %v1126
    %1220 = vmatpush1.msra.mxu0 %v1125
    %1221 = vmatprep.subr.mxu0 0.0
    %1222 = vmatpush2.msra.mxu0 0.0
    %1223 = vmatprep.subr.mxu0 0.0
    %1224 = vmatpush2.msra.mxu0 0.0
    %1225 = vmatprep.subr.mxu0 0.0
    %1226 = vmatpush2.msra.mxu0 0.0
    %1227 = vmatprep.subr.mxu0 0.0
    %1228 = vmatpush2.msra.mxu0 0.0
    %1229 = vmatprep.subr.mxu0 0.0
    %1230 = vmatpush2.msra.mxu0 0.0
    %1231 = vmatprep.subr.mxu0 0.0
    %1232 = vmatpush2.msra.mxu0 0.0
    %1233 = vmatprep.subr.mxu0 0.0
    %1234 = vmatpush2.msra.mxu0 0.0
    %1235 = vmatprep.subr.mxu0 0.0
    %1236 = vmatpush2.msra.mxu0 0.0
    %1237 = vmatprep.subr.mxu0 0.0
    %1238 = vmatpush2.msra.mxu0 0.0
    %1239 = vmatprep.subr.mxu0 0.0
    %1240 = vmatpush2.msra.mxu0 0.0
    %1241 = vmatprep.subr.mxu0 0.0
    %1242 = vmatpush2.msra.mxu0 0.0
    %1243 = vmatprep.subr.mxu0 0.0
    %1244 = vmatpush2.msra.mxu0 0.0
    %1245 = vmatprep.subr.mxu0 0.0
    %1246 = vmatpush2.msra.mxu0 0.0
    %1247 = vmatprep.subr.mxu0 0.0
    %1248 = vmatpush2.msra.mxu0 0.0
    %1249 = vmatprep.subr.mxu0 0.0
    %1250 = vmatpush2.msra.mxu0 0.0
    %1251 = vmatprep.subr.mxu0 0.0
    %1252 = vmatpush2.msra.mxu0 0.0
    %1253 = vmatprep.mubr.f32.mxu0 0.0
    %1254 = vmatmul.mubr.f32.gmra.mxu0 %v1187
    %v1255 = vpop.f32.mrf.mxu0
    %v1256 = vadd.f32 %v1183, %v1255
    %v1257 = vpop.f32.mrf.mxu0
    %v1258 = vadd.f32 %v1183, %v1257
    %1259 = vdwg.mxu0
    %1260 = vmatprep.subr.mxu0 0.0
    %1261 = vmatpush1.msra.mxu0 0.0
    %1262 = vmatprep.subr.mxu0 0.0
    %1263 = vmatpush1.msra.mxu0 0.0
    %1264 = vmatprep.subr.mxu0 0.0
    %1265 = vmatpush1.msra.mxu0 0.0
    %1266 = vmatprep.subr.mxu0 0.0
    %1267 = vmatpush1.msra.mxu0 0.0
    %1268 = vmatprep.subr.mxu0 0.0
    %1269 = vmatpush1.msra.mxu0 0.0
    %1270 = vmatprep.subr.mxu0 0.0
    %1271 = vmatpush1.msra.mxu0 0.0
    %1272 = vmatprep.subr.mxu0 0.0
    %1273 = vmatpush1.msra.mxu0 0.0
    %1274 = vmatprep.subr.mxu0 %v1176
    %1275 = vmatpush1.msra.mxu0 %v1175
    %1276 = vmatprep.subr.mxu0 %v1170
    %1277 = vmatpush1.msra.mxu0 %v1169
    %1278 = vmatprep.subr.mxu0 %v1164
    %1279 = vmatpush1.msra.mxu0 %v1163
    %1280 = vmatprep.subr.mxu0 %v1158
    %1281 = vmatpush1.msra.mxu0 %v1157
    %1282 = vmatprep.subr.mxu0 %v1152
    %1283 = vmatpush1.msra.mxu0 %v1151
    %1284 = vmatprep.subr.mxu0 %v1146
    %1285 = vmatpush1.msra.mxu0 %v1145
    %1286 = vmatprep.subr.mxu0 %v1140
    %1287 = vmatpush1.msra.mxu0 %v1139
    %1288 = vmatprep.subr.mxu0 %v1134
    %1289 = vmatpush1.msra.mxu0 %v1133
    %1290 = vmatprep.subr.mxu0 %v1128
    %1291 = vmatpush1.msra.mxu0 %v1127
    %1292 = vmatprep.subr.mxu0 0.0
    %1293 = vmatpush2.msra.mxu0 0.0
    %1294 = vmatprep.subr.mxu0 0.0
    %1295 = vmatpush2.msra.mxu0 0.0
    %1296 = vmatprep.subr.mxu0 0.0
    %1297 = vmatpush2.msra.mxu0 0.0
    %1298 = vmatprep.subr.mxu0 0.0
    %1299 = vmatpush2.msra.mxu0 0.0
    %1300 = vmatprep.subr.mxu0 0.0
    %1301 = vmatpush2.msra.mxu0 0.0
    %1302 = vmatprep.subr.mxu0 0.0
    %1303 = vmatpush2.msra.mxu0 0.0
    %1304 = vmatprep.subr.mxu0 0.0
    %1305 = vmatpush2.msra.mxu0 0.0
    %1306 = vmatprep.subr.mxu0 0.0
    %1307 = vmatpush2.msra.mxu0 0.0
    %1308 = vmatprep.subr.mxu0 0.0
    %1309 = vmatpush2.msra.mxu0 0.0
    %1310 = vmatprep.subr.mxu0 0.0
    %1311 = vmatpush2.msra.mxu0 0.0
    %1312 = vmatprep.subr.mxu0 0.0
    %1313 = vmatpush2.msra.mxu0 0.0
    %1314 = vmatprep.subr.mxu0 0.0
    %1315 = vmatpush2.msra.mxu0 0.0
    %1316 = vmatprep.subr.mxu0 0.0
    %1317 = vmatpush2.msra.mxu0 0.0
    %1318 = vmatprep.subr.mxu0 0.0
    %1319 = vmatpush2.msra.mxu0 0.0
    %1320 = vmatprep.subr.mxu0 0.0
    %1321 = vmatpush2.msra.mxu0 0.0
    %1322 = vmatprep.subr.mxu0 0.0
    %1323 = vmatpush2.msra.mxu0 0.0
    %1324 = vmatprep.mubr.f32.mxu0 0.0
    %1325 = vmatmul.mubr.f32.gmra.mxu0 %v1187
    %v1326 = vpop.f32.mrf.mxu0
    %v1327 = vadd.f32 %v1183, %v1326
    %v1328 = vpop.f32.mrf.mxu0
    %v1329 = vadd.f32 %v1183, %v1328
    %1330 = vdwg.mxu0
    %1331 = vmatprep.subr.mxu0 0.0
    %1332 = vmatpush1.msra.mxu0 0.0
    %1333 = vmatprep.subr.mxu0 0.0
    %1334 = vmatpush1.msra.mxu0 0.0
    %1335 = vmatprep.subr.mxu0 0.0
    %1336 = vmatpush1.msra.mxu0 0.0
    %1337 = vmatprep.subr.mxu0 0.0
    %1338 = vmatpush1.msra.mxu0 0.0
    %1339 = vmatprep.subr.mxu0 0.0
    %1340 = vmatpush1.msra.mxu0 0.0
    %1341 = vmatprep.subr.mxu0 0.0
    %1342 = vmatpush1.msra.mxu0 0.0
    %1343 = vmatprep.subr.mxu0 0.0
    %1344 = vmatpush1.msra.mxu0 0.0
    %1345 = vmatprep.subr.mxu0 %v1178
    %1346 = vmatpush1.msra.mxu0 %v1177
    %1347 = vmatprep.subr.mxu0 %v1172
    %1348 = vmatpush1.msra.mxu0 %v1171
    %1349 = vmatprep.subr.mxu0 %v1166
    %1350 = vmatpush1.msra.mxu0 %v1165
    %1351 = vmatprep.subr.mxu0 %v1160
    %1352 = vmatpush1.msra.mxu0 %v1159
    %1353 = vmatprep.subr.mxu0 %v1154
    %1354 = vmatpush1.msra.mxu0 %v1153
    %1355 = vmatprep.subr.mxu0 %v1148
    %1356 = vmatpush1.msra.mxu0 %v1147
    %1357 = vmatprep.subr.mxu0 %v1142
    %1358 = vmatpush1.msra.mxu0 %v1141
    %1359 = vmatprep.subr.mxu0 %v1136
    %1360 = vmatpush1.msra.mxu0 %v1135
    %1361 = vmatprep.subr.mxu0 %v1130
    %1362 = vmatpush1.msra.mxu0 %v1129
    %1363 = vmatprep.subr.mxu0 0.0
    %1364 = vmatpush2.msra.mxu0 0.0
    %1365 = vmatprep.subr.mxu0 0.0
    %1366 = vmatpush2.msra.mxu0 0.0
    %1367 = vmatprep.subr.mxu0 0.0
    %1368 = vmatpush2.msra.mxu0 0.0
    %1369 = vmatprep.subr.mxu0 0.0
    %1370 = vmatpush2.msra.mxu0 0.0
    %1371 = vmatprep.subr.mxu0 0.0
    %1372 = vmatpush2.msra.mxu0 0.0
    %1373 = vmatprep.subr.mxu0 0.0
    %1374 = vmatpush2.msra.mxu0 0.0
    %1375 = vmatprep.subr.mxu0 0.0
    %1376 = vmatpush2.msra.mxu0 0.0
    %1377 = vmatprep.subr.mxu0 0.0
    %1378 = vmatpush2.msra.mxu0 0.0
    %1379 = vmatprep.subr.mxu0 0.0
    %1380 = vmatpush2.msra.mxu0 0.0
    %1381 = vmatprep.subr.mxu0 0.0
    %1382 = vmatpush2.msra.mxu0 0.0
    %1383 = vmatprep.subr.mxu0 0.0
    %1384 = vmatpush2.msra.mxu0 0.0
    %1385 = vmatprep.subr.mxu0 0.0
    %1386 = vmatpush2.msra.mxu0 0.0
    %1387 = vmatprep.subr.mxu0 0.0
    %1388 = vmatpush2.msra.mxu0 0.0
    %1389 = vmatprep.subr.mxu0 0.0
    %1390 = vmatpush2.msra.mxu0 0.0
    %1391 = vmatprep.subr.mxu0 0.0
    %1392 = vmatpush2.msra.mxu0 0.0
    %1393 = vmatprep.subr.mxu0 0.0
    %1394 = vmatpush2.msra.mxu0 0.0
    %1395 = vmatprep.mubr.f32.mxu0 0.0
    %1396 = vmatmul.mubr.f32.gmra.mxu0 %v1187
    %v1397 = vpop.f32.mrf.mxu0
    %v1398 = vadd.f32 %v1183, %v1397
    %v1399 = vpop.f32.mrf.mxu0
    %v1400 = vadd.f32 %v1183, %v1399
    %1401 = vdwg.mxu0
    %v1402 = vmax.f32 %v1256, 0.0
    %v1403 = vmax.f32 %v1258, 0.0
    %v1404 = vmax.f32 %v1327, 0.0
    %v1405 = vmax.f32 %v1329, 0.0
    %v1406 = vmax.f32 %v1398, 0.0
    %v1407 = vmax.f32 %v1400, 0.0
    %v1408 = vmul.f32 %v1402, %v703
    %v1409 = vmul.f32 %v1403, %v707
    %v1410 = vmul.f32 %v1404, %v711
    %v1411 = vmul.f32 %v1405, %v715
    %v1412 = vmul.f32 %v1406, %v719
    %v1413 = vmul.f32 %v1407, %v723
    %v1417 = vcombine.low %v1408, %v1409
    %v1419 = vunpack.c.l.s4 1966171168
    %v1420 = vunpack.c.0.s8 %v1419
    %v1421 = vlaneseq
    %v1422 = vshrl.u32 %v1421, 7
    %v1423 = vsub.s32 %v1420, %v1422
    %v1424 = vrot.slane %v1417, %v1423
    %v1426 = vunpack.c.l.s4 1966171168
    %v1427 = vunpack.c.0.s8 %v1426
    %v1428 = vlaneseq
    %v1429 = vshrl.u32 %v1428, 7
    %v1430 = vsub.s32 %v1427, %v1429
    %v1431 = vrot.slane %v1410, %v1430
    %v1432 = vcombine.low %v1424, %v1431
    %v1434 = vunpack.c.l.s4 1966171168
    %v1435 = vunpack.c.0.s8 %v1434
    %v1436 = vlaneseq
    %v1437 = vshrl.u32 %v1436, 7
    %v1438 = vsub.s32 %v1435, %v1437
    %v1439 = vrot.slane %v1432, %v1438
    %v1441 = vlaneseq
    %vm1442 = vcmp.ge.s32.totalorder %v1441, 0
    %vm1443 = vcmp.lt.s32.totalorder %v1441, 384
    %vm1444 = vmand %vm1442, %vm1443
    %1445 = vst.msk [vmem:[#allocation5] ss:$2 sm:$0x7] %vm1444, %v1439
    %v1449 = vcombine.low %v1411, %v1412
    %v1451 = vunpack.c.l.s4 1966171168
    %v1452 = vunpack.c.0.s8 %v1451
    %v1453 = vlaneseq
    %v1454 = vshrl.u32 %v1453, 7
    %v1455 = vsub.s32 %v1452, %v1454
    %v1456 = vrot.slane %v1449, %v1455
    %v1458 = vunpack.c.l.s4 1966171168
    %v1459 = vunpack.c.0.s8 %v1458
    %v1460 = vlaneseq
    %v1461 = vshrl.u32 %v1460, 7
    %v1462 = vsub.s32 %v1459, %v1461
    %v1463 = vrot.slane %v1413, %v1462
    %v1464 = vcombine.low %v1456, %v1463
    %v1466 = vunpack.c.l.s4 1966171168
    %v1467 = vunpack.c.0.s8 %v1466
    %v1468 = vlaneseq
    %v1469 = vshrl.u32 %v1468, 7
    %v1470 = vsub.s32 %v1467, %v1469
    %v1471 = vrot.slane %v1464, %v1470
    %s1473 = scalar_lea.vmem [#allocation5], 1
    %1474 = vst.msk [vmem:[%s1473] ss:$2 sm:$0x7] %vm1444, %v1471
    %v1475 = vcombine.high %v1424, %v1431
    %v1477 = vunpack.c.l.s4 1966171168
    %v1478 = vunpack.c.0.s8 %v1477
    %v1479 = vlaneseq
    %v1480 = vshrl.u32 %v1479, 7
    %v1481 = vsub.s32 %v1478, %v1480
    %v1482 = vrot.slane %v1475, %v1481
    %s1484 = scalar_lea.vmem [#allocation5], 6
    %1485 = vst.msk [vmem:[%s1484] ss:$2 sm:$0x7] %vm1444, %v1482
    %v1486 = vcombine.high %v1456, %v1463
    %v1488 = vunpack.c.l.s4 1966171168
    %v1489 = vunpack.c.0.s8 %v1488
    %v1490 = vlaneseq
    %v1491 = vshrl.u32 %v1490, 7
    %v1492 = vsub.s32 %v1489, %v1491
    %v1493 = vrot.slane %v1486, %v1492
    %s1495 = scalar_lea.vmem [#allocation5], 7
    %1496 = vst.msk [vmem:[%s1495] ss:$2 sm:$0x7] %vm1444, %v1493
    %v1497 = vcombine.high %v1439, %v1439
    %s1499 = scalar_lea.vmem [#allocation5], 12
    %1500 = vst.msk [vmem:[%s1499] ss:$2 sm:$0x7] %vm1444, %v1497
    %v1501 = vcombine.high %v1471, %v1471
    %s1503 = scalar_lea.vmem [#allocation5], 13
    %1504 = vst.msk [vmem:[%s1503] ss:$2 sm:$0x7] %vm1444, %v1501
    %v1505 = vcombine.high %v1482, %v1482
    %s1507 = scalar_lea.vmem [#allocation5], 18
    %1508 = vst.msk [vmem:[%s1507] ss:$2 sm:$0x7] %vm1444, %v1505
    %v1509 = vcombine.high %v1493, %v1493
    %s1511 = scalar_lea.vmem [#allocation5], 19
    %1512 = vst.msk [vmem:[%s1511] ss:$2 sm:$0x7] %vm1444, %v1509
    %v1513 = vcombine.high %v1408, %v1409
    %v1514 = vcombine.high %v1410, %v1410
    %v1516 = vunpack.c.l.s4 1966171168
    %v1517 = vunpack.c.0.s8 %v1516
    %v1518 = vlaneseq
    %v1519 = vshrl.u32 %v1518, 7
    %v1520 = vsub.s32 %v1517, %v1519
    %v1521 = vrot.slane %v1513, %v1520
    %v1523 = vunpack.c.l.s4 1966171168
    %v1524 = vunpack.c.0.s8 %v1523
    %v1525 = vlaneseq
    %v1526 = vshrl.u32 %v1525, 7
    %v1527 = vsub.s32 %v1524, %v1526
    %v1528 = vrot.slane %v1514, %v1527
    %v1529 = vcombine.low %v1521, %v1528
    %v1531 = vunpack.c.l.s4 1966171168
    %v1532 = vunpack.c.0.s8 %v1531
    %v1533 = vlaneseq
    %v1534 = vshrl.u32 %v1533, 7
    %v1535 = vsub.s32 %v1532, %v1534
    %v1536 = vrot.slane %v1529, %v1535
    %s1538 = scalar_lea.vmem [#allocation5], 24
    %1539 = vst.msk [vmem:[%s1538] ss:$2 sm:$0x7] %vm1444, %v1536
    %v1540 = vcombine.high %v1411, %v1412
    %v1541 = vcombine.high %v1413, %v1413
    %v1543 = vunpack.c.l.s4 1966171168
    %v1544 = vunpack.c.0.s8 %v1543
    %v1545 = vlaneseq
    %v1546 = vshrl.u32 %v1545, 7
    %v1547 = vsub.s32 %v1544, %v1546
    %v1548 = vrot.slane %v1540, %v1547
    %v1550 = vunpack.c.l.s4 1966171168
    %v1551 = vunpack.c.0.s8 %v1550
    %v1552 = vlaneseq
    %v1553 = vshrl.u32 %v1552, 7
    %v1554 = vsub.s32 %v1551, %v1553
    %v1555 = vrot.slane %v1541, %v1554
    %v1556 = vcombine.low %v1548, %v1555
    %v1558 = vunpack.c.l.s4 1966171168
    %v1559 = vunpack.c.0.s8 %v1558
    %v1560 = vlaneseq
    %v1561 = vshrl.u32 %v1560, 7
    %v1562 = vsub.s32 %v1559, %v1561
    %v1563 = vrot.slane %v1556, %v1562
    %s1565 = scalar_lea.vmem [#allocation5], 25
    %1566 = vst.msk [vmem:[%s1565] ss:$2 sm:$0x7] %vm1444, %v1563
    %v1567 = vcombine.high %v1521, %v1528
    %v1569 = vunpack.c.l.s4 1966171168
    %v1570 = vunpack.c.0.s8 %v1569
    %v1571 = vlaneseq
    %v1572 = vshrl.u32 %v1571, 7
    %v1573 = vsub.s32 %v1570, %v1572
    %v1574 = vrot.slane %v1567, %v1573
    %s1576 = scalar_lea.vmem [#allocation5], 30
    %1577 = vst.msk [vmem:[%s1576] ss:$2 sm:$0x7] %vm1444, %v1574
    %v1578 = vcombine.high %v1548, %v1555
    %v1580 = vunpack.c.l.s4 1966171168
    %v1581 = vunpack.c.0.s8 %v1580
    %v1582 = vlaneseq
    %v1583 = vshrl.u32 %v1582, 7
    %v1584 = vsub.s32 %v1581, %v1583
    %v1585 = vrot.slane %v1578, %v1584
    %s1587 = scalar_lea.vmem [#allocation5], 31
    %1588 = vst.msk [vmem:[%s1587] ss:$2 sm:$0x7] %vm1444, %v1585
    %v1589 = vcombine.high %v1536, %v1536
    %s1591 = scalar_lea.vmem [#allocation5], 36
    %1592 = vst.msk [vmem:[%s1591] ss:$2 sm:$0x7] %vm1444, %v1589
    %v1593 = vcombine.high %v1563, %v1563
    %s1595 = scalar_lea.vmem [#allocation5], 37
    %1596 = vst.msk [vmem:[%s1595] ss:$2 sm:$0x7] %vm1444, %v1593
    %v1597 = vcombine.high %v1574, %v1574
    %s1599 = scalar_lea.vmem [#allocation5], 42
    %1600 = vst.msk [vmem:[%s1599] ss:$2 sm:$0x7] %vm1444, %v1597
    %v1601 = vcombine.high %v1585, %v1585
    %s1603 = scalar_lea.vmem [#allocation5], 43
    %1604 = vst.msk [vmem:[%s1603] ss:$2 sm:$0x7] %vm1444, %v1601
    %v1605 = vld [vmem:[#allocation5] sm:$0xff]
    %v1606 = vld [vmem:[#allocation5 + $0x8] sm:$0xff]
    %v1607 = vld [vmem:[#allocation5 + $0x10] sm:$0xff]
    %v1608 = vld [vmem:[#allocation5 + $0x18] sm:$0xff]
    %v1609 = vld [vmem:[#allocation5 + $0x20] sm:$0xff]
    %v1610 = vld [vmem:[#allocation5 + $0x28] sm:$0xff]
    %v1617 = vcombine.high %v1605, %v1605
    %v1619 = vunpack.c.l.s4 1983009808
    %v1620 = vunpack.c.0.s8 %v1619
    %v1621 = vlaneseq
    %v1622 = vshrl.u32 %v1621, 7
    %v1623 = vsub.s32 %v1620, %v1622
    %v1624 = vrot.slane %v1605, %v1623
    %v1626 = vunpack.c.l.s4 1983009808
    %v1627 = vunpack.c.0.s8 %v1626
    %v1628 = vlaneseq
    %v1629 = vshrl.u32 %v1628, 7
    %v1630 = vsub.s32 %v1627, %v1629
    %v1631 = vrot.slane %v1617, %v1630
    %v1632 = vcombine.high %v1624, %v1624
    %v1633 = vcombine.high %v1631, %v1631
    %v1634 = vcombine.high %v1606, %v1606
    %v1636 = vunpack.c.l.s4 1983009808
    %v1637 = vunpack.c.0.s8 %v1636
    %v1638 = vlaneseq
    %v1639 = vshrl.u32 %v1638, 7
    %v1640 = vsub.s32 %v1637, %v1639
    %v1641 = vrot.slane %v1606, %v1640
    %v1643 = vunpack.c.l.s4 1983009808
    %v1644 = vunpack.c.0.s8 %v1643
    %v1645 = vlaneseq
    %v1646 = vshrl.u32 %v1645, 7
    %v1647 = vsub.s32 %v1644, %v1646
    %v1648 = vrot.slane %v1634, %v1647
    %v1649 = vcombine.high %v1641, %v1641
    %v1650 = vcombine.high %v1648, %v1648
    %v1651 = vcombine.high %v1607, %v1607
    %v1653 = vunpack.c.l.s4 1983009808
    %v1654 = vunpack.c.0.s8 %v1653
    %v1655 = vlaneseq
    %v1656 = vshrl.u32 %v1655, 7
    %v1657 = vsub.s32 %v1654, %v1656
    %v1658 = vrot.slane %v1607, %v1657
    %v1660 = vunpack.c.l.s4 1983009808
    %v1661 = vunpack.c.0.s8 %v1660
    %v1662 = vlaneseq
    %v1663 = vshrl.u32 %v1662, 7
    %v1664 = vsub.s32 %v1661, %v1663
    %v1665 = vrot.slane %v1651, %v1664
    %v1666 = vcombine.high %v1658, %v1658
    %v1667 = vcombine.high %v1665, %v1665
    %v1668 = vcombine.high %v1608, %v1608
    %v1670 = vunpack.c.l.s4 1983009808
    %v1671 = vunpack.c.0.s8 %v1670
    %v1672 = vlaneseq
    %v1673 = vshrl.u32 %v1672, 7
    %v1674 = vsub.s32 %v1671, %v1673
    %v1675 = vrot.slane %v1608, %v1674
    %v1677 = vunpack.c.l.s4 1983009808
    %v1678 = vunpack.c.0.s8 %v1677
    %v1679 = vlaneseq
    %v1680 = vshrl.u32 %v1679, 7
    %v1681 = vsub.s32 %v1678, %v1680
    %v1682 = vrot.slane %v1668, %v1681
    %v1683 = vcombine.high %v1675, %v1675
    %v1684 = vcombine.high %v1682, %v1682
    %v1685 = vcombine.high %v1609, %v1609
    %v1687 = vunpack.c.l.s4 1983009808
    %v1688 = vunpack.c.0.s8 %v1687
    %v1689 = vlaneseq
    %v1690 = vshrl.u32 %v1689, 7
    %v1691 = vsub.s32 %v1688, %v1690
    %v1692 = vrot.slane %v1609, %v1691
    %v1694 = vunpack.c.l.s4 1983009808
    %v1695 = vunpack.c.0.s8 %v1694
    %v1696 = vlaneseq
    %v1697 = vshrl.u32 %v1696, 7
    %v1698 = vsub.s32 %v1695, %v1697
    %v1699 = vrot.slane %v1685, %v1698
    %v1700 = vcombine.high %v1692, %v1692
    %v1701 = vcombine.high %v1699, %v1699
    %v1702 = vcombine.high %v1610, %v1610
    %v1704 = vunpack.c.l.s4 1983009808
    %v1705 = vunpack.c.0.s8 %v1704
    %v1706 = vlaneseq
    %v1707 = vshrl.u32 %v1706, 7
    %v1708 = vsub.s32 %v1705, %v1707
    %v1709 = vrot.slane %v1610, %v1708
    %v1711 = vunpack.c.l.s4 1983009808
    %v1712 = vunpack.c.0.s8 %v1711
    %v1713 = vlaneseq
    %v1714 = vshrl.u32 %v1713, 7
    %v1715 = vsub.s32 %v1712, %v1714
    %v1716 = vrot.slane %v1702, %v1715
    %v1717 = vcombine.high %v1709, %v1709
    %v1718 = vcombine.high %v1716, %v1716
    %v1743 = vpack.c.bf16 %v1624, %v1624
    %v1744 = vpack.c.bf16 %v1632, %v1632
    %v1745 = vpack.c.bf16 %v1631, %v1631
    %v1746 = vpack.c.bf16 %v1633, %v1633
    %v1747 = vpack.c.bf16 %v1641, %v1641
    %v1748 = vpack.c.bf16 %v1649, %v1649
    %v1749 = vpack.c.bf16 %v1648, %v1648
    %v1750 = vpack.c.bf16 %v1650, %v1650
    %v1751 = vpack.c.bf16 %v1658, %v1658
    %v1752 = vpack.c.bf16 %v1666, %v1666
    %v1753 = vpack.c.bf16 %v1665, %v1665
    %v1754 = vpack.c.bf16 %v1667, %v1667
    %v1755 = vpack.c.bf16 %v1675, %v1675
    %v1756 = vpack.c.bf16 %v1683, %v1683
    %v1757 = vpack.c.bf16 %v1682, %v1682
    %v1758 = vpack.c.bf16 %v1684, %v1684
    %v1759 = vpack.c.bf16 %v1692, %v1692
    %v1760 = vpack.c.bf16 %v1700, %v1700
    %v1761 = vpack.c.bf16 %v1699, %v1699
    %v1762 = vpack.c.bf16 %v1701, %v1701
    %v1763 = vpack.c.bf16 %v1709, %v1709
    %v1764 = vpack.c.bf16 %v1717, %v1717
    %v1765 = vpack.c.bf16 %v1716, %v1716
    %v1766 = vpack.c.bf16 %v1718, %v1718
    %v1767 = vld [vmem:[#allocation6] sm:$0xf]
    %v1768 = vld [vmem:[#allocation6 + $0x4] sm:$0xf]
    %v1769 = vld [vmem:[#allocation6 + $0x8] sm:$0xf]
    %v1770 = vld [vmem:[#allocation6 + $0xc] sm:$0xf]
    %v1771 = vld [vmem:[#allocation6 + $0x10] sm:$0xf]
    %v1772 = vld [vmem:[#allocation6 + $0x14] sm:$0xf]
    %v1773 = vld [vmem:[#allocation6 + $0x18] sm:$0xf]
    %v1774 = vld [vmem:[#allocation6 + $0x1c] sm:$0xf]
    %v1775 = vld [vmem:[#allocation6 + $0x20] sm:$0xf]
    %v1776 = vld [vmem:[#allocation6 + $0x24] sm:$0xf]
    %v1777 = vld [vmem:[#allocation6 + $0x28] sm:$0xf]
    %v1778 = vld [vmem:[#allocation6 + $0x2c] sm:$0xf]
    %v1779 = vld [vmem:[#allocation6 + $0x30] sm:$0xf]
    %v1780 = vld [vmem:[#allocation6 + $0x34] sm:$0xf]
    %v1781 = vld [vmem:[#allocation6 + $0x38] sm:$0xf]
    %v1782 = vld [vmem:[#allocation6 + $0x3c] sm:$0xf]
    %v1783 = vld [vmem:[#allocation6 + $0x40] sm:$0xf]
    %v1784 = vld [vmem:[#allocation6 + $0x44] sm:$0xf]
    %v1785 = vld [vmem:[#allocation6 + $0x48] sm:$0xf]
    %v1786 = vld [vmem:[#allocation6 + $0x4c] sm:$0xf]
    %v1787 = vld [vmem:[#allocation6 + $0x50] sm:$0xf]
    %v1788 = vld [vmem:[#allocation6 + $0x54] sm:$0xf]
    %v1789 = vld [vmem:[#allocation6 + $0x58] sm:$0xf]
    %v1790 = vld [vmem:[#allocation6 + $0x5c] sm:$0xf]
    %v1791 = vld [vmem:[#allocation6 + $0x60] sm:$0xf]
    %v1792 = vld [vmem:[#allocation6 + $0x64] sm:$0xf]
    %v1793 = vld [vmem:[#allocation6 + $0x68] sm:$0xf]
    %v1794 = vld [vmem:[#allocation6 + $0x6c] sm:$0xf]
    %v1795 = vld [vmem:[#allocation6 + $0x70] sm:$0xf]
    %v1796 = vld [vmem:[#allocation6 + $0x74] sm:$0xf]
    %v1797 = vld [vmem:[#allocation6 + $0x78] sm:$0xf]
    %v1798 = vld [vmem:[#allocation6 + $0x7c] sm:$0xf]
    %v1799 = vld [vmem:[#allocation6 + $0x80] sm:$0xf]
    %v1800 = vld [vmem:[#allocation6 + $0x84] sm:$0xf]
    %v1801 = vld [vmem:[#allocation6 + $0x88] sm:$0xf]
    %v1802 = vld [vmem:[#allocation6 + $0x8c] sm:$0xf]
    %v1803 = vld [vmem:[#allocation6 + $0x90] sm:$0xf]
    %v1804 = vld [vmem:[#allocation6 + $0x94] sm:$0xf]
    %v1805 = vld [vmem:[#allocation6 + $0x98] sm:$0xf]
    %v1806 = vld [vmem:[#allocation6 + $0x9c] sm:$0xf]
    %v1807 = vld [vmem:[#allocation6 + $0xa0] sm:$0xf]
    %v1808 = vld [vmem:[#allocation6 + $0xa4] sm:$0xf]
    %v1809 = vld [vmem:[#allocation6 + $0xa8] sm:$0xf]
    %v1810 = vld [vmem:[#allocation6 + $0xac] sm:$0xf]
    %v1811 = vld [vmem:[#allocation6 + $0xb0] sm:$0xf]
    %v1812 = vld [vmem:[#allocation6 + $0xb4] sm:$0xf]
    %v1813 = vld [vmem:[#allocation6 + $0xb8] sm:$0xf]
    %v1814 = vld [vmem:[#allocation6 + $0xbc] sm:$0xf]
    %v1815 = vld [vmem:[#allocation6 + $0xc0] sm:$0xf]
    %v1816 = vld [vmem:[#allocation6 + $0xc4] sm:$0xf]
    %v1817 = vld [vmem:[#allocation6 + $0xc8] sm:$0xf]
    %v1818 = vld [vmem:[#allocation6 + $0xcc] sm:$0xf]
    %v1819 = vld [vmem:[#allocation6 + $0xd0] sm:$0xf]
    %v1820 = vld [vmem:[#allocation6 + $0xd4] sm:$0xf]
    %v1821 = vld [vmem:[#allocation6 + $0xd8] sm:$0xf]
    %v1822 = vld [vmem:[#allocation6 + $0xdc] sm:$0xf]
    %v1823 = vld [vmem:[#allocation6 + $0xe0] sm:$0xf]
    %v1824 = vld [vmem:[#allocation6 + $0xe4] sm:$0xf]
    %v1825 = vld [vmem:[#allocation6 + $0xe8] sm:$0xf]
    %v1826 = vld [vmem:[#allocation6 + $0xec] sm:$0xf]
    %v1827 = vld [vmem:[#allocation6 + $0xf0] sm:$0xf]
    %v1828 = vld [vmem:[#allocation6 + $0xf4] sm:$0xf]
    %v1829 = vld [vmem:[#allocation6 + $0xf8] sm:$0xf]
    %v1830 = vld [vmem:[#allocation6 + $0xfc] sm:$0xf]
    %v1831 = vld [vmem:[#allocation6 + $0x100] sm:$0xf]
    %v1832 = vld [vmem:[#allocation6 + $0x104] sm:$0xf]
    %v1833 = vld [vmem:[#allocation6 + $0x108] sm:$0xf]
    %v1834 = vld [vmem:[#allocation6 + $0x10c] sm:$0xf]
    %v1835 = vld [vmem:[#allocation6 + $0x110] sm:$0xf]
    %v1836 = vld [vmem:[#allocation6 + $0x114] sm:$0xf]
    %v1837 = vld [vmem:[#allocation6 + $0x118] sm:$0xf]
    %v1838 = vld [vmem:[#allocation6 + $0x11c] sm:$0xf]
    %v1839 = vld [vmem:[#allocation6 + $0x120] sm:$0xf]
    %v1840 = vld [vmem:[#allocation6 + $0x124] sm:$0xf]
    %v1841 = vld [vmem:[#allocation6 + $0x128] sm:$0xf]
    %v1842 = vld [vmem:[#allocation6 + $0x12c] sm:$0xf]
    %v1843 = vld [vmem:[#allocation6 + $0x130] sm:$0xf]
    %v1844 = vld [vmem:[#allocation6 + $0x134] sm:$0xf]
    %v1845 = vld [vmem:[#allocation6 + $0x138] sm:$0xf]
    %v1846 = vld [vmem:[#allocation6 + $0x13c] sm:$0xf]
    %v1847 = vld [vmem:[#allocation6 + $0x140] sm:$0xf]
    %v1848 = vld [vmem:[#allocation6 + $0x144] sm:$0xf]
    %v1849 = vld [vmem:[#allocation6 + $0x148] sm:$0xf]
    %v1850 = vld [vmem:[#allocation6 + $0x14c] sm:$0xf]
    %v1851 = vld [vmem:[#allocation6 + $0x150] sm:$0xf]
    %v1852 = vld [vmem:[#allocation6 + $0x154] sm:$0xf]
    %v1853 = vld [vmem:[#allocation6 + $0x158] sm:$0xf]
    %v1854 = vld [vmem:[#allocation6 + $0x15c] sm:$0xf]
    %v1855 = vld [vmem:[#allocation6 + $0x160] sm:$0xf]
    %v1856 = vld [vmem:[#allocation6 + $0x164] sm:$0xf]
    %v1857 = vld [vmem:[#allocation6 + $0x168] sm:$0xf]
    %v1858 = vld [vmem:[#allocation6 + $0x16c] sm:$0xf]
    %v1859 = vld [vmem:[#allocation6 + $0x170] sm:$0xf]
    %v1860 = vld [vmem:[#allocation6 + $0x174] sm:$0xf]
    %v1861 = vld [vmem:[#allocation6 + $0x178] sm:$0xf]
    %v1862 = vld [vmem:[#allocation6 + $0x17c] sm:$0xf]
    %v1863 = vld [vmem:[#allocation6 + $0x180] sm:$0xf]
    %v1864 = vld [vmem:[#allocation6 + $0x184] sm:$0xf]
    %v1865 = vld [vmem:[#allocation6 + $0x188] sm:$0xf]
    %v1866 = vld [vmem:[#allocation6 + $0x18c] sm:$0xf]
    %v1867 = vld [vmem:[#allocation6 + $0x190] sm:$0xf]
    %v1868 = vld [vmem:[#allocation6 + $0x194] sm:$0xf]
    %v1869 = vld [vmem:[#allocation6 + $0x198] sm:$0xf]
    %v1870 = vld [vmem:[#allocation6 + $0x19c] sm:$0xf]
    %v1871 = vld [vmem:[#allocation6 + $0x1a0] sm:$0xf]
    %v1872 = vld [vmem:[#allocation6 + $0x1a4] sm:$0xf]
    %v1873 = vld [vmem:[#allocation6 + $0x1a8] sm:$0xf]
    %v1874 = vld [vmem:[#allocation6 + $0x1ac] sm:$0xf]
    %v1875 = vld [vmem:[#allocation6 + $0x1b0] sm:$0xf]
    %v1876 = vld [vmem:[#allocation6 + $0x1b4] sm:$0xf]
    %v1877 = vld [vmem:[#allocation6 + $0x1b8] sm:$0xf]
    %v1878 = vld [vmem:[#allocation6 + $0x1bc] sm:$0xf]
    %v1879 = vld [vmem:[#allocation6 + $0x1c0] sm:$0xf]
    %v1880 = vld [vmem:[#allocation6 + $0x1c4] sm:$0xf]
    %v1881 = vld [vmem:[#allocation6 + $0x1c8] sm:$0xf]
    %v1882 = vld [vmem:[#allocation6 + $0x1cc] sm:$0xf]
    %v1883 = vld [vmem:[#allocation6 + $0x1d0] sm:$0xf]
    %v1884 = vld [vmem:[#allocation6 + $0x1d4] sm:$0xf]
    %v1885 = vld [vmem:[#allocation6 + $0x1d8] sm:$0xf]
    %v1886 = vld [vmem:[#allocation6 + $0x1dc] sm:$0xf]
    %v1887 = vld [vmem:[#allocation6 + $0x1e0] sm:$0xf]
    %v1888 = vld [vmem:[#allocation6 + $0x1e4] sm:$0xf]
    %v1889 = vld [vmem:[#allocation6 + $0x1e8] sm:$0xf]
    %v1890 = vld [vmem:[#allocation6 + $0x1ec] sm:$0xf]
    %v1891 = vld [vmem:[#allocation6 + $0x1f0] sm:$0xf]
    %v1892 = vld [vmem:[#allocation6 + $0x1f4] sm:$0xf]
    %v1893 = vld [vmem:[#allocation6 + $0x1f8] sm:$0xf]
    %v1894 = vld [vmem:[#allocation6 + $0x1fc] sm:$0xf]
    %v1895 = vld [vmem:[#allocation6 + $0x200] sm:$0xf]
    %v1896 = vld [vmem:[#allocation6 + $0x204] sm:$0xf]
    %v1897 = vld [vmem:[#allocation6 + $0x208] sm:$0xf]
    %v1898 = vld [vmem:[#allocation6 + $0x20c] sm:$0xf]
    %v1899 = vld [vmem:[#allocation6 + $0x210] sm:$0xf]
    %v1900 = vld [vmem:[#allocation6 + $0x214] sm:$0xf]
    %v1901 = vld [vmem:[#allocation6 + $0x218] sm:$0xf]
    %v1902 = vld [vmem:[#allocation6 + $0x21c] sm:$0xf]
    %v1903 = vld [vmem:[#allocation6 + $0x220] sm:$0xf]
    %v1904 = vld [vmem:[#allocation6 + $0x224] sm:$0xf]
    %v1905 = vld [vmem:[#allocation6 + $0x228] sm:$0xf]
    %v1906 = vld [vmem:[#allocation6 + $0x22c] sm:$0xf]
    %v1907 = vld [vmem:[#allocation6 + $0x230] sm:$0xf]
    %v1908 = vld [vmem:[#allocation6 + $0x234] sm:$0xf]
    %v1909 = vld [vmem:[#allocation6 + $0x238] sm:$0xf]
    %v1910 = vld [vmem:[#allocation6 + $0x23c] sm:$0xf]
    %v1911 = vld [vmem:[#allocation6 + $0x240] sm:$0xf]
    %v1912 = vld [vmem:[#allocation6 + $0x244] sm:$0xf]
    %v1913 = vld [vmem:[#allocation6 + $0x248] sm:$0xf]
    %v1914 = vld [vmem:[#allocation6 + $0x24c] sm:$0xf]
    %v1915 = vld [vmem:[#allocation6 + $0x250] sm:$0xf]
    %v1916 = vld [vmem:[#allocation6 + $0x254] sm:$0xf]
    %v1917 = vld [vmem:[#allocation6 + $0x258] sm:$0xf]
    %v1918 = vld [vmem:[#allocation6 + $0x25c] sm:$0xf]
    %v1919 = vld [vmem:[#allocation6 + $0x260] sm:$0xf]
    %v1920 = vld [vmem:[#allocation6 + $0x264] sm:$0xf]
    %v1921 = vld [vmem:[#allocation6 + $0x268] sm:$0xf]
    %v1922 = vld [vmem:[#allocation6 + $0x26c] sm:$0xf]
    %v1923 = vld [vmem:[#allocation6 + $0x270] sm:$0xf]
    %v1924 = vld [vmem:[#allocation6 + $0x274] sm:$0xf]
    %v1925 = vld [vmem:[#allocation6 + $0x278] sm:$0xf]
    %v1926 = vld [vmem:[#allocation6 + $0x27c] sm:$0xf]
    %v1927 = vld [vmem:[#allocation6 + $0x280] sm:$0xf]
    %v1928 = vld [vmem:[#allocation6 + $0x284] sm:$0xf]
    %v1929 = vld [vmem:[#allocation6 + $0x288] sm:$0xf]
    %v1930 = vld [vmem:[#allocation6 + $0x28c] sm:$0xf]
    %v1931 = vld [vmem:[#allocation6 + $0x290] sm:$0xf]
    %v1932 = vld [vmem:[#allocation6 + $0x294] sm:$0xf]
    %v1933 = vld [vmem:[#allocation6 + $0x298] sm:$0xf]
    %v1934 = vld [vmem:[#allocation6 + $0x29c] sm:$0xf]
    %v1935 = vld [vmem:[#allocation6 + $0x2a0] sm:$0xf]
    %v1936 = vld [vmem:[#allocation6 + $0x2a4] sm:$0xf]
    %v1937 = vld [vmem:[#allocation6 + $0x2a8] sm:$0xf]
    %v1938 = vld [vmem:[#allocation6 + $0x2ac] sm:$0xf]
    %v1939 = vld [vmem:[#allocation6 + $0x2b0] sm:$0xf]
    %v1940 = vld [vmem:[#allocation6 + $0x2b4] sm:$0xf]
    %v1941 = vld [vmem:[#allocation6 + $0x2b8] sm:$0xf]
    %v1942 = vld [vmem:[#allocation6 + $0x2bc] sm:$0xf]
    %v1943 = vld [vmem:[#allocation6 + $0x2c0] sm:$0xf]
    %v1944 = vld [vmem:[#allocation6 + $0x2c4] sm:$0xf]
    %v1945 = vld [vmem:[#allocation6 + $0x2c8] sm:$0xf]
    %v1946 = vld [vmem:[#allocation6 + $0x2cc] sm:$0xf]
    %v1947 = vld [vmem:[#allocation6 + $0x2d0] sm:$0xf]
    %v1948 = vld [vmem:[#allocation6 + $0x2d4] sm:$0xf]
    %v1949 = vld [vmem:[#allocation6 + $0x2d8] sm:$0xf]
    %v1950 = vld [vmem:[#allocation6 + $0x2dc] sm:$0xf]
    %v1951 = vld [vmem:[#allocation6 + $0x2e0] sm:$0xf]
    %v1952 = vld [vmem:[#allocation6 + $0x2e4] sm:$0xf]
    %v1953 = vld [vmem:[#allocation6 + $0x2e8] sm:$0xf]
    %v1954 = vld [vmem:[#allocation6 + $0x2ec] sm:$0xf]
    %v1955 = vld [vmem:[#allocation6 + $0x2f0] sm:$0xf]
    %v1956 = vld [vmem:[#allocation6 + $0x2f4] sm:$0xf]
    %v1957 = vld [vmem:[#allocation6 + $0x2f8] sm:$0xf]
    %v1958 = vld [vmem:[#allocation6 + $0x2fc] sm:$0xf]
    %v1959 = vld [vmem:[#allocation6 + $0x300] sm:$0xf]
    %v1960 = vld [vmem:[#allocation6 + $0x304] sm:$0xf]
    %v1961 = vld [vmem:[#allocation6 + $0x308] sm:$0xf]
    %v1962 = vld [vmem:[#allocation6 + $0x30c] sm:$0xf]
    %v1963 = vld [vmem:[#allocation6 + $0x310] sm:$0xf]
    %v1964 = vld [vmem:[#allocation6 + $0x314] sm:$0xf]
    %v1965 = vld [vmem:[#allocation6 + $0x318] sm:$0xf]
    %v1966 = vld [vmem:[#allocation6 + $0x31c] sm:$0xf]
    %v1967 = vld [vmem:[#allocation6 + $0x320] sm:$0xf]
    %v1968 = vld [vmem:[#allocation6 + $0x324] sm:$0xf]
    %v1969 = vld [vmem:[#allocation6 + $0x328] sm:$0xf]
    %v1970 = vld [vmem:[#allocation6 + $0x32c] sm:$0xf]
    %v1971 = vld [vmem:[#allocation6 + $0x330] sm:$0xf]
    %v1972 = vld [vmem:[#allocation6 + $0x334] sm:$0xf]
    %v1973 = vld [vmem:[#allocation6 + $0x338] sm:$0xf]
    %v1974 = vld [vmem:[#allocation6 + $0x33c] sm:$0xf]
    %v1975 = vld [vmem:[#allocation6 + $0x340] sm:$0xf]
    %v1976 = vld [vmem:[#allocation6 + $0x344] sm:$0xf]
    %v1977 = vld [vmem:[#allocation6 + $0x348] sm:$0xf]
    %v1978 = vld [vmem:[#allocation6 + $0x34c] sm:$0xf]
    %v1979 = vld [vmem:[#allocation6 + $0x350] sm:$0xf]
    %v1980 = vld [vmem:[#allocation6 + $0x354] sm:$0xf]
    %v1981 = vld [vmem:[#allocation6 + $0x358] sm:$0xf]
    %v1982 = vld [vmem:[#allocation6 + $0x35c] sm:$0xf]
    %v1983 = vld [vmem:[#allocation6 + $0x360] sm:$0xf]
    %v1984 = vld [vmem:[#allocation6 + $0x364] sm:$0xf]
    %v1985 = vld [vmem:[#allocation6 + $0x368] sm:$0xf]
    %v1986 = vld [vmem:[#allocation6 + $0x36c] sm:$0xf]
    %v1987 = vld [vmem:[#allocation6 + $0x370] sm:$0xf]
    %v1988 = vld [vmem:[#allocation6 + $0x374] sm:$0xf]
    %v1989 = vld [vmem:[#allocation6 + $0x378] sm:$0xf]
    %v1990 = vld [vmem:[#allocation6 + $0x37c] sm:$0xf]
    %v1991 = vld [vmem:[#allocation6 + $0x380] sm:$0xf]
    %v1992 = vld [vmem:[#allocation6 + $0x384] sm:$0xf]
    %v1993 = vld [vmem:[#allocation6 + $0x388] sm:$0xf]
    %v1994 = vld [vmem:[#allocation6 + $0x38c] sm:$0xf]
    %v1995 = vld [vmem:[#allocation6 + $0x390] sm:$0xf]
    %v1996 = vld [vmem:[#allocation6 + $0x394] sm:$0xf]
    %v1997 = vld [vmem:[#allocation6 + $0x398] sm:$0xf]
    %v1998 = vld [vmem:[#allocation6 + $0x39c] sm:$0xf]
    %v1999 = vld [vmem:[#allocation6 + $0x3a0] sm:$0xf]
    %v2000 = vld [vmem:[#allocation6 + $0x3a4] sm:$0xf]
    %v2001 = vld [vmem:[#allocation6 + $0x3a8] sm:$0xf]
    %v2002 = vld [vmem:[#allocation6 + $0x3ac] sm:$0xf]
    %v2003 = vld [vmem:[#allocation6 + $0x3b0] sm:$0xf]
    %v2004 = vld [vmem:[#allocation6 + $0x3b4] sm:$0xf]
    %v2005 = vld [vmem:[#allocation6 + $0x3b8] sm:$0xf]
    %v2006 = vld [vmem:[#allocation6 + $0x3bc] sm:$0xf]
    %v2007 = vld [vmem:[#allocation6 + $0x3c0] sm:$0xf]
    %v2008 = vld [vmem:[#allocation6 + $0x3c4] sm:$0xf]
    %v2009 = vld [vmem:[#allocation6 + $0x3c8] sm:$0xf]
    %v2010 = vld [vmem:[#allocation6 + $0x3cc] sm:$0xf]
    %v2011 = vld [vmem:[#allocation6 + $0x3d0] sm:$0xf]
    %v2012 = vld [vmem:[#allocation6 + $0x3d4] sm:$0xf]
    %v2013 = vld [vmem:[#allocation6 + $0x3d8] sm:$0xf]
    %v2014 = vld [vmem:[#allocation6 + $0x3dc] sm:$0xf]
    %v2015 = vld [vmem:[#allocation6 + $0x3e0] sm:$0xf]
    %v2016 = vld [vmem:[#allocation6 + $0x3e4] sm:$0xf]
    %v2017 = vld [vmem:[#allocation6 + $0x3e8] sm:$0xf]
    %v2018 = vld [vmem:[#allocation6 + $0x3ec] sm:$0xf]
    %v2019 = vld [vmem:[#allocation6 + $0x3f0] sm:$0xf]
    %v2020 = vld [vmem:[#allocation6 + $0x3f4] sm:$0xf]
    %v2021 = vld [vmem:[#allocation6 + $0x3f8] sm:$0xf]
    %v2022 = vld [vmem:[#allocation6 + $0x3fc] sm:$0xf]
    %v2023 = vld [vmem:[#allocation6 + $0x400] sm:$0xf]
    %v2024 = vld [vmem:[#allocation6 + $0x404] sm:$0xf]
    %v2025 = vld [vmem:[#allocation6 + $0x408] sm:$0xf]
    %v2026 = vld [vmem:[#allocation6 + $0x40c] sm:$0xf]
    %v2027 = vld [vmem:[#allocation6 + $0x410] sm:$0xf]
    %v2028 = vld [vmem:[#allocation6 + $0x414] sm:$0xf]
    %v2029 = vld [vmem:[#allocation6 + $0x418] sm:$0xf]
    %v2030 = vld [vmem:[#allocation6 + $0x41c] sm:$0xf]
    %v2031 = vld [vmem:[#allocation6 + $0x420] sm:$0xf]
    %v2032 = vld [vmem:[#allocation6 + $0x424] sm:$0xf]
    %v2033 = vld [vmem:[#allocation6 + $0x428] sm:$0xf]
    %v2034 = vld [vmem:[#allocation6 + $0x42c] sm:$0xf]
    %v2035 = vld [vmem:[#allocation6 + $0x430] sm:$0xf]
    %v2036 = vld [vmem:[#allocation6 + $0x434] sm:$0xf]
    %v2037 = vld [vmem:[#allocation6 + $0x438] sm:$0xf]
    %v2038 = vld [vmem:[#allocation6 + $0x43c] sm:$0xf]
    %v2039 = vld [vmem:[#allocation6 + $0x440] sm:$0xf]
    %v2040 = vld [vmem:[#allocation6 + $0x444] sm:$0xf]
    %v2041 = vld [vmem:[#allocation6 + $0x448] sm:$0xf]
    %v2042 = vld [vmem:[#allocation6 + $0x44c] sm:$0xf]
    %v2043 = vld [vmem:[#allocation6 + $0x450] sm:$0xf]
    %v2044 = vld [vmem:[#allocation6 + $0x454] sm:$0xf]
    %v2045 = vld [vmem:[#allocation6 + $0x458] sm:$0xf]
    %v2046 = vld [vmem:[#allocation6 + $0x45c] sm:$0xf]
    %v2047 = vld [vmem:[#allocation6 + $0x460] sm:$0xf]
    %v2048 = vld [vmem:[#allocation6 + $0x464] sm:$0xf]
    %v2049 = vld [vmem:[#allocation6 + $0x468] sm:$0xf]
    %v2050 = vld [vmem:[#allocation6 + $0x46c] sm:$0xf]
    %v2051 = vld [vmem:[#allocation6 + $0x470] sm:$0xf]
    %v2052 = vld [vmem:[#allocation6 + $0x474] sm:$0xf]
    %v2053 = vld [vmem:[#allocation6 + $0x478] sm:$0xf]
    %v2054 = vld [vmem:[#allocation6 + $0x47c] sm:$0xf]
    %v2055 = vld [vmem:[#allocation6 + $0x480] sm:$0xf]
    %v2056 = vld [vmem:[#allocation6 + $0x484] sm:$0xf]
    %v2057 = vld [vmem:[#allocation6 + $0x488] sm:$0xf]
    %v2058 = vld [vmem:[#allocation6 + $0x48c] sm:$0xf]
    %v2059 = vld [vmem:[#allocation6 + $0x490] sm:$0xf]
    %v2060 = vld [vmem:[#allocation6 + $0x494] sm:$0xf]
    %v2061 = vld [vmem:[#allocation6 + $0x498] sm:$0xf]
    %v2062 = vld [vmem:[#allocation6 + $0x49c] sm:$0xf]
    %v2063 = vld [vmem:[#allocation6 + $0x4a0] sm:$0xf]
    %v2064 = vld [vmem:[#allocation6 + $0x4a4] sm:$0xf]
    %v2065 = vld [vmem:[#allocation6 + $0x4a8] sm:$0xf]
    %v2066 = vld [vmem:[#allocation6 + $0x4ac] sm:$0xf]
    %v2067 = vld [vmem:[#allocation6 + $0x4b0] sm:$0xf]
    %v2068 = vld [vmem:[#allocation6 + $0x4b4] sm:$0xf]
    %v2069 = vld [vmem:[#allocation6 + $0x4b8] sm:$0xf]
    %v2070 = vld [vmem:[#allocation6 + $0x4bc] sm:$0xf]
    %v2071 = vld [vmem:[#allocation6 + $0x4c0] sm:$0xf]
    %v2072 = vld [vmem:[#allocation6 + $0x4c4] sm:$0xf]
    %v2073 = vld [vmem:[#allocation6 + $0x4c8] sm:$0xf]
    %v2074 = vld [vmem:[#allocation6 + $0x4cc] sm:$0xf]
    %v2075 = vld [vmem:[#allocation6 + $0x4d0] sm:$0xf]
    %v2076 = vld [vmem:[#allocation6 + $0x4d4] sm:$0xf]
    %v2077 = vld [vmem:[#allocation6 + $0x4d8] sm:$0xf]
    %v2078 = vld [vmem:[#allocation6 + $0x4dc] sm:$0xf]
    %v2079 = vld [vmem:[#allocation6 + $0x4e0] sm:$0xf]
    %v2080 = vld [vmem:[#allocation6 + $0x4e4] sm:$0xf]
    %v2081 = vld [vmem:[#allocation6 + $0x4e8] sm:$0xf]
    %v2082 = vld [vmem:[#allocation6 + $0x4ec] sm:$0xf]
    %v2083 = vld [vmem:[#allocation6 + $0x4f0] sm:$0xf]
    %v2084 = vld [vmem:[#allocation6 + $0x4f4] sm:$0xf]
    %v2085 = vld [vmem:[#allocation6 + $0x4f8] sm:$0xf]
    %v2086 = vld [vmem:[#allocation6 + $0x4fc] sm:$0xf]
    %v2087 = vld [vmem:[#allocation6 + $0x500] sm:$0xf]
    %v2088 = vld [vmem:[#allocation6 + $0x504] sm:$0xf]
    %v2089 = vld [vmem:[#allocation6 + $0x508] sm:$0xf]
    %v2090 = vld [vmem:[#allocation6 + $0x50c] sm:$0xf]
    %v2091 = vld [vmem:[#allocation6 + $0x510] sm:$0xf]
    %v2092 = vld [vmem:[#allocation6 + $0x514] sm:$0xf]
    %v2093 = vld [vmem:[#allocation6 + $0x518] sm:$0xf]
    %v2094 = vld [vmem:[#allocation6 + $0x51c] sm:$0xf]
    %v2095 = vld [vmem:[#allocation6 + $0x520] sm:$0xf]
    %v2096 = vld [vmem:[#allocation6 + $0x524] sm:$0xf]
    %v2097 = vld [vmem:[#allocation6 + $0x528] sm:$0xf]
    %v2098 = vld [vmem:[#allocation6 + $0x52c] sm:$0xf]
    %v2099 = vld [vmem:[#allocation6 + $0x530] sm:$0xf]
    %v2100 = vld [vmem:[#allocation6 + $0x534] sm:$0xf]
    %v2101 = vld [vmem:[#allocation6 + $0x538] sm:$0xf]
    %v2102 = vld [vmem:[#allocation6 + $0x53c] sm:$0xf]
    %v2103 = vld [vmem:[#allocation6 + $0x540] sm:$0xf]
    %v2104 = vld [vmem:[#allocation6 + $0x544] sm:$0xf]
    %v2105 = vld [vmem:[#allocation6 + $0x548] sm:$0xf]
    %v2106 = vld [vmem:[#allocation6 + $0x54c] sm:$0xf]
    %v2107 = vld [vmem:[#allocation6 + $0x550] sm:$0xf]
    %v2108 = vld [vmem:[#allocation6 + $0x554] sm:$0xf]
    %v2109 = vld [vmem:[#allocation6 + $0x558] sm:$0xf]
    %v2110 = vld [vmem:[#allocation6 + $0x55c] sm:$0xf]
    %v2111 = vld [vmem:[#allocation6 + $0x560] sm:$0xf]
    %v2112 = vld [vmem:[#allocation6 + $0x564] sm:$0xf]
    %v2113 = vld [vmem:[#allocation6 + $0x568] sm:$0xf]
    %v2114 = vld [vmem:[#allocation6 + $0x56c] sm:$0xf]
    %v2115 = vld [vmem:[#allocation6 + $0x570] sm:$0xf]
    %v2116 = vld [vmem:[#allocation6 + $0x574] sm:$0xf]
    %v2117 = vld [vmem:[#allocation6 + $0x578] sm:$0xf]
    %v2118 = vld [vmem:[#allocation6 + $0x57c] sm:$0xf]
    %v2119 = vld [vmem:[#allocation6 + $0x580] sm:$0xf]
    %v2120 = vld [vmem:[#allocation6 + $0x584] sm:$0xf]
    %v2121 = vld [vmem:[#allocation6 + $0x588] sm:$0xf]
    %v2122 = vld [vmem:[#allocation6 + $0x58c] sm:$0xf]
    %v2123 = vld [vmem:[#allocation6 + $0x590] sm:$0xf]
    %v2124 = vld [vmem:[#allocation6 + $0x594] sm:$0xf]
    %v2125 = vld [vmem:[#allocation6 + $0x598] sm:$0xf]
    %v2126 = vld [vmem:[#allocation6 + $0x59c] sm:$0xf]
    %v2127 = vld [vmem:[#allocation6 + $0x5a0] sm:$0xf]
    %v2128 = vld [vmem:[#allocation6 + $0x5a4] sm:$0xf]
    %v2129 = vld [vmem:[#allocation6 + $0x5a8] sm:$0xf]
    %v2130 = vld [vmem:[#allocation6 + $0x5ac] sm:$0xf]
    %v2131 = vld [vmem:[#allocation6 + $0x5b0] sm:$0xf]
    %v2132 = vld [vmem:[#allocation6 + $0x5b4] sm:$0xf]
    %v2133 = vld [vmem:[#allocation6 + $0x5b8] sm:$0xf]
    %v2134 = vld [vmem:[#allocation6 + $0x5bc] sm:$0xf]
    %v2135 = vld [vmem:[#allocation6 + $0x5c0] sm:$0xf]
    %v2136 = vld [vmem:[#allocation6 + $0x5c4] sm:$0xf]
    %v2137 = vld [vmem:[#allocation6 + $0x5c8] sm:$0xf]
    %v2138 = vld [vmem:[#allocation6 + $0x5cc] sm:$0xf]
    %v2139 = vld [vmem:[#allocation6 + $0x5d0] sm:$0xf]
    %v2140 = vld [vmem:[#allocation6 + $0x5d4] sm:$0xf]
    %v2141 = vld [vmem:[#allocation6 + $0x5d8] sm:$0xf]
    %v2142 = vld [vmem:[#allocation6 + $0x5dc] sm:$0xf]
    %v2143 = vld [vmem:[#allocation6 + $0x5e0] sm:$0xf]
    %v2144 = vld [vmem:[#allocation6 + $0x5e4] sm:$0xf]
    %v2145 = vld [vmem:[#allocation6 + $0x5e8] sm:$0xf]
    %v2146 = vld [vmem:[#allocation6 + $0x5ec] sm:$0xf]
    %v2147 = vld [vmem:[#allocation6 + $0x5f0] sm:$0xf]
    %v2148 = vld [vmem:[#allocation6 + $0x5f4] sm:$0xf]
    %v2149 = vld [vmem:[#allocation6 + $0x5f8] sm:$0xf]
    %v2150 = vld [vmem:[#allocation6 + $0x5fc] sm:$0xf]
    %v2151 = vld [vmem:[%s7] sm:$0x1]
    %v2153 = vlaneseq
    %v2154 = vshrl.u32 %v2153, 7
    %v2155 = vsub.s32 0, %v2154
    %v2156 = vrot.slane %v2151, %v2155
    %v2542 = vunpack.c.l.b16 %v1767
    %v2543 = vunpack.c.l.b16 %v1768
    %v2544 = vunpack.c.l.b16 %v1769
    %v2545 = vunpack.c.l.b16 %v1770
    %v2546 = vunpack.c.l.b16 %v1771
    %v2547 = vunpack.c.l.b16 %v1772
    %v2548 = vunpack.c.l.b16 %v1773
    %v2549 = vunpack.c.l.b16 %v1774
    %v2550 = vunpack.c.l.b16 %v1775
    %v2551 = vunpack.c.l.b16 %v1776
    %v2552 = vunpack.c.l.b16 %v1777
    %v2553 = vunpack.c.l.b16 %v1778
    %v2554 = vunpack.c.l.b16 %v1779
    %v2555 = vunpack.c.l.b16 %v1780
    %v2556 = vunpack.c.l.b16 %v1781
    %v2557 = vunpack.c.l.b16 %v1782
    %v2558 = vunpack.c.l.b16 %v1783
    %v2559 = vunpack.c.l.b16 %v1784
    %v2560 = vunpack.c.l.b16 %v1785
    %v2561 = vunpack.c.l.b16 %v1786
    %v2562 = vunpack.c.l.b16 %v1787
    %v2563 = vunpack.c.l.b16 %v1788
    %v2564 = vunpack.c.l.b16 %v1789
    %v2565 = vunpack.c.l.b16 %v1790
    %v2566 = vunpack.c.l.b16 %v1791
    %v2567 = vunpack.c.l.b16 %v1792
    %v2568 = vunpack.c.l.b16 %v1793
    %v2569 = vunpack.c.l.b16 %v1794
    %v2570 = vunpack.c.l.b16 %v1795
    %v2571 = vunpack.c.l.b16 %v1796
    %v2572 = vunpack.c.l.b16 %v1797
    %v2573 = vunpack.c.l.b16 %v1798
    %v2574 = vunpack.c.l.b16 %v1799
    %v2575 = vunpack.c.l.b16 %v1800
    %v2576 = vunpack.c.l.b16 %v1801
    %v2577 = vunpack.c.l.b16 %v1802
    %v2578 = vunpack.c.l.b16 %v1803
    %v2579 = vunpack.c.l.b16 %v1804
    %v2580 = vunpack.c.l.b16 %v1805
    %v2581 = vunpack.c.l.b16 %v1806
    %v2582 = vunpack.c.l.b16 %v1807
    %v2583 = vunpack.c.l.b16 %v1808
    %v2584 = vunpack.c.l.b16 %v1809
    %v2585 = vunpack.c.l.b16 %v1810
    %v2586 = vunpack.c.l.b16 %v1811
    %v2587 = vunpack.c.l.b16 %v1812
    %v2588 = vunpack.c.l.b16 %v1813
    %v2589 = vunpack.c.l.b16 %v1814
    %v2590 = vunpack.c.l.b16 %v1815
    %v2591 = vunpack.c.l.b16 %v1816
    %v2592 = vunpack.c.l.b16 %v1817
    %v2593 = vunpack.c.l.b16 %v1818
    %v2594 = vunpack.c.l.b16 %v1819
    %v2595 = vunpack.c.l.b16 %v1820
    %v2596 = vunpack.c.l.b16 %v1821
    %v2597 = vunpack.c.l.b16 %v1822
    %v2598 = vunpack.c.l.b16 %v1823
    %v2599 = vunpack.c.l.b16 %v1824
    %v2600 = vunpack.c.l.b16 %v1825
    %v2601 = vunpack.c.l.b16 %v1826
    %v2602 = vunpack.c.l.b16 %v1827
    %v2603 = vunpack.c.l.b16 %v1828
    %v2604 = vunpack.c.l.b16 %v1829
    %v2605 = vunpack.c.l.b16 %v1830
    %v2606 = vunpack.c.l.b16 %v1831
    %v2607 = vunpack.c.l.b16 %v1832
    %v2608 = vunpack.c.l.b16 %v1833
    %v2609 = vunpack.c.l.b16 %v1834
    %v2610 = vunpack.c.l.b16 %v1835
    %v2611 = vunpack.c.l.b16 %v1836
    %v2612 = vunpack.c.l.b16 %v1837
    %v2613 = vunpack.c.l.b16 %v1838
    %v2614 = vunpack.c.l.b16 %v1839
    %v2615 = vunpack.c.l.b16 %v1840
    %v2616 = vunpack.c.l.b16 %v1841
    %v2617 = vunpack.c.l.b16 %v1842
    %v2618 = vunpack.c.l.b16 %v1843
    %v2619 = vunpack.c.l.b16 %v1844
    %v2620 = vunpack.c.l.b16 %v1845
    %v2621 = vunpack.c.l.b16 %v1846
    %v2622 = vunpack.c.l.b16 %v1847
    %v2623 = vunpack.c.l.b16 %v1848
    %v2624 = vunpack.c.l.b16 %v1849
    %v2625 = vunpack.c.l.b16 %v1850
    %v2626 = vunpack.c.l.b16 %v1851
    %v2627 = vunpack.c.l.b16 %v1852
    %v2628 = vunpack.c.l.b16 %v1853
    %v2629 = vunpack.c.l.b16 %v1854
    %v2630 = vunpack.c.l.b16 %v1855
    %v2631 = vunpack.c.l.b16 %v1856
    %v2632 = vunpack.c.l.b16 %v1857
    %v2633 = vunpack.c.l.b16 %v1858
    %v2634 = vunpack.c.l.b16 %v1859
    %v2635 = vunpack.c.l.b16 %v1860
    %v2636 = vunpack.c.l.b16 %v1861
    %v2637 = vunpack.c.l.b16 %v1862
    %v2638 = vunpack.c.l.b16 %v1863
    %v2639 = vunpack.c.l.b16 %v1864
    %v2640 = vunpack.c.l.b16 %v1865
    %v2641 = vunpack.c.l.b16 %v1866
    %v2642 = vunpack.c.l.b16 %v1867
    %v2643 = vunpack.c.l.b16 %v1868
    %v2644 = vunpack.c.l.b16 %v1869
    %v2645 = vunpack.c.l.b16 %v1870
    %v2646 = vunpack.c.l.b16 %v1871
    %v2647 = vunpack.c.l.b16 %v1872
    %v2648 = vunpack.c.l.b16 %v1873
    %v2649 = vunpack.c.l.b16 %v1874
    %v2650 = vunpack.c.l.b16 %v1875
    %v2651 = vunpack.c.l.b16 %v1876
    %v2652 = vunpack.c.l.b16 %v1877
    %v2653 = vunpack.c.l.b16 %v1878
    %v2654 = vunpack.c.l.b16 %v1879
    %v2655 = vunpack.c.l.b16 %v1880
    %v2656 = vunpack.c.l.b16 %v1881
    %v2657 = vunpack.c.l.b16 %v1882
    %v2658 = vunpack.c.l.b16 %v1883
    %v2659 = vunpack.c.l.b16 %v1884
    %v2660 = vunpack.c.l.b16 %v1885
    %v2661 = vunpack.c.l.b16 %v1886
    %v2662 = vunpack.c.l.b16 %v1887
    %v2663 = vunpack.c.l.b16 %v1888
    %v2664 = vunpack.c.l.b16 %v1889
    %v2665 = vunpack.c.l.b16 %v1890
    %v2666 = vunpack.c.l.b16 %v1891
    %v2667 = vunpack.c.l.b16 %v1892
    %v2668 = vunpack.c.l.b16 %v1893
    %v2669 = vunpack.c.l.b16 %v1894
    %v2670 = vunpack.c.l.b16 %v1895
    %v2671 = vunpack.c.l.b16 %v1896
    %v2672 = vunpack.c.l.b16 %v1897
    %v2673 = vunpack.c.l.b16 %v1898
    %v2674 = vunpack.c.l.b16 %v1899
    %v2675 = vunpack.c.l.b16 %v1900
    %v2676 = vunpack.c.l.b16 %v1901
    %v2677 = vunpack.c.l.b16 %v1902
    %v2678 = vunpack.c.l.b16 %v1903
    %v2679 = vunpack.c.l.b16 %v1904
    %v2680 = vunpack.c.l.b16 %v1905
    %v2681 = vunpack.c.l.b16 %v1906
    %v2682 = vunpack.c.l.b16 %v1907
    %v2683 = vunpack.c.l.b16 %v1908
    %v2684 = vunpack.c.l.b16 %v1909
    %v2685 = vunpack.c.l.b16 %v1910
    %v2686 = vunpack.c.l.b16 %v1911
    %v2687 = vunpack.c.l.b16 %v1912
    %v2688 = vunpack.c.l.b16 %v1913
    %v2689 = vunpack.c.l.b16 %v1914
    %v2690 = vunpack.c.l.b16 %v1915
    %v2691 = vunpack.c.l.b16 %v1916
    %v2692 = vunpack.c.l.b16 %v1917
    %v2693 = vunpack.c.l.b16 %v1918
    %v2694 = vunpack.c.l.b16 %v1919
    %v2695 = vunpack.c.l.b16 %v1920
    %v2696 = vunpack.c.l.b16 %v1921
    %v2697 = vunpack.c.l.b16 %v1922
    %v2698 = vunpack.c.l.b16 %v1923
    %v2699 = vunpack.c.l.b16 %v1924
    %v2700 = vunpack.c.l.b16 %v1925
    %v2701 = vunpack.c.l.b16 %v1926
    %v2702 = vunpack.c.l.b16 %v1927
    %v2703 = vunpack.c.l.b16 %v1928
    %v2704 = vunpack.c.l.b16 %v1929
    %v2705 = vunpack.c.l.b16 %v1930
    %v2706 = vunpack.c.l.b16 %v1931
    %v2707 = vunpack.c.l.b16 %v1932
    %v2708 = vunpack.c.l.b16 %v1933
    %v2709 = vunpack.c.l.b16 %v1934
    %v2710 = vunpack.c.l.b16 %v1935
    %v2711 = vunpack.c.l.b16 %v1936
    %v2712 = vunpack.c.l.b16 %v1937
    %v2713 = vunpack.c.l.b16 %v1938
    %v2714 = vunpack.c.l.b16 %v1939
    %v2715 = vunpack.c.l.b16 %v1940
    %v2716 = vunpack.c.l.b16 %v1941
    %v2717 = vunpack.c.l.b16 %v1942
    %v2718 = vunpack.c.l.b16 %v1943
    %v2719 = vunpack.c.l.b16 %v1944
    %v2720 = vunpack.c.l.b16 %v1945
    %v2721 = vunpack.c.l.b16 %v1946
    %v2722 = vunpack.c.l.b16 %v1947
    %v2723 = vunpack.c.l.b16 %v1948
    %v2724 = vunpack.c.l.b16 %v1949
    %v2725 = vunpack.c.l.b16 %v1950
    %v2726 = vunpack.c.l.b16 %v1951
    %v2727 = vunpack.c.l.b16 %v1952
    %v2728 = vunpack.c.l.b16 %v1953
    %v2729 = vunpack.c.l.b16 %v1954
    %v2730 = vunpack.c.l.b16 %v1955
    %v2731 = vunpack.c.l.b16 %v1956
    %v2732 = vunpack.c.l.b16 %v1957
    %v2733 = vunpack.c.l.b16 %v1958
    %v2734 = vunpack.c.l.b16 %v1959
    %v2735 = vunpack.c.l.b16 %v1960
    %v2736 = vunpack.c.l.b16 %v1961
    %v2737 = vunpack.c.l.b16 %v1962
    %v2738 = vunpack.c.l.b16 %v1963
    %v2739 = vunpack.c.l.b16 %v1964
    %v2740 = vunpack.c.l.b16 %v1965
    %v2741 = vunpack.c.l.b16 %v1966
    %v2742 = vunpack.c.l.b16 %v1967
    %v2743 = vunpack.c.l.b16 %v1968
    %v2744 = vunpack.c.l.b16 %v1969
    %v2745 = vunpack.c.l.b16 %v1970
    %v2746 = vunpack.c.l.b16 %v1971
    %v2747 = vunpack.c.l.b16 %v1972
    %v2748 = vunpack.c.l.b16 %v1973
    %v2749 = vunpack.c.l.b16 %v1974
    %v2750 = vunpack.c.l.b16 %v1975
    %v2751 = vunpack.c.l.b16 %v1976
    %v2752 = vunpack.c.l.b16 %v1977
    %v2753 = vunpack.c.l.b16 %v1978
    %v2754 = vunpack.c.l.b16 %v1979
    %v2755 = vunpack.c.l.b16 %v1980
    %v2756 = vunpack.c.l.b16 %v1981
    %v2757 = vunpack.c.l.b16 %v1982
    %v2758 = vunpack.c.l.b16 %v1983
    %v2759 = vunpack.c.l.b16 %v1984
    %v2760 = vunpack.c.l.b16 %v1985
    %v2761 = vunpack.c.l.b16 %v1986
    %v2762 = vunpack.c.l.b16 %v1987
    %v2763 = vunpack.c.l.b16 %v1988
    %v2764 = vunpack.c.l.b16 %v1989
    %v2765 = vunpack.c.l.b16 %v1990
    %v2766 = vunpack.c.l.b16 %v1991
    %v2767 = vunpack.c.l.b16 %v1992
    %v2768 = vunpack.c.l.b16 %v1993
    %v2769 = vunpack.c.l.b16 %v1994
    %v2770 = vunpack.c.l.b16 %v1995
    %v2771 = vunpack.c.l.b16 %v1996
    %v2772 = vunpack.c.l.b16 %v1997
    %v2773 = vunpack.c.l.b16 %v1998
    %v2774 = vunpack.c.l.b16 %v1999
    %v2775 = vunpack.c.l.b16 %v2000
    %v2776 = vunpack.c.l.b16 %v2001
    %v2777 = vunpack.c.l.b16 %v2002
    %v2778 = vunpack.c.l.b16 %v2003
    %v2779 = vunpack.c.l.b16 %v2004
    %v2780 = vunpack.c.l.b16 %v2005
    %v2781 = vunpack.c.l.b16 %v2006
    %v2782 = vunpack.c.l.b16 %v2007
    %v2783 = vunpack.c.l.b16 %v2008
    %v2784 = vunpack.c.l.b16 %v2009
    %v2785 = vunpack.c.l.b16 %v2010
    %v2786 = vunpack.c.l.b16 %v2011
    %v2787 = vunpack.c.l.b16 %v2012
    %v2788 = vunpack.c.l.b16 %v2013
    %v2789 = vunpack.c.l.b16 %v2014
    %v2790 = vunpack.c.l.b16 %v2015
    %v2791 = vunpack.c.l.b16 %v2016
    %v2792 = vunpack.c.l.b16 %v2017
    %v2793 = vunpack.c.l.b16 %v2018
    %v2794 = vunpack.c.l.b16 %v2019
    %v2795 = vunpack.c.l.b16 %v2020
    %v2796 = vunpack.c.l.b16 %v2021
    %v2797 = vunpack.c.l.b16 %v2022
    %v2798 = vunpack.c.l.b16 %v2023
    %v2799 = vunpack.c.l.b16 %v2024
    %v2800 = vunpack.c.l.b16 %v2025
    %v2801 = vunpack.c.l.b16 %v2026
    %v2802 = vunpack.c.l.b16 %v2027
    %v2803 = vunpack.c.l.b16 %v2028
    %v2804 = vunpack.c.l.b16 %v2029
    %v2805 = vunpack.c.l.b16 %v2030
    %v2806 = vunpack.c.l.b16 %v2031
    %v2807 = vunpack.c.l.b16 %v2032
    %v2808 = vunpack.c.l.b16 %v2033
    %v2809 = vunpack.c.l.b16 %v2034
    %v2810 = vunpack.c.l.b16 %v2035
    %v2811 = vunpack.c.l.b16 %v2036
    %v2812 = vunpack.c.l.b16 %v2037
    %v2813 = vunpack.c.l.b16 %v2038
    %v2814 = vunpack.c.l.b16 %v2039
    %v2815 = vunpack.c.l.b16 %v2040
    %v2816 = vunpack.c.l.b16 %v2041
    %v2817 = vunpack.c.l.b16 %v2042
    %v2818 = vunpack.c.l.b16 %v2043
    %v2819 = vunpack.c.l.b16 %v2044
    %v2820 = vunpack.c.l.b16 %v2045
    %v2821 = vunpack.c.l.b16 %v2046
    %v2822 = vunpack.c.l.b16 %v2047
    %v2823 = vunpack.c.l.b16 %v2048
    %v2824 = vunpack.c.l.b16 %v2049
    %v2825 = vunpack.c.l.b16 %v2050
    %v2826 = vunpack.c.l.b16 %v2051
    %v2827 = vunpack.c.l.b16 %v2052
    %v2828 = vunpack.c.l.b16 %v2053
    %v2829 = vunpack.c.l.b16 %v2054
    %v2830 = vunpack.c.l.b16 %v2055
    %v2831 = vunpack.c.l.b16 %v2056
    %v2832 = vunpack.c.l.b16 %v2057
    %v2833 = vunpack.c.l.b16 %v2058
    %v2834 = vunpack.c.l.b16 %v2059
    %v2835 = vunpack.c.l.b16 %v2060
    %v2836 = vunpack.c.l.b16 %v2061
    %v2837 = vunpack.c.l.b16 %v2062
    %v2838 = vunpack.c.l.b16 %v2063
    %v2839 = vunpack.c.l.b16 %v2064
    %v2840 = vunpack.c.l.b16 %v2065
    %v2841 = vunpack.c.l.b16 %v2066
    %v2842 = vunpack.c.l.b16 %v2067
    %v2843 = vunpack.c.l.b16 %v2068
    %v2844 = vunpack.c.l.b16 %v2069
    %v2845 = vunpack.c.l.b16 %v2070
    %v2846 = vunpack.c.l.b16 %v2071
    %v2847 = vunpack.c.l.b16 %v2072
    %v2848 = vunpack.c.l.b16 %v2073
    %v2849 = vunpack.c.l.b16 %v2074
    %v2850 = vunpack.c.l.b16 %v2075
    %v2851 = vunpack.c.l.b16 %v2076
    %v2852 = vunpack.c.l.b16 %v2077
    %v2853 = vunpack.c.l.b16 %v2078
    %v2854 = vunpack.c.l.b16 %v2079
    %v2855 = vunpack.c.l.b16 %v2080
    %v2856 = vunpack.c.l.b16 %v2081
    %v2857 = vunpack.c.l.b16 %v2082
    %v2858 = vunpack.c.l.b16 %v2083
    %v2859 = vunpack.c.l.b16 %v2084
    %v2860 = vunpack.c.l.b16 %v2085
    %v2861 = vunpack.c.l.b16 %v2086
    %v2862 = vunpack.c.l.b16 %v2087
    %v2863 = vunpack.c.l.b16 %v2088
    %v2864 = vunpack.c.l.b16 %v2089
    %v2865 = vunpack.c.l.b16 %v2090
    %v2866 = vunpack.c.l.b16 %v2091
    %v2867 = vunpack.c.l.b16 %v2092
    %v2868 = vunpack.c.l.b16 %v2093
    %v2869 = vunpack.c.l.b16 %v2094
    %v2870 = vunpack.c.l.b16 %v2095
    %v2871 = vunpack.c.l.b16 %v2096
    %v2872 = vunpack.c.l.b16 %v2097
    %v2873 = vunpack.c.l.b16 %v2098
    %v2874 = vunpack.c.l.b16 %v2099
    %v2875 = vunpack.c.l.b16 %v2100
    %v2876 = vunpack.c.l.b16 %v2101
    %v2877 = vunpack.c.l.b16 %v2102
    %v2878 = vunpack.c.l.b16 %v2103
    %v2879 = vunpack.c.l.b16 %v2104
    %v2880 = vunpack.c.l.b16 %v2105
    %v2881 = vunpack.c.l.b16 %v2106
    %v2882 = vunpack.c.l.b16 %v2107
    %v2883 = vunpack.c.l.b16 %v2108
    %v2884 = vunpack.c.l.b16 %v2109
    %v2885 = vunpack.c.l.b16 %v2110
    %v2886 = vunpack.c.l.b16 %v2111
    %v2887 = vunpack.c.l.b16 %v2112
    %v2888 = vunpack.c.l.b16 %v2113
    %v2889 = vunpack.c.l.b16 %v2114
    %v2890 = vunpack.c.l.b16 %v2115
    %v2891 = vunpack.c.l.b16 %v2116
    %v2892 = vunpack.c.l.b16 %v2117
    %v2893 = vunpack.c.l.b16 %v2118
    %v2894 = vunpack.c.l.b16 %v2119
    %v2895 = vunpack.c.l.b16 %v2120
    %v2896 = vunpack.c.l.b16 %v2121
    %v2897 = vunpack.c.l.b16 %v2122
    %v2898 = vunpack.c.l.b16 %v2123
    %v2899 = vunpack.c.l.b16 %v2124
    %v2900 = vunpack.c.l.b16 %v2125
    %v2901 = vunpack.c.l.b16 %v2126
    %v2902 = vunpack.c.l.b16 %v2127
    %v2903 = vunpack.c.l.b16 %v2128
    %v2904 = vunpack.c.l.b16 %v2129
    %v2905 = vunpack.c.l.b16 %v2130
    %v2906 = vunpack.c.l.b16 %v2131
    %v2907 = vunpack.c.l.b16 %v2132
    %v2908 = vunpack.c.l.b16 %v2133
    %v2909 = vunpack.c.l.b16 %v2134
    %v2910 = vunpack.c.l.b16 %v2135
    %v2911 = vunpack.c.l.b16 %v2136
    %v2912 = vunpack.c.l.b16 %v2137
    %v2913 = vunpack.c.l.b16 %v2138
    %v2914 = vunpack.c.l.b16 %v2139
    %v2915 = vunpack.c.l.b16 %v2140
    %v2916 = vunpack.c.l.b16 %v2141
    %v2917 = vunpack.c.l.b16 %v2142
    %v2918 = vunpack.c.l.b16 %v2143
    %v2919 = vunpack.c.l.b16 %v2144
    %v2920 = vunpack.c.l.b16 %v2145
    %v2921 = vunpack.c.l.b16 %v2146
    %v2922 = vunpack.c.l.b16 %v2147
    %v2923 = vunpack.c.l.b16 %v2148
    %v2924 = vunpack.c.l.b16 %v2149
    %v2925 = vunpack.c.l.b16 %v2150
    %v2926 = vpack.c.b16 %v2543, %v2542
    %v2927 = vpack.c.b16 %v2545, %v2544
    %v2928 = vpack.c.b16 %v2547, %v2546
    %v2929 = vpack.c.b16 %v2549, %v2548
    %v2930 = vpack.c.b16 %v2551, %v2550
    %v2931 = vpack.c.b16 %v2553, %v2552
    %v2932 = vpack.c.b16 %v2555, %v2554
    %v2933 = vpack.c.b16 %v2557, %v2556
    %v2934 = vpack.c.b16 %v2559, %v2558
    %v2935 = vpack.c.b16 %v2561, %v2560
    %v2936 = vpack.c.b16 %v2563, %v2562
    %v2937 = vpack.c.b16 %v2565, %v2564
    %v2938 = vpack.c.b16 %v2567, %v2566
    %v2939 = vpack.c.b16 %v2569, %v2568
    %v2940 = vpack.c.b16 %v2571, %v2570
    %v2941 = vpack.c.b16 %v2573, %v2572
    %v2942 = vpack.c.b16 %v2575, %v2574
    %v2943 = vpack.c.b16 %v2577, %v2576
    %v2944 = vpack.c.b16 %v2579, %v2578
    %v2945 = vpack.c.b16 %v2581, %v2580
    %v2946 = vpack.c.b16 %v2583, %v2582
    %v2947 = vpack.c.b16 %v2585, %v2584
    %v2948 = vpack.c.b16 %v2587, %v2586
    %v2949 = vpack.c.b16 %v2589, %v2588
    %v2950 = vpack.c.b16 %v2591, %v2590
    %v2951 = vpack.c.b16 %v2593, %v2592
    %v2952 = vpack.c.b16 %v2595, %v2594
    %v2953 = vpack.c.b16 %v2597, %v2596
    %v2954 = vpack.c.b16 %v2599, %v2598
    %v2955 = vpack.c.b16 %v2601, %v2600
    %v2956 = vpack.c.b16 %v2603, %v2602
    %v2957 = vpack.c.b16 %v2605, %v2604
    %v2958 = vpack.c.b16 %v2607, %v2606
    %v2959 = vpack.c.b16 %v2609, %v2608
    %v2960 = vpack.c.b16 %v2611, %v2610
    %v2961 = vpack.c.b16 %v2613, %v2612
    %v2962 = vpack.c.b16 %v2615, %v2614
    %v2963 = vpack.c.b16 %v2617, %v2616
    %v2964 = vpack.c.b16 %v2619, %v2618
    %v2965 = vpack.c.b16 %v2621, %v2620
    %v2966 = vpack.c.b16 %v2623, %v2622
    %v2967 = vpack.c.b16 %v2625, %v2624
    %v2968 = vpack.c.b16 %v2627, %v2626
    %v2969 = vpack.c.b16 %v2629, %v2628
    %v2970 = vpack.c.b16 %v2631, %v2630
    %v2971 = vpack.c.b16 %v2633, %v2632
    %v2972 = vpack.c.b16 %v2635, %v2634
    %v2973 = vpack.c.b16 %v2637, %v2636
    %v2974 = vpack.c.b16 %v2639, %v2638
    %v2975 = vpack.c.b16 %v2641, %v2640
    %v2976 = vpack.c.b16 %v2643, %v2642
    %v2977 = vpack.c.b16 %v2645, %v2644
    %v2978 = vpack.c.b16 %v2647, %v2646
    %v2979 = vpack.c.b16 %v2649, %v2648
    %v2980 = vpack.c.b16 %v2651, %v2650
    %v2981 = vpack.c.b16 %v2653, %v2652
    %v2982 = vpack.c.b16 %v2655, %v2654
    %v2983 = vpack.c.b16 %v2657, %v2656
    %v2984 = vpack.c.b16 %v2659, %v2658
    %v2985 = vpack.c.b16 %v2661, %v2660
    %v2986 = vpack.c.b16 %v2663, %v2662
    %v2987 = vpack.c.b16 %v2665, %v2664
    %v2988 = vpack.c.b16 %v2667, %v2666
    %v2989 = vpack.c.b16 %v2669, %v2668
    %v2990 = vpack.c.b16 %v2671, %v2670
    %v2991 = vpack.c.b16 %v2673, %v2672
    %v2992 = vpack.c.b16 %v2675, %v2674
    %v2993 = vpack.c.b16 %v2677, %v2676
    %v2994 = vpack.c.b16 %v2679, %v2678
    %v2995 = vpack.c.b16 %v2681, %v2680
    %v2996 = vpack.c.b16 %v2683, %v2682
    %v2997 = vpack.c.b16 %v2685, %v2684
    %v2998 = vpack.c.b16 %v2687, %v2686
    %v2999 = vpack.c.b16 %v2689, %v2688
    %v3000 = vpack.c.b16 %v2691, %v2690
    %v3001 = vpack.c.b16 %v2693, %v2692
    %v3002 = vpack.c.b16 %v2695, %v2694
    %v3003 = vpack.c.b16 %v2697, %v2696
    %v3004 = vpack.c.b16 %v2699, %v2698
    %v3005 = vpack.c.b16 %v2701, %v2700
    %v3006 = vpack.c.b16 %v2703, %v2702
    %v3007 = vpack.c.b16 %v2705, %v2704
    %v3008 = vpack.c.b16 %v2707, %v2706
    %v3009 = vpack.c.b16 %v2709, %v2708
    %v3010 = vpack.c.b16 %v2711, %v2710
    %v3011 = vpack.c.b16 %v2713, %v2712
    %v3012 = vpack.c.b16 %v2715, %v2714
    %v3013 = vpack.c.b16 %v2717, %v2716
    %v3014 = vpack.c.b16 %v2719, %v2718
    %v3015 = vpack.c.b16 %v2721, %v2720
    %v3016 = vpack.c.b16 %v2723, %v2722
    %v3017 = vpack.c.b16 %v2725, %v2724
    %v3018 = vpack.c.b16 %v2727, %v2726
    %v3019 = vpack.c.b16 %v2729, %v2728
    %v3020 = vpack.c.b16 %v2731, %v2730
    %v3021 = vpack.c.b16 %v2733, %v2732
    %v3022 = vpack.c.b16 %v2735, %v2734
    %v3023 = vpack.c.b16 %v2737, %v2736
    %v3024 = vpack.c.b16 %v2739, %v2738
    %v3025 = vpack.c.b16 %v2741, %v2740
    %v3026 = vpack.c.b16 %v2743, %v2742
    %v3027 = vpack.c.b16 %v2745, %v2744
    %v3028 = vpack.c.b16 %v2747, %v2746
    %v3029 = vpack.c.b16 %v2749, %v2748
    %v3030 = vpack.c.b16 %v2751, %v2750
    %v3031 = vpack.c.b16 %v2753, %v2752
    %v3032 = vpack.c.b16 %v2755, %v2754
    %v3033 = vpack.c.b16 %v2757, %v2756
    %v3034 = vpack.c.b16 %v2759, %v2758
    %v3035 = vpack.c.b16 %v2761, %v2760
    %v3036 = vpack.c.b16 %v2763, %v2762
    %v3037 = vpack.c.b16 %v2765, %v2764
    %v3038 = vpack.c.b16 %v2767, %v2766
    %v3039 = vpack.c.b16 %v2769, %v2768
    %v3040 = vpack.c.b16 %v2771, %v2770
    %v3041 = vpack.c.b16 %v2773, %v2772
    %v3042 = vpack.c.b16 %v2775, %v2774
    %v3043 = vpack.c.b16 %v2777, %v2776
    %v3044 = vpack.c.b16 %v2779, %v2778
    %v3045 = vpack.c.b16 %v2781, %v2780
    %v3046 = vpack.c.b16 %v2783, %v2782
    %v3047 = vpack.c.b16 %v2785, %v2784
    %v3048 = vpack.c.b16 %v2787, %v2786
    %v3049 = vpack.c.b16 %v2789, %v2788
    %v3050 = vpack.c.b16 %v2791, %v2790
    %v3051 = vpack.c.b16 %v2793, %v2792
    %v3052 = vpack.c.b16 %v2795, %v2794
    %v3053 = vpack.c.b16 %v2797, %v2796
    %v3054 = vpack.c.b16 %v2799, %v2798
    %v3055 = vpack.c.b16 %v2801, %v2800
    %v3056 = vpack.c.b16 %v2803, %v2802
    %v3057 = vpack.c.b16 %v2805, %v2804
    %v3058 = vpack.c.b16 %v2807, %v2806
    %v3059 = vpack.c.b16 %v2809, %v2808
    %v3060 = vpack.c.b16 %v2811, %v2810
    %v3061 = vpack.c.b16 %v2813, %v2812
    %v3062 = vpack.c.b16 %v2815, %v2814
    %v3063 = vpack.c.b16 %v2817, %v2816
    %v3064 = vpack.c.b16 %v2819, %v2818
    %v3065 = vpack.c.b16 %v2821, %v2820
    %v3066 = vpack.c.b16 %v2823, %v2822
    %v3067 = vpack.c.b16 %v2825, %v2824
    %v3068 = vpack.c.b16 %v2827, %v2826
    %v3069 = vpack.c.b16 %v2829, %v2828
    %v3070 = vpack.c.b16 %v2831, %v2830
    %v3071 = vpack.c.b16 %v2833, %v2832
    %v3072 = vpack.c.b16 %v2835, %v2834
    %v3073 = vpack.c.b16 %v2837, %v2836
    %v3074 = vpack.c.b16 %v2839, %v2838
    %v3075 = vpack.c.b16 %v2841, %v2840
    %v3076 = vpack.c.b16 %v2843, %v2842
    %v3077 = vpack.c.b16 %v2845, %v2844
    %v3078 = vpack.c.b16 %v2847, %v2846
    %v3079 = vpack.c.b16 %v2849, %v2848
    %v3080 = vpack.c.b16 %v2851, %v2850
    %v3081 = vpack.c.b16 %v2853, %v2852
    %v3082 = vpack.c.b16 %v2855, %v2854
    %v3083 = vpack.c.b16 %v2857, %v2856
    %v3084 = vpack.c.b16 %v2859, %v2858
    %v3085 = vpack.c.b16 %v2861, %v2860
    %v3086 = vpack.c.b16 %v2863, %v2862
    %v3087 = vpack.c.b16 %v2865, %v2864
    %v3088 = vpack.c.b16 %v2867, %v2866
    %v3089 = vpack.c.b16 %v2869, %v2868
    %v3090 = vpack.c.b16 %v2871, %v2870
    %v3091 = vpack.c.b16 %v2873, %v2872
    %v3092 = vpack.c.b16 %v2875, %v2874
    %v3093 = vpack.c.b16 %v2877, %v2876
    %v3094 = vpack.c.b16 %v2879, %v2878
    %v3095 = vpack.c.b16 %v2881, %v2880
    %v3096 = vpack.c.b16 %v2883, %v2882
    %v3097 = vpack.c.b16 %v2885, %v2884
    %v3098 = vpack.c.b16 %v2887, %v2886
    %v3099 = vpack.c.b16 %v2889, %v2888
    %v3100 = vpack.c.b16 %v2891, %v2890
    %v3101 = vpack.c.b16 %v2893, %v2892
    %v3102 = vpack.c.b16 %v2895, %v2894
    %v3103 = vpack.c.b16 %v2897, %v2896
    %v3104 = vpack.c.b16 %v2899, %v2898
    %v3105 = vpack.c.b16 %v2901, %v2900
    %v3106 = vpack.c.b16 %v2903, %v2902
    %v3107 = vpack.c.b16 %v2905, %v2904
    %v3108 = vpack.c.b16 %v2907, %v2906
    %v3109 = vpack.c.b16 %v2909, %v2908
    %v3110 = vpack.c.b16 %v2911, %v2910
    %v3111 = vpack.c.b16 %v2913, %v2912
    %v3112 = vpack.c.b16 %v2915, %v2914
    %v3113 = vpack.c.b16 %v2917, %v2916
    %v3114 = vpack.c.b16 %v2919, %v2918
    %v3115 = vpack.c.b16 %v2921, %v2920
    %v3116 = vpack.c.b16 %v2923, %v2922
    %v3117 = vpack.c.b16 %v2925, %v2924
    %3310 = vmatprep.subr.bf16.mxu0 0
    %3311 = vmatpush1.bf16.msra.mxu0 %v2933
    %3312 = vmatprep.subr.bf16.mxu0 0
    %3313 = vmatpush1.bf16.msra.mxu0 %v2932
    %3314 = vmatprep.subr.bf16.mxu0 0
    %3315 = vmatpush1.bf16.msra.mxu0 %v2931
    %3316 = vmatprep.subr.bf16.mxu0 0
    %3317 = vmatpush1.bf16.msra.mxu0 %v2930
    %3318 = vmatprep.subr.bf16.mxu0 0
    %3319 = vmatpush1.bf16.msra.mxu0 %v2929
    %3320 = vmatprep.subr.bf16.mxu0 0
    %3321 = vmatpush1.bf16.msra.mxu0 %v2928
    %3322 = vmatprep.subr.bf16.mxu0 0
    %3323 = vmatpush1.bf16.msra.mxu0 %v2927
    %3324 = vmatprep.subr.bf16.mxu0 0
    %3325 = vmatpush1.bf16.msra.mxu0 %v2926
    %3326 = vmatprep.subr.bf16.mxu0 0
    %3327 = vmatpush2.bf16.msra.mxu0 %v2941
    %3328 = vmatprep.subr.bf16.mxu0 0
    %3329 = vmatpush2.bf16.msra.mxu0 %v2940
    %3330 = vmatprep.subr.bf16.mxu0 0
    %3331 = vmatpush2.bf16.msra.mxu0 %v2939
    %3332 = vmatprep.subr.bf16.mxu0 0
    %3333 = vmatpush2.bf16.msra.mxu0 %v2938
    %3334 = vmatprep.subr.bf16.mxu0 0
    %3335 = vmatpush2.bf16.msra.mxu0 %v2937
    %3336 = vmatprep.subr.bf16.mxu0 0
    %3337 = vmatpush2.bf16.msra.mxu0 %v2936
    %3338 = vmatprep.subr.bf16.mxu0 0
    %3339 = vmatpush2.bf16.msra.mxu0 %v2935
    %3340 = vmatprep.subr.bf16.mxu0 0
    %3341 = vmatpush2.bf16.msra.mxu0 %v2934
    %3342 = vmatprep.mubr.bf16.mxu0 %v1744
    %3343 = vmatmul.mubr.bf16.gmra.mxu0 %v1743
    %v3344 = vpop.f32.mrf.mxu0
    %v3345 = vadd.f32 %v2156, %v3344
    %v3346 = vpop.f32.mrf.mxu0
    %v3347 = vpop.f32.mrf.mxu0
    %v3348 = vpop.f32.mrf.mxu0
    %3349 = vdwg.mxu0
    %3350 = vmatprep.subr.bf16.mxu0 0
    %3351 = vmatpush1.bf16.msra.mxu0 %v2949
    %3352 = vmatprep.subr.bf16.mxu0 0
    %3353 = vmatpush1.bf16.msra.mxu0 %v2948
    %3354 = vmatprep.subr.bf16.mxu0 0
    %3355 = vmatpush1.bf16.msra.mxu0 %v2947
    %3356 = vmatprep.subr.bf16.mxu0 0
    %3357 = vmatpush1.bf16.msra.mxu0 %v2946
    %3358 = vmatprep.subr.bf16.mxu0 0
    %3359 = vmatpush1.bf16.msra.mxu0 %v2945
    %3360 = vmatprep.subr.bf16.mxu0 0
    %3361 = vmatpush1.bf16.msra.mxu0 %v2944
    %3362 = vmatprep.subr.bf16.mxu0 0
    %3363 = vmatpush1.bf16.msra.mxu0 %v2943
    %3364 = vmatprep.subr.bf16.mxu0 0
    %3365 = vmatpush1.bf16.msra.mxu0 %v2942
    %3366 = vmatprep.subr.bf16.mxu0 0
    %3367 = vmatpush2.bf16.msra.mxu0 %v2957
    %3368 = vmatprep.subr.bf16.mxu0 0
    %3369 = vmatpush2.bf16.msra.mxu0 %v2956
    %3370 = vmatprep.subr.bf16.mxu0 0
    %3371 = vmatpush2.bf16.msra.mxu0 %v2955
    %3372 = vmatprep.subr.bf16.mxu0 0
    %3373 = vmatpush2.bf16.msra.mxu0 %v2954
    %3374 = vmatprep.subr.bf16.mxu0 0
    %3375 = vmatpush2.bf16.msra.mxu0 %v2953
    %3376 = vmatprep.subr.bf16.mxu0 0
    %3377 = vmatpush2.bf16.msra.mxu0 %v2952
    %3378 = vmatprep.subr.bf16.mxu0 0
    %3379 = vmatpush2.bf16.msra.mxu0 %v2951
    %3380 = vmatprep.subr.bf16.mxu0 0
    %3381 = vmatpush2.bf16.msra.mxu0 %v2950
    %3382 = vmatprep.mubr.bf16.mxu0 %v1746
    %3383 = vmatmul.mubr.bf16.gmra.mxu0 %v1745
    %v3384 = vpop.f32.mrf.mxu0
    %v3385 = vadd.f32 %v3345, %v3384
    %v3386 = vpop.f32.mrf.mxu0
    %v3387 = vpop.f32.mrf.mxu0
    %v3388 = vpop.f32.mrf.mxu0
    %3389 = vdwg.mxu0
    %3390 = vmatprep.subr.bf16.mxu0 0
    %3391 = vmatpush1.bf16.msra.mxu0 %v2965
    %3392 = vmatprep.subr.bf16.mxu0 0
    %3393 = vmatpush1.bf16.msra.mxu0 %v2964
    %3394 = vmatprep.subr.bf16.mxu0 0
    %3395 = vmatpush1.bf16.msra.mxu0 %v2963
    %3396 = vmatprep.subr.bf16.mxu0 0
    %3397 = vmatpush1.bf16.msra.mxu0 %v2962
    %3398 = vmatprep.subr.bf16.mxu0 0
    %3399 = vmatpush1.bf16.msra.mxu0 %v2961
    %3400 = vmatprep.subr.bf16.mxu0 0
    %3401 = vmatpush1.bf16.msra.mxu0 %v2960
    %3402 = vmatprep.subr.bf16.mxu0 0
    %3403 = vmatpush1.bf16.msra.mxu0 %v2959
    %3404 = vmatprep.subr.bf16.mxu0 0
    %3405 = vmatpush1.bf16.msra.mxu0 %v2958
    %3406 = vmatprep.subr.bf16.mxu0 0
    %3407 = vmatpush2.bf16.msra.mxu0 %v2973
    %3408 = vmatprep.subr.bf16.mxu0 0
    %3409 = vmatpush2.bf16.msra.mxu0 %v2972
    %3410 = vmatprep.subr.bf16.mxu0 0
    %3411 = vmatpush2.bf16.msra.mxu0 %v2971
    %3412 = vmatprep.subr.bf16.mxu0 0
    %3413 = vmatpush2.bf16.msra.mxu0 %v2970
    %3414 = vmatprep.subr.bf16.mxu0 0
    %3415 = vmatpush2.bf16.msra.mxu0 %v2969
    %3416 = vmatprep.subr.bf16.mxu0 0
    %3417 = vmatpush2.bf16.msra.mxu0 %v2968
    %3418 = vmatprep.subr.bf16.mxu0 0
    %3419 = vmatpush2.bf16.msra.mxu0 %v2967
    %3420 = vmatprep.subr.bf16.mxu0 0
    %3421 = vmatpush2.bf16.msra.mxu0 %v2966
    %3422 = vmatprep.mubr.bf16.mxu0 %v1748
    %3423 = vmatmul.mubr.bf16.gmra.mxu0 %v1747
    %v3424 = vpop.f32.mrf.mxu0
    %v3425 = vadd.f32 %v3385, %v3424
    %v3426 = vpop.f32.mrf.mxu0
    %v3427 = vpop.f32.mrf.mxu0
    %v3428 = vpop.f32.mrf.mxu0
    %3429 = vdwg.mxu0
    %3430 = vmatprep.subr.bf16.mxu0 0
    %3431 = vmatpush1.bf16.msra.mxu0 %v2981
    %3432 = vmatprep.subr.bf16.mxu0 0
    %3433 = vmatpush1.bf16.msra.mxu0 %v2980
    %3434 = vmatprep.subr.bf16.mxu0 0
    %3435 = vmatpush1.bf16.msra.mxu0 %v2979
    %3436 = vmatprep.subr.bf16.mxu0 0
    %3437 = vmatpush1.bf16.msra.mxu0 %v2978
    %3438 = vmatprep.subr.bf16.mxu0 0
    %3439 = vmatpush1.bf16.msra.mxu0 %v2977
    %3440 = vmatprep.subr.bf16.mxu0 0
    %3441 = vmatpush1.bf16.msra.mxu0 %v2976
    %3442 = vmatprep.subr.bf16.mxu0 0
    %3443 = vmatpush1.bf16.msra.mxu0 %v2975
    %3444 = vmatprep.subr.bf16.mxu0 0
    %3445 = vmatpush1.bf16.msra.mxu0 %v2974
    %3446 = vmatprep.subr.bf16.mxu0 0
    %3447 = vmatpush2.bf16.msra.mxu0 %v2989
    %3448 = vmatprep.subr.bf16.mxu0 0
    %3449 = vmatpush2.bf16.msra.mxu0 %v2988
    %3450 = vmatprep.subr.bf16.mxu0 0
    %3451 = vmatpush2.bf16.msra.mxu0 %v2987
    %3452 = vmatprep.subr.bf16.mxu0 0
    %3453 = vmatpush2.bf16.msra.mxu0 %v2986
    %3454 = vmatprep.subr.bf16.mxu0 0
    %3455 = vmatpush2.bf16.msra.mxu0 %v2985
    %3456 = vmatprep.subr.bf16.mxu0 0
    %3457 = vmatpush2.bf16.msra.mxu0 %v2984
    %3458 = vmatprep.subr.bf16.mxu0 0
    %3459 = vmatpush2.bf16.msra.mxu0 %v2983
    %3460 = vmatprep.subr.bf16.mxu0 0
    %3461 = vmatpush2.bf16.msra.mxu0 %v2982
    %3462 = vmatprep.mubr.bf16.mxu0 %v1750
    %3463 = vmatmul.mubr.bf16.gmra.mxu0 %v1749
    %v3464 = vpop.f32.mrf.mxu0
    %v3465 = vadd.f32 %v3425, %v3464
    %v3466 = vpop.f32.mrf.mxu0
    %v3467 = vpop.f32.mrf.mxu0
    %v3468 = vpop.f32.mrf.mxu0
    %3469 = vdwg.mxu0
    %3470 = vmatprep.subr.bf16.mxu0 0
    %3471 = vmatpush1.bf16.msra.mxu0 %v2997
    %3472 = vmatprep.subr.bf16.mxu0 0
    %3473 = vmatpush1.bf16.msra.mxu0 %v2996
    %3474 = vmatprep.subr.bf16.mxu0 0
    %3475 = vmatpush1.bf16.msra.mxu0 %v2995
    %3476 = vmatprep.subr.bf16.mxu0 0
    %3477 = vmatpush1.bf16.msra.mxu0 %v2994
    %3478 = vmatprep.subr.bf16.mxu0 0
    %3479 = vmatpush1.bf16.msra.mxu0 %v2993
    %3480 = vmatprep.subr.bf16.mxu0 0
    %3481 = vmatpush1.bf16.msra.mxu0 %v2992
    %3482 = vmatprep.subr.bf16.mxu0 0
    %3483 = vmatpush1.bf16.msra.mxu0 %v2991
    %3484 = vmatprep.subr.bf16.mxu0 0
    %3485 = vmatpush1.bf16.msra.mxu0 %v2990
    %3486 = vmatprep.subr.bf16.mxu0 0
    %3487 = vmatpush2.bf16.msra.mxu0 %v3005
    %3488 = vmatprep.subr.bf16.mxu0 0
    %3489 = vmatpush2.bf16.msra.mxu0 %v3004
    %3490 = vmatprep.subr.bf16.mxu0 0
    %3491 = vmatpush2.bf16.msra.mxu0 %v3003
    %3492 = vmatprep.subr.bf16.mxu0 0
    %3493 = vmatpush2.bf16.msra.mxu0 %v3002
    %3494 = vmatprep.subr.bf16.mxu0 0
    %3495 = vmatpush2.bf16.msra.mxu0 %v3001
    %3496 = vmatprep.subr.bf16.mxu0 0
    %3497 = vmatpush2.bf16.msra.mxu0 %v3000
    %3498 = vmatprep.subr.bf16.mxu0 0
    %3499 = vmatpush2.bf16.msra.mxu0 %v2999
    %3500 = vmatprep.subr.bf16.mxu0 0
    %3501 = vmatpush2.bf16.msra.mxu0 %v2998
    %3502 = vmatprep.mubr.bf16.mxu0 %v1752
    %3503 = vmatmul.mubr.bf16.gmra.mxu0 %v1751
    %v3504 = vpop.f32.mrf.mxu0
    %v3505 = vadd.f32 %v3465, %v3504
    %v3506 = vpop.f32.mrf.mxu0
    %v3507 = vpop.f32.mrf.mxu0
    %v3508 = vpop.f32.mrf.mxu0
    %3509 = vdwg.mxu0
    %3510 = vmatprep.subr.bf16.mxu0 0
    %3511 = vmatpush1.bf16.msra.mxu0 %v3013
    %3512 = vmatprep.subr.bf16.mxu0 0
    %3513 = vmatpush1.bf16.msra.mxu0 %v3012
    %3514 = vmatprep.subr.bf16.mxu0 0
    %3515 = vmatpush1.bf16.msra.mxu0 %v3011
    %3516 = vmatprep.subr.bf16.mxu0 0
    %3517 = vmatpush1.bf16.msra.mxu0 %v3010
    %3518 = vmatprep.subr.bf16.mxu0 0
    %3519 = vmatpush1.bf16.msra.mxu0 %v3009
    %3520 = vmatprep.subr.bf16.mxu0 0
    %3521 = vmatpush1.bf16.msra.mxu0 %v3008
    %3522 = vmatprep.subr.bf16.mxu0 0
    %3523 = vmatpush1.bf16.msra.mxu0 %v3007
    %3524 = vmatprep.subr.bf16.mxu0 0
    %3525 = vmatpush1.bf16.msra.mxu0 %v3006
    %3526 = vmatprep.subr.bf16.mxu0 0
    %3527 = vmatpush2.bf16.msra.mxu0 %v3021
    %3528 = vmatprep.subr.bf16.mxu0 0
    %3529 = vmatpush2.bf16.msra.mxu0 %v3020
    %3530 = vmatprep.subr.bf16.mxu0 0
    %3531 = vmatpush2.bf16.msra.mxu0 %v3019
    %3532 = vmatprep.subr.bf16.mxu0 0
    %3533 = vmatpush2.bf16.msra.mxu0 %v3018
    %3534 = vmatprep.subr.bf16.mxu0 0
    %3535 = vmatpush2.bf16.msra.mxu0 %v3017
    %3536 = vmatprep.subr.bf16.mxu0 0
    %3537 = vmatpush2.bf16.msra.mxu0 %v3016
    %3538 = vmatprep.subr.bf16.mxu0 0
    %3539 = vmatpush2.bf16.msra.mxu0 %v3015
    %3540 = vmatprep.subr.bf16.mxu0 0
    %3541 = vmatpush2.bf16.msra.mxu0 %v3014
    %3542 = vmatprep.mubr.bf16.mxu0 %v1754
    %3543 = vmatmul.mubr.bf16.gmra.mxu0 %v1753
    %v3544 = vpop.f32.mrf.mxu0
    %v3545 = vadd.f32 %v3505, %v3544
    %v3546 = vpop.f32.mrf.mxu0
    %v3547 = vpop.f32.mrf.mxu0
    %v3548 = vpop.f32.mrf.mxu0
    %3549 = vdwg.mxu0
    %3550 = vmatprep.subr.bf16.mxu0 0
    %3551 = vmatpush1.bf16.msra.mxu0 %v3029
    %3552 = vmatprep.subr.bf16.mxu0 0
    %3553 = vmatpush1.bf16.msra.mxu0 %v3028
    %3554 = vmatprep.subr.bf16.mxu0 0
    %3555 = vmatpush1.bf16.msra.mxu0 %v3027
    %3556 = vmatprep.subr.bf16.mxu0 0
    %3557 = vmatpush1.bf16.msra.mxu0 %v3026
    %3558 = vmatprep.subr.bf16.mxu0 0
    %3559 = vmatpush1.bf16.msra.mxu0 %v3025
    %3560 = vmatprep.subr.bf16.mxu0 0
    %3561 = vmatpush1.bf16.msra.mxu0 %v3024
    %3562 = vmatprep.subr.bf16.mxu0 0
    %3563 = vmatpush1.bf16.msra.mxu0 %v3023
    %3564 = vmatprep.subr.bf16.mxu0 0
    %3565 = vmatpush1.bf16.msra.mxu0 %v3022
    %3566 = vmatprep.subr.bf16.mxu0 0
    %3567 = vmatpush2.bf16.msra.mxu0 %v3037
    %3568 = vmatprep.subr.bf16.mxu0 0
    %3569 = vmatpush2.bf16.msra.mxu0 %v3036
    %3570 = vmatprep.subr.bf16.mxu0 0
    %3571 = vmatpush2.bf16.msra.mxu0 %v3035
    %3572 = vmatprep.subr.bf16.mxu0 0
    %3573 = vmatpush2.bf16.msra.mxu0 %v3034
    %3574 = vmatprep.subr.bf16.mxu0 0
    %3575 = vmatpush2.bf16.msra.mxu0 %v3033
    %3576 = vmatprep.subr.bf16.mxu0 0
    %3577 = vmatpush2.bf16.msra.mxu0 %v3032
    %3578 = vmatprep.subr.bf16.mxu0 0
    %3579 = vmatpush2.bf16.msra.mxu0 %v3031
    %3580 = vmatprep.subr.bf16.mxu0 0
    %3581 = vmatpush2.bf16.msra.mxu0 %v3030
    %3582 = vmatprep.mubr.bf16.mxu0 %v1756
    %3583 = vmatmul.mubr.bf16.gmra.mxu0 %v1755
    %v3584 = vpop.f32.mrf.mxu0
    %v3585 = vadd.f32 %v3545, %v3584
    %v3586 = vpop.f32.mrf.mxu0
    %v3587 = vpop.f32.mrf.mxu0
    %v3588 = vpop.f32.mrf.mxu0
    %3589 = vdwg.mxu0
    %3590 = vmatprep.subr.bf16.mxu0 0
    %3591 = vmatpush1.bf16.msra.mxu0 %v3045
    %3592 = vmatprep.subr.bf16.mxu0 0
    %3593 = vmatpush1.bf16.msra.mxu0 %v3044
    %3594 = vmatprep.subr.bf16.mxu0 0
    %3595 = vmatpush1.bf16.msra.mxu0 %v3043
    %3596 = vmatprep.subr.bf16.mxu0 0
    %3597 = vmatpush1.bf16.msra.mxu0 %v3042
    %3598 = vmatprep.subr.bf16.mxu0 0
    %3599 = vmatpush1.bf16.msra.mxu0 %v3041
    %3600 = vmatprep.subr.bf16.mxu0 0
    %3601 = vmatpush1.bf16.msra.mxu0 %v3040
    %3602 = vmatprep.subr.bf16.mxu0 0
    %3603 = vmatpush1.bf16.msra.mxu0 %v3039
    %3604 = vmatprep.subr.bf16.mxu0 0
    %3605 = vmatpush1.bf16.msra.mxu0 %v3038
    %3606 = vmatprep.subr.bf16.mxu0 0
    %3607 = vmatpush2.bf16.msra.mxu0 %v3053
    %3608 = vmatprep.subr.bf16.mxu0 0
    %3609 = vmatpush2.bf16.msra.mxu0 %v3052
    %3610 = vmatprep.subr.bf16.mxu0 0
    %3611 = vmatpush2.bf16.msra.mxu0 %v3051
    %3612 = vmatprep.subr.bf16.mxu0 0
    %3613 = vmatpush2.bf16.msra.mxu0 %v3050
    %3614 = vmatprep.subr.bf16.mxu0 0
    %3615 = vmatpush2.bf16.msra.mxu0 %v3049
    %3616 = vmatprep.subr.bf16.mxu0 0
    %3617 = vmatpush2.bf16.msra.mxu0 %v3048
    %3618 = vmatprep.subr.bf16.mxu0 0
    %3619 = vmatpush2.bf16.msra.mxu0 %v3047
    %3620 = vmatprep.subr.bf16.mxu0 0
    %3621 = vmatpush2.bf16.msra.mxu0 %v3046
    %3622 = vmatprep.mubr.bf16.mxu0 %v1758
    %3623 = vmatmul.mubr.bf16.gmra.mxu0 %v1757
    %v3624 = vpop.f32.mrf.mxu0
    %v3625 = vadd.f32 %v3585, %v3624
    %v3626 = vpop.f32.mrf.mxu0
    %v3627 = vpop.f32.mrf.mxu0
    %v3628 = vpop.f32.mrf.mxu0
    %3629 = vdwg.mxu0
    %3630 = vmatprep.subr.bf16.mxu0 0
    %3631 = vmatpush1.bf16.msra.mxu0 %v3061
    %3632 = vmatprep.subr.bf16.mxu0 0
    %3633 = vmatpush1.bf16.msra.mxu0 %v3060
    %3634 = vmatprep.subr.bf16.mxu0 0
    %3635 = vmatpush1.bf16.msra.mxu0 %v3059
    %3636 = vmatprep.subr.bf16.mxu0 0
    %3637 = vmatpush1.bf16.msra.mxu0 %v3058
    %3638 = vmatprep.subr.bf16.mxu0 0
    %3639 = vmatpush1.bf16.msra.mxu0 %v3057
    %3640 = vmatprep.subr.bf16.mxu0 0
    %3641 = vmatpush1.bf16.msra.mxu0 %v3056
    %3642 = vmatprep.subr.bf16.mxu0 0
    %3643 = vmatpush1.bf16.msra.mxu0 %v3055
    %3644 = vmatprep.subr.bf16.mxu0 0
    %3645 = vmatpush1.bf16.msra.mxu0 %v3054
    %3646 = vmatprep.subr.bf16.mxu0 0
    %3647 = vmatpush2.bf16.msra.mxu0 %v3069
    %3648 = vmatprep.subr.bf16.mxu0 0
    %3649 = vmatpush2.bf16.msra.mxu0 %v3068
    %3650 = vmatprep.subr.bf16.mxu0 0
    %3651 = vmatpush2.bf16.msra.mxu0 %v3067
    %3652 = vmatprep.subr.bf16.mxu0 0
    %3653 = vmatpush2.bf16.msra.mxu0 %v3066
    %3654 = vmatprep.subr.bf16.mxu0 0
    %3655 = vmatpush2.bf16.msra.mxu0 %v3065
    %3656 = vmatprep.subr.bf16.mxu0 0
    %3657 = vmatpush2.bf16.msra.mxu0 %v3064
    %3658 = vmatprep.subr.bf16.mxu0 0
    %3659 = vmatpush2.bf16.msra.mxu0 %v3063
    %3660 = vmatprep.subr.bf16.mxu0 0
    %3661 = vmatpush2.bf16.msra.mxu0 %v3062
    %3662 = vmatprep.mubr.bf16.mxu0 %v1760
    %3663 = vmatmul.mubr.bf16.gmra.mxu0 %v1759
    %v3664 = vpop.f32.mrf.mxu0
    %v3665 = vadd.f32 %v3625, %v3664
    %v3666 = vpop.f32.mrf.mxu0
    %v3667 = vpop.f32.mrf.mxu0
    %v3668 = vpop.f32.mrf.mxu0
    %3669 = vdwg.mxu0
    %3670 = vmatprep.subr.bf16.mxu0 0
    %3671 = vmatpush1.bf16.msra.mxu0 %v3077
    %3672 = vmatprep.subr.bf16.mxu0 0
    %3673 = vmatpush1.bf16.msra.mxu0 %v3076
    %3674 = vmatprep.subr.bf16.mxu0 0
    %3675 = vmatpush1.bf16.msra.mxu0 %v3075
    %3676 = vmatprep.subr.bf16.mxu0 0
    %3677 = vmatpush1.bf16.msra.mxu0 %v3074
    %3678 = vmatprep.subr.bf16.mxu0 0
    %3679 = vmatpush1.bf16.msra.mxu0 %v3073
    %3680 = vmatprep.subr.bf16.mxu0 0
    %3681 = vmatpush1.bf16.msra.mxu0 %v3072
    %3682 = vmatprep.subr.bf16.mxu0 0
    %3683 = vmatpush1.bf16.msra.mxu0 %v3071
    %3684 = vmatprep.subr.bf16.mxu0 0
    %3685 = vmatpush1.bf16.msra.mxu0 %v3070
    %3686 = vmatprep.subr.bf16.mxu0 0
    %3687 = vmatpush2.bf16.msra.mxu0 %v3085
    %3688 = vmatprep.subr.bf16.mxu0 0
    %3689 = vmatpush2.bf16.msra.mxu0 %v3084
    %3690 = vmatprep.subr.bf16.mxu0 0
    %3691 = vmatpush2.bf16.msra.mxu0 %v3083
    %3692 = vmatprep.subr.bf16.mxu0 0
    %3693 = vmatpush2.bf16.msra.mxu0 %v3082
    %3694 = vmatprep.subr.bf16.mxu0 0
    %3695 = vmatpush2.bf16.msra.mxu0 %v3081
    %3696 = vmatprep.subr.bf16.mxu0 0
    %3697 = vmatpush2.bf16.msra.mxu0 %v3080
    %3698 = vmatprep.subr.bf16.mxu0 0
    %3699 = vmatpush2.bf16.msra.mxu0 %v3079
    %3700 = vmatprep.subr.bf16.mxu0 0
    %3701 = vmatpush2.bf16.msra.mxu0 %v3078
    %3702 = vmatprep.mubr.bf16.mxu0 %v1762
    %3703 = vmatmul.mubr.bf16.gmra.mxu0 %v1761
    %v3704 = vpop.f32.mrf.mxu0
    %v3705 = vadd.f32 %v3665, %v3704
    %v3706 = vpop.f32.mrf.mxu0
    %v3707 = vpop.f32.mrf.mxu0
    %v3708 = vpop.f32.mrf.mxu0
    %3709 = vdwg.mxu0
    %3710 = vmatprep.subr.bf16.mxu0 0
    %3711 = vmatpush1.bf16.msra.mxu0 %v3093
    %3712 = vmatprep.subr.bf16.mxu0 0
    %3713 = vmatpush1.bf16.msra.mxu0 %v3092
    %3714 = vmatprep.subr.bf16.mxu0 0
    %3715 = vmatpush1.bf16.msra.mxu0 %v3091
    %3716 = vmatprep.subr.bf16.mxu0 0
    %3717 = vmatpush1.bf16.msra.mxu0 %v3090
    %3718 = vmatprep.subr.bf16.mxu0 0
    %3719 = vmatpush1.bf16.msra.mxu0 %v3089
    %3720 = vmatprep.subr.bf16.mxu0 0
    %3721 = vmatpush1.bf16.msra.mxu0 %v3088
    %3722 = vmatprep.subr.bf16.mxu0 0
    %3723 = vmatpush1.bf16.msra.mxu0 %v3087
    %3724 = vmatprep.subr.bf16.mxu0 0
    %3725 = vmatpush1.bf16.msra.mxu0 %v3086
    %3726 = vmatprep.subr.bf16.mxu0 0
    %3727 = vmatpush2.bf16.msra.mxu0 %v3101
    %3728 = vmatprep.subr.bf16.mxu0 0
    %3729 = vmatpush2.bf16.msra.mxu0 %v3100
    %3730 = vmatprep.subr.bf16.mxu0 0
    %3731 = vmatpush2.bf16.msra.mxu0 %v3099
    %3732 = vmatprep.subr.bf16.mxu0 0
    %3733 = vmatpush2.bf16.msra.mxu0 %v3098
    %3734 = vmatprep.subr.bf16.mxu0 0
    %3735 = vmatpush2.bf16.msra.mxu0 %v3097
    %3736 = vmatprep.subr.bf16.mxu0 0
    %3737 = vmatpush2.bf16.msra.mxu0 %v3096
    %3738 = vmatprep.subr.bf16.mxu0 0
    %3739 = vmatpush2.bf16.msra.mxu0 %v3095
    %3740 = vmatprep.subr.bf16.mxu0 0
    %3741 = vmatpush2.bf16.msra.mxu0 %v3094
    %3742 = vmatprep.mubr.bf16.mxu0 %v1764
    %3743 = vmatmul.mubr.bf16.gmra.mxu0 %v1763
    %v3744 = vpop.f32.mrf.mxu0
    %v3745 = vadd.f32 %v3705, %v3744
    %v3746 = vpop.f32.mrf.mxu0
    %v3747 = vpop.f32.mrf.mxu0
    %v3748 = vpop.f32.mrf.mxu0
    %3749 = vdwg.mxu0
    %3750 = vmatprep.subr.bf16.mxu0 0
    %3751 = vmatpush1.bf16.msra.mxu0 %v3109
    %3752 = vmatprep.subr.bf16.mxu0 0
    %3753 = vmatpush1.bf16.msra.mxu0 %v3108
    %3754 = vmatprep.subr.bf16.mxu0 0
    %3755 = vmatpush1.bf16.msra.mxu0 %v3107
    %3756 = vmatprep.subr.bf16.mxu0 0
    %3757 = vmatpush1.bf16.msra.mxu0 %v3106
    %3758 = vmatprep.subr.bf16.mxu0 0
    %3759 = vmatpush1.bf16.msra.mxu0 %v3105
    %3760 = vmatprep.subr.bf16.mxu0 0
    %3761 = vmatpush1.bf16.msra.mxu0 %v3104
    %3762 = vmatprep.subr.bf16.mxu0 0
    %3763 = vmatpush1.bf16.msra.mxu0 %v3103
    %3764 = vmatprep.subr.bf16.mxu0 0
    %3765 = vmatpush1.bf16.msra.mxu0 %v3102
    %3766 = vmatprep.subr.bf16.mxu0 0
    %3767 = vmatpush2.bf16.msra.mxu0 %v3117
    %3768 = vmatprep.subr.bf16.mxu0 0
    %3769 = vmatpush2.bf16.msra.mxu0 %v3116
    %3770 = vmatprep.subr.bf16.mxu0 0
    %3771 = vmatpush2.bf16.msra.mxu0 %v3115
    %3772 = vmatprep.subr.bf16.mxu0 0
    %3773 = vmatpush2.bf16.msra.mxu0 %v3114
    %3774 = vmatprep.subr.bf16.mxu0 0
    %3775 = vmatpush2.bf16.msra.mxu0 %v3113
    %3776 = vmatprep.subr.bf16.mxu0 0
    %3777 = vmatpush2.bf16.msra.mxu0 %v3112
    %3778 = vmatprep.subr.bf16.mxu0 0
    %3779 = vmatpush2.bf16.msra.mxu0 %v3111
    %3780 = vmatprep.subr.bf16.mxu0 0
    %3781 = vmatpush2.bf16.msra.mxu0 %v3110
    %3782 = vmatprep.mubr.bf16.mxu0 %v1766
    %3783 = vmatmul.mubr.bf16.gmra.mxu0 %v1765
    %v3784 = vpop.f32.mrf.mxu0
    %v3785 = vadd.f32 %v3745, %v3784
    %v3786 = vpop.f32.mrf.mxu0
    %v3787 = vpop.f32.mrf.mxu0
    %v3788 = vpop.f32.mrf.mxu0
    %3789 = vdwg.mxu0
    %3790 = vst [vmem:[#allocation9] sm:$0x3] %v3785
    // Predicated region
    $region38: #{_forward_impl.1} parent=1 // pred_check
      _
    $region39: #{_forward_impl.1} parent=1 // pred_check_branch
      %3792 = sbr.rel (0) target = $region41
    $region40: #{_forward_impl.1} parent=1 // pred_region
      %s3794 = ssub.s32 32, 32
      %3795 = vsyncadd [#allocation8], %s3794
      %s3797 = sshll.u32 [#allocation9], 4
      %s3798 = int_to_ptr.vmem [resolvable:$true] %s3797
      %3800 = dma.vmem_to_hbm [thread:$0]  %s3798, 32, %s8, [#allocation8]
    $region41: #{_forward_impl.1} parent=1 // pred_fallthru
      _
    // Predicated region
    $region42: #{_forward_impl.1} parent=1 // pred_check
      _
    $region43: #{_forward_impl.1} parent=1 // pred_check_branch
      %3802 = sbr.rel (0) target = $region45
    $region44: #{_forward_impl.1} parent=1 // pred_region
      %3803 = dma.done [#allocation8], 32
    $region45: #{_forward_impl.1} parent=1 // pred_fallthru
      _
    %3804 = vsyncpa [#allocation7], 1
    %3805 = vsyncpa [#allocation8], 1

</llo_original>
